<compile_context>
chip_gen: v6e
topology: v6e:2x2x1
jax: 0.10.0
libtpu: 0.0.40
codegen_flags: <defaults>
</compile_context>

<pallas_src>
import math

import jax
import jax.numpy as jnp
from jax.experimental import pallas as pl
from jax.experimental.pallas import tpu as pltpu

# ----------------------------- configuration -----------------------------
NUM_STEPS = 100
K_CLASSES = 20          # out_node_nf
X_DIM = 3
HIDDEN_NF = 32          # small synthetic hidden size (module default is 1024)
N_LAYERS = 2            # small synthetic depth   (module default is 4)
IN_NODE_NF = K_CLASSES + 3 + X_DIM   # 26 = cat([h(20), t_embed(3), x(3)])
OUT_NODE_NF = K_CLASSES

MEAN = jnp.array([-0.7497, 0.5599, -0.2493], jnp.float32)
STD = jnp.array([14.9381, 12.476, 15.7061], jnp.float32)


# --------------------------- variance schedule ----------------------------
def make_variance_schedule(num_steps=NUM_STEPS, s=0.01):
    T = num_steps
    t = jnp.arange(0, num_steps + 1, dtype=jnp.float32)
    f_t = jnp.cos((jnp.pi / 2.0) * ((t / T) + s) / (1.0 + s)) ** 2
    alpha_bars = f_t / f_t[0]
    betas = 1.0 - (alpha_bars[1:] / alpha_bars[:-1])
    betas = jnp.concatenate([jnp.zeros((1,), jnp.float32), betas])
    betas = jnp.minimum(betas, 0.999)
    alphas = 1.0 - betas
    return betas, alphas, alpha_bars


# ------------------------------ kernel helpers ------------------------------
def _silu(y):
    # sigmoid denominator via EUP approximate reciprocal (frees VALU slots)
    return y * pl.reciprocal(1.0 + jnp.exp(-y), approx=True)


def _mxu(a_bf16, b_bf16):
    # operands are already bf16; f32 accumulate on the MXU
    return jnp.dot(a_bf16, b_bf16, preferred_element_type=jnp.float32)


def _dotf32(a, b):
    # f32 matmul for the coordinate path and tiny-K embeddings
    return jnp.dot(a, b, preferred_element_type=jnp.float32)


def _posterior(c_t, c_prev, alpha, abar_prev):
    # TODO(synk): D3PM uniform-transition posterior reconstructed from
    # AminoacidCategoricalTransition.posterior; validate against the reference.
    theta = (alpha * c_t + (1.0 - alpha) / K_CLASSES) * \
            (abar_prev * c_prev + (1.0 - abar_prev) / K_CLASSES)
    return theta * pl.reciprocal(jnp.sum(theta, axis=-1, keepdims=True) + 1e-8,
                                 approx=True)


# ------------------------------ fused kernel --------------------------------
def _fused_dpm_kernel(sc_ref,                                     # SMEM (3,): alpha_t, abar_prev, 1/denom
                      hseq_ref, x0_ref, temb_ref,                 # (L,20) (L,3) (L,3) f32
                      ohr_ref, ohc_ref, segs_ref, segm_ref,       # (E,L)bf16 (E,L)bf16 (L,E)bf16 (L,E)f32
                      epsp_ref, c0h_ref,                          # (L,3) (L,20) f32
                      wih_ref, wit_ref, wix_ref, bi_ref,          # emb_in split (f32)
                      wo_ref, bo_ref,                             # emb_out (bf16 / f32)
                      e1r_ref, e1c_ref, e1rad_ref, e1b_ref,       # per-layer slabs (streamed)
                      e2w_ref, e2b_ref,
                      c1w_ref, c1b_ref, c2wT_ref,
                      n1h_ref, n1a_ref, n1b_ref,
                      n2w_ref, n2b_ref,
                      lpos_ref, lseq_ref,                         # (1,1) f32 outputs
                      h_sc, x_sc):                                # VMEM scratch accumulators
    layer = pl.program_id(0)
    n_layers = pl.num_programs(0)

    # ------------------- layer 0: input embedding (no concat) -------------------
    @pl.when(layer == 0)
    def _init():
        x_sc[...] = x0_ref[...]
        h_sc[...] = (_dotf32(hseq_ref[...], wih_ref[...])
                     + _dotf32(temb_ref[...], wit_ref[...])
                     + _dotf32(x0_ref[...], wix_ref[...])
                     + bi_ref[...])

    h = h_sc[...]                      # (L, H) f32
    x = x_sc[...]                      # (L, 3) f32
    h_bf = h.astype(jnp.bfloat16)

    ohr_bf = ohr_ref[...]              # (E, L) bf16 gather h[row]
    ohc_bf = ohc_ref[...]              # (E, L) bf16 gather h[col]
    ohr_f = ohr_bf.astype(jnp.float32)
    ohc_f = ohc_bf.astype(jnp.float32)

    # coordinate gathers stay f32 (position precision)
    x_row = _dotf32(ohr_f, x)                                      # (E, 3)
    x_col = _dotf32(ohc_f, x)
    coord_diff = x_row - x_col
    radial = jnp.sum(coord_diff * coord_diff, axis=1, keepdims=True)   # (E, 1)

    # ------------- edge model: edge1 hoisted to node space, bf16 gather ---------
    h_pr = _mxu(h_bf, e1r_ref[0])                                  # (L, H)
    h_pc = _mxu(h_bf, e1c_ref[0])                                  # (L, H)
    m = (_mxu(ohr_bf, h_pr.astype(jnp.bfloat16))
         + _mxu(ohc_bf, h_pc.astype(jnp.bfloat16))
         + radial * e1rad_ref[0] + e1b_ref[0])                     # (E, H)
    m = _silu(m)
    m = _silu(_mxu(m.astype(jnp.bfloat16), e2w_ref[0]) + e2b_ref[0])
    m_bf = m.astype(jnp.bfloat16)

    # --------- coord model: VPU multiply + cross-lane reduce (no (H,1) MXU) -----
    cw = _silu(_mxu(m_bf, c1w_ref[0]) + c1b_ref[0])                # (E, H)
    cw = jnp.sum(cw * c2wT_ref[0], axis=1, keepdims=True)          # (E, 1)
    trans = coord_diff * cw                                        # (E, 3)
    x_sc[...] = x + _dotf32(segm_ref[...], trans)                  # mean: 1/deg folded in

    # ------------- node model: bf16 segment-sum on MXU + residual ---------------
    agg = _mxu(segs_ref[...], m_bf)                                # (L, H)
    out = _silu(_mxu(h_bf, n1h_ref[0])
                + _mxu(agg.astype(jnp.bfloat16), n1a_ref[0])
                + n1b_ref[0])
    out = _mxu(out.astype(jnp.bfloat16), n2w_ref[0]) + n2b_ref[0]
    h_sc[...] = h + out

    # ------------------------- fused loss epilogue ------------------------------
    @pl.when(layer == n_layers - 1)
    def _epilogue():
        alpha = sc_ref[0]
        abar_prev = sc_ref[1]
        inv_denom = sc_ref[2]

        logits = _mxu(h_sc[...].astype(jnp.bfloat16), wo_ref[...]) + bo_ref[...]

        # softmax(logits)
        mx = jnp.max(logits, axis=-1, keepdims=True)
        el = jnp.exp(logits - mx)
        c_den = el * pl.reciprocal(jnp.sum(el, axis=-1, keepdims=True), approx=True)

        # sequence KL:  kl_div(log_post_pred, post_true), sum * 1/denom
        c_t = hseq_ref[...]
        post_true = _posterior(c_t, c0h_ref[...], alpha, abar_prev)
        post_pred = _posterior(c_t, c_den, alpha, abar_prev)
        log_post_pred = jnp.log(post_pred + 1e-8)
        kld = jnp.where(post_true > 0.0,
                        post_true * (jnp.log(jnp.maximum(post_true, 1e-30))
                                     - log_post_pred),
                        0.0)
        lseq_ref[...] = jnp.sum(kld, keepdims=True) * inv_denom

        # position MSE on eps_pred = x_out - p_noisy
        d = (x_sc[...] - x0_ref[...]) - epsp_ref[...]
        lpos_ref[...] = jnp.sum(d * d, keepdims=True) * inv_denom


def fused_dpm_call(sc, hseq, x, temb, ohr, ohc, segs, segm, eps_p, c0h, wflat):
    vmem_inputs = (hseq, x, temb, ohr, ohc, segs, segm, eps_p, c0h) + tuple(wflat)
    n_layers = next(a.shape[0] for a in wflat if a.ndim == 3)
    L = hseq.shape[0]
    H = wflat[3].shape[-1]        # bi is (1, H)
    E = ohr.shape[0]
    K = K_CLASSES

    def nbytes(a):
        return int(math.prod(a.shape)) * a.dtype.itemsize

    in_specs = [pl.BlockSpec(memory_space=pltpu.MemorySpace.SMEM)]
    for a in vmem_inputs:
        if a.ndim == 3:
            # stacked per-layer weight slab, streamed over the layer grid axis
            in_specs.append(pl.BlockSpec((1,) + a.shape[1:], lambda l: (l, 0, 0)))
        else:
            # layer-invariant: constant block index => stays resident, no re-DMA
            in_specs.append(pl.BlockSpec(a.shape, lambda l: (0, 0)))

    resident = sum(nbytes(a) for a in vmem_inputs if a.ndim != 3)
    per_layer = sum(nbytes(a) // a.shape[0] for a in vmem_inputs if a.ndim == 3)
    scratch_bytes = 4 * (L * H + L * X_DIM)
    vmem_limit = min(resident + 2 * per_layer + scratch_bytes + (4 << 20), 64 << 20)

    mxu_flops_layer = (
        2 * L * H * H * 2          # edge1 projections hoisted to node space
        + 2 * E * L * H * 2        # h gathers (bf16 one-hot @ projected h)
        + 2 * E * H * H * 2        # edge2 + coord1
        + 2 * E * L * X_DIM * 2    # x gathers
        + 2 * L * E * X_DIM        # coord scatter-mean
        + 2 * L * E * H            # node segment-sum
        + 2 * L * H * H * 3)       # node1 (h + agg) + node2
    flops = n_layers * mxu_flops_layer + 2 * L * (K + 2 * X_DIM) * H + 2 * L * H * K
    transcendentals = n_layers * (3 * E * H + L * H) + 4 * L * K
    cost = pl.CostEstimate(flops=int(flops),
                           transcendentals=int(transcendentals),
                           bytes_accessed=int(resident + n_layers * per_layer + 8))

    return pl.pallas_call(
        _fused_dpm_kernel,
        grid=(n_layers,),
        out_shape=(jax.ShapeDtypeStruct((1, 1), jnp.float32),
                   jax.ShapeDtypeStruct((1, 1), jnp.float32)),
        in_specs=in_specs,
        out_specs=(pl.BlockSpec((1, 1), lambda l: (0, 0)),
                   pl.BlockSpec((1, 1), lambda l: (0, 0))),
        scratch_shapes=[pltpu.VMEM((L, H), jnp.float32),       # h accumulator
                        pltpu.VMEM((L, X_DIM), jnp.float32)],  # x accumulator
        compiler_params=pltpu.CompilerParams(
            dimension_semantics=("arbitrary",),
            vmem_limit_bytes=int(vmem_limit)),
        cost_estimate=cost,
    )(sc, *vmem_inputs)


# ------------------------------- parameters ---------------------------------
def init_params(key):
    def lin(k, fin, fout, scale=None, bias=True):
        s = (fin ** -0.5) if scale is None else scale
        w = jax.random.normal(k, (fin, fout), jnp.float32) * s
        b = jnp.zeros((fout,), jnp.float32) if bias else None
        return {"w": w, "b": b}

    keys = jax.random.split(key, 2 + 6 * N_LAYERS)
    params = {"emb_in": lin(keys[0], IN_NODE_NF, HIDDEN_NF),
              "emb_out": lin(keys[1], HIDDEN_NF, OUT_NODE_NF),
              "layers": []}
    ki = 2
    for _ in range(N_LAYERS):
        params["layers"].append({
            "edge1":  lin(keys[ki + 0], 2 * HIDDEN_NF + 1, HIDDEN_NF),
            "edge2":  lin(keys[ki + 1], HIDDEN_NF, HIDDEN_NF),
            "node1":  lin(keys[ki + 2], 2 * HIDDEN_NF, HIDDEN_NF),
            "node2":  lin(keys[ki + 3], HIDDEN_NF, HIDDEN_NF),
            "coord1": lin(keys[ki + 4], HIDDEN_NF, HIDDEN_NF),
            "coord2": lin(keys[ki + 5], HIDDEN_NF, 1, scale=1e-3, bias=False),
        })
        ki += 6
    return params


def prepare_weights(params):
    """Split concat weights, stack per-layer weights, pre-cast HxH stacks to bf16."""
    H = HIDDEN_NF
    bf = jnp.bfloat16
    wi = params["emb_in"]["w"]
    wih = wi[:K_CLASSES]
    wit = wi[K_CLASSES:K_CLASSES + 3]
    wix = wi[K_CLASSES + 3:]
    bi = params["emb_in"]["b"].reshape(1, -1)
    wo = params["emb_out"]["w"].astype(bf)
    bo = params["emb_out"]["b"].reshape(1, -1)

    def stack(fn, dtype=jnp.float32):
        return jnp.stack([fn(lp) for lp in params["layers"]], axis=0).astype(dtype)

    e1r = stack(lambda lp: lp["edge1"]["w"][:H], bf)                 # (NL, H, H)
    e1c = stack(lambda lp: lp["edge1"]["w"][H:2 * H], bf)            # (NL, H, H)
    e1rad = stack(lambda lp: lp["edge1"]["w"][2 * H:])               # (NL, 1, H) f32
    e1b = stack(lambda lp: lp["edge1"]["b"].reshape(1, -1))
    e2w = stack(lambda lp: lp["edge2"]["w"], bf)
    e2b = stack(lambda lp: lp["edge2"]["b"].reshape(1, -1))
    c1w = stack(lambda lp: lp["coord1"]["w"], bf)
    c1b = stack(lambda lp: lp["coord1"]["b"].reshape(1, -1))
    c2wT = stack(lambda lp: lp["coord2"]["w"].T)                     # (NL, 1, H) f32
    n1h = stack(lambda lp: lp["node1"]["w"][:H], bf)
    n1a = stack(lambda lp: lp["node1"]["w"][H:], bf)
    n1b = stack(lambda lp: lp["node1"]["b"].reshape(1, -1))
    n2w = stack(lambda lp: lp["node2"]["w"], bf)
    n2b = stack(lambda lp: lp["node2"]["b"].reshape(1, -1))
    return (wih, wit, wix, bi, wo, bo,
            e1r, e1c, e1rad, e1b, e2w, e2b,
            c1w, c1b, c2wT,
            n1h, n1a, n1b, n2w, n2b)


# ---------------------------- diffusion utilities --------------------------
def clampped_one_hot(x, num_classes):
    valid = ((x >= 0) & (x < num_classes)).astype(jnp.float32)
    xc = jnp.clip(x, 0, num_classes - 1)
    return jax.nn.one_hot(xc, num_classes, dtype=jnp.float32) * valid[..., None]


# ------------------------------ FullDPM.forward ----------------------------
@jax.jit
def full_dpm_forward(wflat, sched, p_0, c_0, row, col, key, t=None):
    betas, alphas, alpha_bars = sched
    N, L = p_0.shape[:2]
    k_t, k_eps, k_s0, k_sn = jax.random.split(key, 4)

    if t is None:
        t = jax.random.randint(k_t, (N,), 0, NUM_STEPS)

    # mask_generate is all-True in forward()
    p_0n = (p_0 - MEAN) / STD

    # PositionTransition.add_noise
    ab = alpha_bars[t]                                   # (N,)
    c0 = jnp.sqrt(ab)[:, None, None]
    c1 = jnp.sqrt(1.0 - ab)[:, None, None]
    eps_p = jax.random.normal(k_eps, p_0n.shape, jnp.float32)
    p_noisy = c0 * p_0n + c1 * eps_p

    # AminoacidCategoricalTransition: sample s_0, then add noise to get s_noisy
    s_0 = jax.random.categorical(k_s0, jnp.log(c_0 + 1e-8), axis=-1)       # (N, L)
    c_0h = clampped_one_hot(s_0, K_CLASSES)
    c_seq_noisy = ab[:, None, None] * c_0h + (1.0 - ab)[:, None, None] / K_CLASSES
    s_noisy = jax.random.categorical(k_sn, jnp.log(c_seq_noisy + 1e-8), axis=-1)
    c_noisy = clampped_one_hot(s_noisy, K_CLASSES)       # (N, L, 20)

    # time embedding
    # TODO(synk): broadcast of t_embed[0:1] (and schedule scalars below) hard-codes
    # N == 1, matching the reference's squeeze(0) path which also only works for N == 1.
    beta = betas[t]                                      # (N,)
    t_embed = jnp.stack([beta, jnp.sin(beta), jnp.cos(beta)], axis=-1)   # (N, 3)
    t_embed = jnp.broadcast_to(t_embed[0:1, :], (L, 3))

    # gather/scatter operators built on the host: bf16 for the H path (exact for 0/1),
    # f32 with 1/deg folded in for the coords_agg='mean' path.
    oh_row = jax.nn.one_hot(row, L, dtype=jnp.float32)                   # (E, L)
    oh_col = jax.nn.one_hot(col, L, dtype=jnp.float32)
    seg = oh_row.T                                                       # (L, E) scatter by row
    deg = jnp.maximum(jnp.sum(seg, axis=1, keepdims=True), 1.0)
    segm = seg / deg                                                     # mean scatter, f32
    ohr = oh_row.astype(jnp.bfloat16)
    ohc = oh_col.astype(jnp.bfloat16)
    segs = seg.astype(jnp.bfloat16)

    # schedule scalars + 1/denom passed as SMEM data (no recompile when N*L changes)
    alpha_t = alphas[t][0]
    abar_prev = alpha_bars[jnp.maximum(t - 1, 0)][0]
    inv_denom = 1.0 / (N * L + 1e-8)
    sc = jnp.stack([alpha_t, abar_prev, jnp.float32(inv_denom)]).astype(jnp.float32)

    loss_pos, loss_seq = fused_dpm_call(
        sc, c_noisy[0], p_noisy[0], t_embed,
        ohr, ohc, segs, segm, eps_p[0], c_0h[0], wflat)
    return {"pos": loss_pos[0, 0], "seq": loss_seq[0, 0]}


# ----------------------------------- main -----------------------------------
if __name__ == "__main__":
    key = jax.random.PRNGKey(0)
    k_p, k_c, k_param, k_fwd = jax.random.split(key, 4)

    N, L = 1, 8
    p_0 = jax.random.normal(k_p, (N, L, X_DIM), jnp.float32) * 10.0
    c_0 = jax.nn.softmax(jax.random.normal(k_c, (N, L, K_CLASSES), jnp.float32), axis=-1)

    # edges `e`: list of two (1, E) index tensors (fully connected, no self loops)
    rows, cols = [], []
    for i in range(L):
        for j in range(L):
            if i != j:
                rows.append(i)
                cols.append(j)
    e = [jnp.asarray(rows, jnp.int32)[None, :], jnp.asarray(cols, jnp.int32)[None, :]]
    edges = [edge.squeeze(0) for edge in e]
    # E = L*(L-1) = 56 is a multiple of the f32 sublane count (8).
    # TODO(synk): for arbitrary graphs, pad E to a multiple of 8 with masked dummy edges.

    params = init_params(k_param)
    wflat = prepare_weights(params)
    sched = make_variance_schedule(NUM_STEPS)

    loss_dict = full_dpm_forward(wflat, sched, p_0, c_0, edges[0], edges[1], k_fwd)
    jax.block_until_ready(loss_dict)

    for v in loss_dict.values():
        assert jnp.isfinite(v), "non-finite loss"
    print("KERNEL_OK")
</pallas_src>

<mosaic_0001>
module attributes {stable_mosaic.version = 11 : i64} {
  func.func @_fused_dpm_kernel(%arg0: i32, %arg1: memref<3xf32, #tpu.memory_space<smem>>, %arg2: memref<8x20xf32, #tpu.memory_space<vmem>>, %arg3: memref<8x3xf32, #tpu.memory_space<vmem>>, %arg4: memref<8x3xf32, #tpu.memory_space<vmem>>, %arg5: memref<56x8xbf16, #tpu.memory_space<vmem>>, %arg6: memref<56x8xbf16, #tpu.memory_space<vmem>>, %arg7: memref<8x56xbf16, #tpu.memory_space<vmem>>, %arg8: memref<8x56xf32, #tpu.memory_space<vmem>>, %arg9: memref<8x3xf32, #tpu.memory_space<vmem>>, %arg10: memref<8x20xf32, #tpu.memory_space<vmem>>, %arg11: memref<20x32xf32, #tpu.memory_space<vmem>>, %arg12: memref<3x32xf32, #tpu.memory_space<vmem>>, %arg13: memref<3x32xf32, #tpu.memory_space<vmem>>, %arg14: memref<1x32xf32, #tpu.memory_space<vmem>>, %arg15: memref<32x20xbf16, #tpu.memory_space<vmem>>, %arg16: memref<1x20xf32, #tpu.memory_space<vmem>>, %arg17: memref<1x32x32xbf16, #tpu.memory_space<vmem>>, %arg18: memref<1x32x32xbf16, #tpu.memory_space<vmem>>, %arg19: memref<1x1x32xf32, #tpu.memory_space<vmem>>, %arg20: memref<1x1x32xf32, #tpu.memory_space<vmem>>, %arg21: memref<1x32x32xbf16, #tpu.memory_space<vmem>>, %arg22: memref<1x1x32xf32, #tpu.memory_space<vmem>>, %arg23: memref<1x32x32xbf16, #tpu.memory_space<vmem>>, %arg24: memref<1x1x32xf32, #tpu.memory_space<vmem>>, %arg25: memref<1x1x32xf32, #tpu.memory_space<vmem>>, %arg26: memref<1x32x32xbf16, #tpu.memory_space<vmem>>, %arg27: memref<1x32x32xbf16, #tpu.memory_space<vmem>>, %arg28: memref<1x1x32xf32, #tpu.memory_space<vmem>>, %arg29: memref<1x32x32xbf16, #tpu.memory_space<vmem>>, %arg30: memref<1x1x32xf32, #tpu.memory_space<vmem>>, %arg31: memref<1x1xf32, #tpu.memory_space<vmem>>, %arg32: memref<1x1xf32, #tpu.memory_space<vmem>>, %arg33: memref<8x32xf32, #tpu.memory_space<vmem>>, %arg34: memref<8x3xf32, #tpu.memory_space<vmem>>) attributes {dimension_semantics = [#tpu.dimension_semantics<arbitrary>], iteration_bounds = array<i64: 2>, scalar_prefetch = 0 : i64, scratch_operands = 2 : i64, tpu.core_type = #tpu.core_type<tc>, window_params = [{transform_indices = @transform_0, window_bounds = array<i64: 3>}, {pipeline_mode = #tpu.pipeline_mode<synchronous>, transform_indices = @transform_1, window_bounds = array<i64: 8, 20>}, {pipeline_mode = #tpu.pipeline_mode<synchronous>, transform_indices = @transform_2, window_bounds = array<i64: 8, 3>}, {pipeline_mode = #tpu.pipeline_mode<synchronous>, transform_indices = @transform_3, window_bounds = array<i64: 8, 3>}, {pipeline_mode = #tpu.pipeline_mode<synchronous>, transform_indices = @transform_4, window_bounds = array<i64: 56, 8>}, {pipeline_mode = #tpu.pipeline_mode<synchronous>, transform_indices = @transform_5, window_bounds = array<i64: 56, 8>}, {pipeline_mode = #tpu.pipeline_mode<synchronous>, transform_indices = @transform_6, window_bounds = array<i64: 8, 56>}, {pipeline_mode = #tpu.pipeline_mode<synchronous>, transform_indices = @transform_7, window_bounds = array<i64: 8, 56>}, {pipeline_mode = #tpu.pipeline_mode<synchronous>, transform_indices = @transform_8, window_bounds = array<i64: 8, 3>}, {pipeline_mode = #tpu.pipeline_mode<synchronous>, transform_indices = @transform_9, window_bounds = array<i64: 8, 20>}, {pipeline_mode = #tpu.pipeline_mode<synchronous>, transform_indices = @transform_10, window_bounds = array<i64: 20, 32>}, {pipeline_mode = #tpu.pipeline_mode<synchronous>, transform_indices = @transform_11, window_bounds = array<i64: 3, 32>}, {pipeline_mode = #tpu.pipeline_mode<synchronous>, transform_indices = @transform_12, window_bounds = array<i64: 3, 32>}, {pipeline_mode = #tpu.pipeline_mode<synchronous>, transform_indices = @transform_13, window_bounds = array<i64: 1, 32>}, {pipeline_mode = #tpu.pipeline_mode<synchronous>, transform_indices = @transform_14, window_bounds = array<i64: 32, 20>}, {pipeline_mode = #tpu.pipeline_mode<synchronous>, transform_indices = @transform_15, window_bounds = array<i64: 1, 20>}, {transform_indices = @transform_16, window_bounds = array<i64: 1, 32, 32>}, {transform_indices = @transform_17, window_bounds = array<i64: 1, 32, 32>}, {transform_indices = @transform_18, window_bounds = array<i64: 1, 1, 32>}, {transform_indices = @transform_19, window_bounds = array<i64: 1, 1, 32>}, {transform_indices = @transform_20, window_bounds = array<i64: 1, 32, 32>}, {transform_indices = @transform_21, window_bounds = array<i64: 1, 1, 32>}, {transform_indices = @transform_22, window_bounds = array<i64: 1, 32, 32>}, {transform_indices = @transform_23, window_bounds = array<i64: 1, 1, 32>}, {transform_indices = @transform_24, window_bounds = array<i64: 1, 1, 32>}, {transform_indices = @transform_25, window_bounds = array<i64: 1, 32, 32>}, {transform_indices = @transform_26, window_bounds = array<i64: 1, 32, 32>}, {transform_indices = @transform_27, window_bounds = array<i64: 1, 1, 32>}, {transform_indices = @transform_28, window_bounds = array<i64: 1, 32, 32>}, {transform_indices = @transform_29, window_bounds = array<i64: 1, 1, 32>}, {pipeline_mode = #tpu.pipeline_mode<synchronous>, transform_indices = @transform_30, window_bounds = array<i64: 1, 1>}, {pipeline_mode = #tpu.pipeline_mode<synchronous>, transform_indices = @transform_31, window_bounds = array<i64: 1, 1>}]} {
    %c0_i32 = arith.constant 0 : i32
    %0 = arith.cmpi eq, %arg0, %c0_i32 : i32
    %1 = arith.extui %0 : i1 to i32
    %c0_i32_0 = arith.constant 0 : i32
    %2 = arith.cmpi ne, %1, %c0_i32_0 : i32
    scf.if %2 {
      %c0_81 = arith.constant 0 : index
      %c0_82 = arith.constant 0 : index
      %120 = vector.load %arg3[%c0_81, %c0_82] : memref<8x3xf32, #tpu.memory_space<vmem>>, vector<8x3xf32>
      %c0_83 = arith.constant 0 : index
      %c0_84 = arith.constant 0 : index
      %121 = vector.load %arg34[%c0_83, %c0_84] : memref<8x3xf32, #tpu.memory_space<vmem>>, vector<8x3xf32>
      tpu.vector_store %arg34[%c0_83, %c0_84], %120 {strides = array<i32>} : memref<8x3xf32, #tpu.memory_space<vmem>>, vector<8x3xf32>,
      %c0_85 = arith.constant 0 : index
      %c0_86 = arith.constant 0 : index
      %122 = vector.load %arg2[%c0_85, %c0_86] : memref<8x20xf32, #tpu.memory_space<vmem>>, vector<8x20xf32>
      %c0_87 = arith.constant 0 : index
      %c0_88 = arith.constant 0 : index
      %123 = vector.load %arg11[%c0_87, %c0_88] : memref<20x32xf32, #tpu.memory_space<vmem>>, vector<20x32xf32>
      %cst_89 = arith.constant dense<0.000000e+00> : vector<8x32xf32>
      %124 = tpu.matmul %122, %123, %cst_89 {dimension_numbers = #tpu.dot_dimension_numbers<[1], [0], [0], [1], [0, 0, 1, 1], [], []>} : vector<8x20xf32>, vector<20x32xf32>, vector<8x32xf32> -> vector<8x32xf32>
      %c0_90 = arith.constant 0 : index
      %c0_91 = arith.constant 0 : index
      %125 = vector.load %arg4[%c0_90, %c0_91] : memref<8x3xf32, #tpu.memory_space<vmem>>, vector<8x3xf32>
      %c0_92 = arith.constant 0 : index
      %c0_93 = arith.constant 0 : index
      %126 = vector.load %arg12[%c0_92, %c0_93] : memref<3x32xf32, #tpu.memory_space<vmem>>, vector<3x32xf32>
      %cst_94 = arith.constant dense<0.000000e+00> : vector<8x32xf32>
      %127 = tpu.matmul %125, %126, %cst_94 {dimension_numbers = #tpu.dot_dimension_numbers<[1], [0], [0], [1], [0, 0, 1, 1], [], []>} : vector<8x3xf32>, vector<3x32xf32>, vector<8x32xf32> -> vector<8x32xf32>
      %128 = arith.addf %124, %127 : vector<8x32xf32>
      %c0_95 = arith.constant 0 : index
      %c0_96 = arith.constant 0 : index
      %129 = vector.load %arg3[%c0_95, %c0_96] : memref<8x3xf32, #tpu.memory_space<vmem>>, vector<8x3xf32>
      %c0_97 = arith.constant 0 : index
      %c0_98 = arith.constant 0 : index
      %130 = vector.load %arg13[%c0_97, %c0_98] : memref<3x32xf32, #tpu.memory_space<vmem>>, vector<3x32xf32>
      %cst_99 = arith.constant dense<0.000000e+00> : vector<8x32xf32>
      %131 = tpu.matmul %129, %130, %cst_99 {dimension_numbers = #tpu.dot_dimension_numbers<[1], [0], [0], [1], [0, 0, 1, 1], [], []>} : vector<8x3xf32>, vector<3x32xf32>, vector<8x32xf32> -> vector<8x32xf32>
      %132 = arith.addf %128, %131 : vector<8x32xf32>
      %c0_100 = arith.constant 0 : index
      %c0_101 = arith.constant 0 : index
      %133 = vector.load %arg14[%c0_100, %c0_101] : memref<1x32xf32, #tpu.memory_space<vmem>>, vector<1x32xf32>
      %134 = vector.broadcast %133 : vector<1x32xf32> to vector<8x32xf32>
      %135 = arith.addf %132, %134 : vector<8x32xf32>
      %c0_102 = arith.constant 0 : index
      %c0_103 = arith.constant 0 : index
      %136 = vector.load %arg33[%c0_102, %c0_103] : memref<8x32xf32, #tpu.memory_space<vmem>>, vector<8x32xf32>
      tpu.vector_store %arg33[%c0_102, %c0_103], %135 {strides = array<i32>} : memref<8x32xf32, #tpu.memory_space<vmem>>, vector<8x32xf32>,
    } else {
    }
    %c0 = arith.constant 0 : index
    %c0_1 = arith.constant 0 : index
    %3 = vector.load %arg33[%c0, %c0_1] : memref<8x32xf32, #tpu.memory_space<vmem>>, vector<8x32xf32>
    %c0_2 = arith.constant 0 : index
    %c0_3 = arith.constant 0 : index
    %4 = vector.load %arg34[%c0_2, %c0_3] : memref<8x3xf32, #tpu.memory_space<vmem>>, vector<8x3xf32>
    %5 = arith.truncf %3 : vector<8x32xf32> to vector<8x32xbf16>
    %c0_4 = arith.constant 0 : index
    %c0_5 = arith.constant 0 : index
    %6 = vector.load %arg5[%c0_4, %c0_5] : memref<56x8xbf16, #tpu.memory_space<vmem>>, vector<56x8xbf16>
    %c0_6 = arith.constant 0 : index
    %c0_7 = arith.constant 0 : index
    %7 = vector.load %arg6[%c0_6, %c0_7] : memref<56x8xbf16, #tpu.memory_space<vmem>>, vector<56x8xbf16>
    %8 = arith.extf %6 : vector<56x8xbf16> to vector<56x8xf32>
    %9 = arith.extf %7 : vector<56x8xbf16> to vector<56x8xf32>
    %cst = arith.constant dense<0.000000e+00> : vector<56x3xf32>
    %10 = tpu.matmul %8, %4, %cst {dimension_numbers = #tpu.dot_dimension_numbers<[1], [0], [0], [1], [0, 0, 1, 1], [], []>} : vector<56x8xf32>, vector<8x3xf32>, vector<56x3xf32> -> vector<56x3xf32>
    %cst_8 = arith.constant dense<0.000000e+00> : vector<56x3xf32>
    %11 = tpu.matmul %9, %4, %cst_8 {dimension_numbers = #tpu.dot_dimension_numbers<[1], [0], [0], [1], [0, 0, 1, 1], [], []>} : vector<56x8xf32>, vector<8x3xf32>, vector<56x3xf32> -> vector<56x3xf32>
    %12 = arith.subf %10, %11 : vector<56x3xf32>
    %13 = arith.mulf %12, %12 : vector<56x3xf32>
    %cst_9 = arith.constant dense<0.000000e+00> : vector<56xf32>
    %14 = vector.multi_reduction <add>, %13, %cst_9 [1] : vector<56x3xf32> to vector<56xf32>
    %15 = vector.shape_cast %14 : vector<56xf32> to vector<56x1xf32>
    %c0_10 = arith.constant 0 : index
    %c0_11 = arith.constant 0 : index
    %c0_12 = arith.constant 0 : index
    %16 = vector.load %arg17[%c0_10, %c0_11, %c0_12] : memref<1x32x32xbf16, #tpu.memory_space<vmem>>, vector<1x32x32xbf16>
    %17 = vector.shape_cast %16 : vector<1x32x32xbf16> to vector<32x32xbf16>
    %cst_13 = arith.constant dense<0.000000e+00> : vector<8x32xf32>
    %18 = tpu.matmul %5, %17, %cst_13 {dimension_numbers = #tpu.dot_dimension_numbers<[1], [0], [0], [1], [0, 0, 1, 1], [], []>} : vector<8x32xbf16>, vector<32x32xbf16>, vector<8x32xf32> -> vector<8x32xf32>
    %c0_14 = arith.constant 0 : index
    %c0_15 = arith.constant 0 : index
    %c0_16 = arith.constant 0 : index
    %19 = vector.load %arg18[%c0_14, %c0_15, %c0_16] : memref<1x32x32xbf16, #tpu.memory_space<vmem>>, vector<1x32x32xbf16>
    %20 = vector.shape_cast %19 : vector<1x32x32xbf16> to vector<32x32xbf16>
    %cst_17 = arith.constant dense<0.000000e+00> : vector<8x32xf32>
    %21 = tpu.matmul %5, %20, %cst_17 {dimension_numbers = #tpu.dot_dimension_numbers<[1], [0], [0], [1], [0, 0, 1, 1], [], []>} : vector<8x32xbf16>, vector<32x32xbf16>, vector<8x32xf32> -> vector<8x32xf32>
    %22 = arith.truncf %18 : vector<8x32xf32> to vector<8x32xbf16>
    %cst_18 = arith.constant dense<0.000000e+00> : vector<56x32xf32>
    %23 = tpu.matmul %6, %22, %cst_18 {dimension_numbers = #tpu.dot_dimension_numbers<[1], [0], [0], [1], [0, 0, 1, 1], [], []>} : vector<56x8xbf16>, vector<8x32xbf16>, vector<56x32xf32> -> vector<56x32xf32>
    %24 = arith.truncf %21 : vector<8x32xf32> to vector<8x32xbf16>
    %cst_19 = arith.constant dense<0.000000e+00> : vector<56x32xf32>
    %25 = tpu.matmul %7, %24, %cst_19 {dimension_numbers = #tpu.dot_dimension_numbers<[1], [0], [0], [1], [0, 0, 1, 1], [], []>} : vector<56x8xbf16>, vector<8x32xbf16>, vector<56x32xf32> -> vector<56x32xf32>
    %26 = arith.addf %23, %25 : vector<56x32xf32>
    %c0_20 = arith.constant 0 : index
    %c0_21 = arith.constant 0 : index
    %c0_22 = arith.constant 0 : index
    %27 = vector.load %arg19[%c0_20, %c0_21, %c0_22] : memref<1x1x32xf32, #tpu.memory_space<vmem>>, vector<1x1x32xf32>
    %28 = vector.shape_cast %27 : vector<1x1x32xf32> to vector<1x32xf32>
    %29 = vector.broadcast %15 : vector<56x1xf32> to vector<56x32xf32>
    %30 = vector.broadcast %28 : vector<1x32xf32> to vector<56x32xf32>
    %31 = arith.mulf %29, %30 : vector<56x32xf32>
    %32 = arith.addf %26, %31 : vector<56x32xf32>
    %c0_23 = arith.constant 0 : index
    %c0_24 = arith.constant 0 : index
    %c0_25 = arith.constant 0 : index
    %33 = vector.load %arg20[%c0_23, %c0_24, %c0_25] : memref<1x1x32xf32, #tpu.memory_space<vmem>>, vector<1x1x32xf32>
    %34 = vector.shape_cast %33 : vector<1x1x32xf32> to vector<1x32xf32>
    %35 = vector.broadcast %34 : vector<1x32xf32> to vector<56x32xf32>
    %36 = arith.addf %32, %35 : vector<56x32xf32>
    %cst_26 = arith.constant 0.000000e+00 : f32
    %37 = vector.broadcast %cst_26 : f32 to vector<56x32xf32>
    %38 = arith.subf %37, %36 : vector<56x32xf32>
    %39 = math.exp %38 : vector<56x32xf32>
    %cst_27 = arith.constant 1.000000e+00 : f32
    %40 = vector.broadcast %cst_27 : f32 to vector<56x32xf32>
    %41 = arith.addf %40, %39 : vector<56x32xf32>
    %42 = tpu.reciprocal %41 {approx = true} : vector<56x32xf32> -> vector<56x32xf32>
    %43 = arith.mulf %36, %42 : vector<56x32xf32>
    %44 = arith.truncf %43 : vector<56x32xf32> to vector<56x32xbf16>
    %c0_28 = arith.constant 0 : index
    %c0_29 = arith.constant 0 : index
    %c0_30 = arith.constant 0 : index
    %45 = vector.load %arg21[%c0_28, %c0_29, %c0_30] : memref<1x32x32xbf16, #tpu.memory_space<vmem>>, vector<1x32x32xbf16>
    %46 = vector.shape_cast %45 : vector<1x32x32xbf16> to vector<32x32xbf16>
    %cst_31 = arith.constant dense<0.000000e+00> : vector<56x32xf32>
    %47 = tpu.matmul %44, %46, %cst_31 {dimension_numbers = #tpu.dot_dimension_numbers<[1], [0], [0], [1], [0, 0, 1, 1], [], []>} : vector<56x32xbf16>, vector<32x32xbf16>, vector<56x32xf32> -> vector<56x32xf32>
    %c0_32 = arith.constant 0 : index
    %c0_33 = arith.constant 0 : index
    %c0_34 = arith.constant 0 : index
    %48 = vector.load %arg22[%c0_32, %c0_33, %c0_34] : memref<1x1x32xf32, #tpu.memory_space<vmem>>, vector<1x1x32xf32>
    %49 = vector.shape_cast %48 : vector<1x1x32xf32> to vector<1x32xf32>
    %50 = vector.broadcast %49 : vector<1x32xf32> to vector<56x32xf32>
    %51 = arith.addf %47, %50 : vector<56x32xf32>
    %cst_35 = arith.constant 0.000000e+00 : f32
    %52 = vector.broadcast %cst_35 : f32 to vector<56x32xf32>
    %53 = arith.subf %52, %51 : vector<56x32xf32>
    %54 = math.exp %53 : vector<56x32xf32>
    %cst_36 = arith.constant 1.000000e+00 : f32
    %55 = vector.broadcast %cst_36 : f32 to vector<56x32xf32>
    %56 = arith.addf %55, %54 : vector<56x32xf32>
    %57 = tpu.reciprocal %56 {approx = true} : vector<56x32xf32> -> vector<56x32xf32>
    %58 = arith.mulf %51, %57 : vector<56x32xf32>
    %59 = arith.truncf %58 : vector<56x32xf32> to vector<56x32xbf16>
    %c0_37 = arith.constant 0 : index
    %c0_38 = arith.constant 0 : index
    %c0_39 = arith.constant 0 : index
    %60 = vector.load %arg23[%c0_37, %c0_38, %c0_39] : memref<1x32x32xbf16, #tpu.memory_space<vmem>>, vector<1x32x32xbf16>
    %61 = vector.shape_cast %60 : vector<1x32x32xbf16> to vector<32x32xbf16>
    %cst_40 = arith.constant dense<0.000000e+00> : vector<56x32xf32>
    %62 = tpu.matmul %59, %61, %cst_40 {dimension_numbers = #tpu.dot_dimension_numbers<[1], [0], [0], [1], [0, 0, 1, 1], [], []>} : vector<56x32xbf16>, vector<32x32xbf16>, vector<56x32xf32> -> vector<56x32xf32>
    %c0_41 = arith.constant 0 : index
    %c0_42 = arith.constant 0 : index
    %c0_43 = arith.constant 0 : index
    %63 = vector.load %arg24[%c0_41, %c0_42, %c0_43] : memref<1x1x32xf32, #tpu.memory_space<vmem>>, vector<1x1x32xf32>
    %64 = vector.shape_cast %63 : vector<1x1x32xf32> to vector<1x32xf32>
    %65 = vector.broadcast %64 : vector<1x32xf32> to vector<56x32xf32>
    %66 = arith.addf %62, %65 : vector<56x32xf32>
    %cst_44 = arith.constant 0.000000e+00 : f32
    %67 = vector.broadcast %cst_44 : f32 to vector<56x32xf32>
    %68 = arith.subf %67, %66 : vector<56x32xf32>
    %69 = math.exp %68 : vector<56x32xf32>
    %cst_45 = arith.constant 1.000000e+00 : f32
    %70 = vector.broadcast %cst_45 : f32 to vector<56x32xf32>
    %71 = arith.addf %70, %69 : vector<56x32xf32>
    %72 = tpu.reciprocal %71 {approx = true} : vector<56x32xf32> -> vector<56x32xf32>
    %73 = arith.mulf %66, %72 : vector<56x32xf32>
    %c0_46 = arith.constant 0 : index
    %c0_47 = arith.constant 0 : index
    %c0_48 = arith.constant 0 : index
    %74 = vector.load %arg25[%c0_46, %c0_47, %c0_48] : memref<1x1x32xf32, #tpu.memory_space<vmem>>, vector<1x1x32xf32>
    %75 = vector.shape_cast %74 : vector<1x1x32xf32> to vector<1x32xf32>
    %76 = vector.broadcast %75 : vector<1x32xf32> to vector<56x32xf32>
    %77 = arith.mulf %73, %76 : vector<56x32xf32>
    %cst_49 = arith.constant dense<0.000000e+00> : vector<56xf32>
    %78 = vector.multi_reduction <add>, %77, %cst_49 [1] : vector<56x32xf32> to vector<56xf32>
    %79 = vector.shape_cast %78 : vector<56xf32> to vector<56x1xf32>
    %80 = vector.broadcast %79 : vector<56x1xf32> to vector<56x3xf32>
    %81 = arith.mulf %12, %80 : vector<56x3xf32>
    %c0_50 = arith.constant 0 : index
    %c0_51 = arith.constant 0 : index
    %82 = vector.load %arg8[%c0_50, %c0_51] : memref<8x56xf32, #tpu.memory_space<vmem>>, vector<8x56xf32>
    %cst_52 = arith.constant dense<0.000000e+00> : vector<8x3xf32>
    %83 = tpu.matmul %82, %81, %cst_52 {dimension_numbers = #tpu.dot_dimension_numbers<[1], [0], [0], [1], [0, 0, 1, 1], [], []>} : vector<8x56xf32>, vector<56x3xf32>, vector<8x3xf32> -> vector<8x3xf32>
    %84 = arith.addf %4, %83 : vector<8x3xf32>
    %c0_53 = arith.constant 0 : index
    %c0_54 = arith.constant 0 : index
    %85 = vector.load %arg34[%c0_53, %c0_54] : memref<8x3xf32, #tpu.memory_space<vmem>>, vector<8x3xf32>
    tpu.vector_store %arg34[%c0_53, %c0_54], %84 {strides = array<i32>} : memref<8x3xf32, #tpu.memory_space<vmem>>, vector<8x3xf32>,
    %c0_55 = arith.constant 0 : index
    %c0_56 = arith.constant 0 : index
    %86 = vector.load %arg7[%c0_55, %c0_56] : memref<8x56xbf16, #tpu.memory_space<vmem>>, vector<8x56xbf16>
    %cst_57 = arith.constant dense<0.000000e+00> : vector<8x32xf32>
    %87 = tpu.matmul %86, %59, %cst_57 {dimension_numbers = #tpu.dot_dimension_numbers<[1], [0], [0], [1], [0, 0, 1, 1], [], []>} : vector<8x56xbf16>, vector<56x32xbf16>, vector<8x32xf32> -> vector<8x32xf32>
    %c0_58 = arith.constant 0 : index
    %c0_59 = arith.constant 0 : index
    %c0_60 = arith.constant 0 : index
    %88 = vector.load %arg26[%c0_58, %c0_59, %c0_60] : memref<1x32x32xbf16, #tpu.memory_space<vmem>>, vector<1x32x32xbf16>
    %89 = vector.shape_cast %88 : vector<1x32x32xbf16> to vector<32x32xbf16>
    %cst_61 = arith.constant dense<0.000000e+00> : vector<8x32xf32>
    %90 = tpu.matmul %5, %89, %cst_61 {dimension_numbers = #tpu.dot_dimension_numbers<[1], [0], [0], [1], [0, 0, 1, 1], [], []>} : vector<8x32xbf16>, vector<32x32xbf16>, vector<8x32xf32> -> vector<8x32xf32>
    %91 = arith.truncf %87 : vector<8x32xf32> to vector<8x32xbf16>
    %c0_62 = arith.constant 0 : index
    %c0_63 = arith.constant 0 : index
    %c0_64 = arith.constant 0 : index
    %92 = vector.load %arg27[%c0_62, %c0_63, %c0_64] : memref<1x32x32xbf16, #tpu.memory_space<vmem>>, vector<1x32x32xbf16>
    %93 = vector.shape_cast %92 : vector<1x32x32xbf16> to vector<32x32xbf16>
    %cst_65 = arith.constant dense<0.000000e+00> : vector<8x32xf32>
    %94 = tpu.matmul %91, %93, %cst_65 {dimension_numbers = #tpu.dot_dimension_numbers<[1], [0], [0], [1], [0, 0, 1, 1], [], []>} : vector<8x32xbf16>, vector<32x32xbf16>, vector<8x32xf32> -> vector<8x32xf32>
    %95 = arith.addf %90, %94 : vector<8x32xf32>
    %c0_66 = arith.constant 0 : index
    %c0_67 = arith.constant 0 : index
    %c0_68 = arith.constant 0 : index
    %96 = vector.load %arg28[%c0_66, %c0_67, %c0_68] : memref<1x1x32xf32, #tpu.memory_space<vmem>>, vector<1x1x32xf32>
    %97 = vector.shape_cast %96 : vector<1x1x32xf32> to vector<1x32xf32>
    %98 = vector.broadcast %97 : vector<1x32xf32> to vector<8x32xf32>
    %99 = arith.addf %95, %98 : vector<8x32xf32>
    %cst_69 = arith.constant 0.000000e+00 : f32
    %100 = vector.broadcast %cst_69 : f32 to vector<8x32xf32>
    %101 = arith.subf %100, %99 : vector<8x32xf32>
    %102 = math.exp %101 : vector<8x32xf32>
    %cst_70 = arith.constant 1.000000e+00 : f32
    %103 = vector.broadcast %cst_70 : f32 to vector<8x32xf32>
    %104 = arith.addf %103, %102 : vector<8x32xf32>
    %105 = tpu.reciprocal %104 {approx = true} : vector<8x32xf32> -> vector<8x32xf32>
    %106 = arith.mulf %99, %105 : vector<8x32xf32>
    %107 = arith.truncf %106 : vector<8x32xf32> to vector<8x32xbf16>
    %c0_71 = arith.constant 0 : index
    %c0_72 = arith.constant 0 : index
    %c0_73 = arith.constant 0 : index
    %108 = vector.load %arg29[%c0_71, %c0_72, %c0_73] : memref<1x32x32xbf16, #tpu.memory_space<vmem>>, vector<1x32x32xbf16>
    %109 = vector.shape_cast %108 : vector<1x32x32xbf16> to vector<32x32xbf16>
    %cst_74 = arith.constant dense<0.000000e+00> : vector<8x32xf32>
    %110 = tpu.matmul %107, %109, %cst_74 {dimension_numbers = #tpu.dot_dimension_numbers<[1], [0], [0], [1], [0, 0, 1, 1], [], []>} : vector<8x32xbf16>, vector<32x32xbf16>, vector<8x32xf32> -> vector<8x32xf32>
    %c0_75 = arith.constant 0 : index
    %c0_76 = arith.constant 0 : index
    %c0_77 = arith.constant 0 : index
    %111 = vector.load %arg30[%c0_75, %c0_76, %c0_77] : memref<1x1x32xf32, #tpu.memory_space<vmem>>, vector<1x1x32xf32>
    %112 = vector.shape_cast %111 : vector<1x1x32xf32> to vector<1x32xf32>
    %113 = vector.broadcast %112 : vector<1x32xf32> to vector<8x32xf32>
    %114 = arith.addf %110, %113 : vector<8x32xf32>
    %115 = arith.addf %3, %114 : vector<8x32xf32>
    %c0_78 = arith.constant 0 : index
    %c0_79 = arith.constant 0 : index
    %116 = vector.load %arg33[%c0_78, %c0_79] : memref<8x32xf32, #tpu.memory_space<vmem>>, vector<8x32xf32>
    tpu.vector_store %arg33[%c0_78, %c0_79], %115 {strides = array<i32>} : memref<8x32xf32, #tpu.memory_space<vmem>>, vector<8x32xf32>,
    %c1_i32 = arith.constant 1 : i32
    %117 = arith.cmpi eq, %arg0, %c1_i32 : i32
    %118 = arith.extui %117 : i1 to i32
    %c0_i32_80 = arith.constant 0 : i32
    %119 = arith.cmpi ne, %118, %c0_i32_80 : i32
    scf.if %119 {
      %c0_81 = arith.constant 0 : index
      %120 = memref.load %arg1[%c0_81] : memref<3xf32, #tpu.memory_space<smem>>
      %c1 = arith.constant 1 : index
      %121 = memref.load %arg1[%c1] : memref<3xf32, #tpu.memory_space<smem>>
      %c2 = arith.constant 2 : index
      %122 = memref.load %arg1[%c2] : memref<3xf32, #tpu.memory_space<smem>>
      %c0_82 = arith.constant 0 : index
      %c0_83 = arith.constant 0 : index
      %123 = vector.load %arg33[%c0_82, %c0_83] : memref<8x32xf32, #tpu.memory_space<vmem>>, vector<8x32xf32>
      %124 = arith.truncf %123 : vector<8x32xf32> to vector<8x32xbf16>
      %c0_84 = arith.constant 0 : index
      %c0_85 = arith.constant 0 : index
      %125 = vector.load %arg15[%c0_84, %c0_85] : memref<32x20xbf16, #tpu.memory_space<vmem>>, vector<32x20xbf16>
      %cst_86 = arith.constant dense<0.000000e+00> : vector<8x20xf32>
      %126 = tpu.matmul %124, %125, %cst_86 {dimension_numbers = #tpu.dot_dimension_numbers<[1], [0], [0], [1], [0, 0, 1, 1], [], []>} : vector<8x32xbf16>, vector<32x20xbf16>, vector<8x20xf32> -> vector<8x20xf32>
      %c0_87 = arith.constant 0 : index
      %c0_88 = arith.constant 0 : index
      %127 = vector.load %arg16[%c0_87, %c0_88] : memref<1x20xf32, #tpu.memory_space<vmem>>, vector<1x20xf32>
      %128 = vector.broadcast %127 : vector<1x20xf32> to vector<8x20xf32>
      %129 = arith.addf %126, %128 : vector<8x20xf32>
      %cst_89 = arith.constant dense<0xFF800000> : vector<8xf32>
      %130 = vector.multi_reduction <maximumf>, %129, %cst_89 [1] : vector<8x20xf32> to vector<8xf32>
      %131 = vector.shape_cast %130 : vector<8xf32> to vector<8x1xf32>
      %132 = vector.broadcast %131 : vector<8x1xf32> to vector<8x20xf32>
      %133 = arith.subf %129, %132 : vector<8x20xf32>
      %134 = math.exp %133 : vector<8x20xf32>
      %cst_90 = arith.constant dense<0.000000e+00> : vector<8xf32>
      %135 = vector.multi_reduction <add>, %134, %cst_90 [1] : vector<8x20xf32> to vector<8xf32>
      %136 = vector.shape_cast %135 : vector<8xf32> to vector<8x1xf32>
      %137 = tpu.reciprocal %136 {approx = true} : vector<8x1xf32> -> vector<8x1xf32>
      %138 = vector.broadcast %137 : vector<8x1xf32> to vector<8x20xf32>
      %139 = arith.mulf %134, %138 : vector<8x20xf32>
      %c0_91 = arith.constant 0 : index
      %c0_92 = arith.constant 0 : index
      %140 = vector.load %arg2[%c0_91, %c0_92] : memref<8x20xf32, #tpu.memory_space<vmem>>, vector<8x20xf32>
      %c0_93 = arith.constant 0 : index
      %c0_94 = arith.constant 0 : index
      %141 = vector.load %arg10[%c0_93, %c0_94] : memref<8x20xf32, #tpu.memory_space<vmem>>, vector<8x20xf32>
      %142 = vector.broadcast %120 : f32 to vector<8x20xf32>
      %143 = arith.mulf %142, %140 : vector<8x20xf32>
      %cst_95 = arith.constant 1.000000e+00 : f32
      %144 = arith.subf %cst_95, %120 : f32
      %cst_96 = arith.constant 2.000000e+01 : f32
      %145 = arith.divf %144, %cst_96 : f32
      %146 = vector.broadcast %145 : f32 to vector<8x20xf32>
      %147 = arith.addf %143, %146 : vector<8x20xf32>
      %148 = vector.broadcast %121 : f32 to vector<8x20xf32>
      %149 = arith.mulf %148, %141 : vector<8x20xf32>
      %cst_97 = arith.constant 1.000000e+00 : f32
      %150 = arith.subf %cst_97, %121 : f32
      %cst_98 = arith.constant 2.000000e+01 : f32
      %151 = arith.divf %150, %cst_98 : f32
      %152 = vector.broadcast %151 : f32 to vector<8x20xf32>
      %153 = arith.addf %149, %152 : vector<8x20xf32>
      %154 = arith.mulf %147, %153 : vector<8x20xf32>
      %cst_99 = arith.constant dense<0.000000e+00> : vector<8xf32>
      %155 = vector.multi_reduction <add>, %154, %cst_99 [1] : vector<8x20xf32> to vector<8xf32>
      %156 = vector.shape_cast %155 : vector<8xf32> to vector<8x1xf32>
      %cst_100 = arith.constant 9.99999993E-9 : f32
      %157 = vector.broadcast %cst_100 : f32 to vector<8x1xf32>
      %158 = arith.addf %156, %157 : vector<8x1xf32>
      %159 = tpu.reciprocal %158 {approx = true} : vector<8x1xf32> -> vector<8x1xf32>
      %160 = vector.broadcast %159 : vector<8x1xf32> to vector<8x20xf32>
      %161 = arith.mulf %154, %160 : vector<8x20xf32>
      %162 = vector.broadcast %120 : f32 to vector<8x20xf32>
      %163 = arith.mulf %162, %140 : vector<8x20xf32>
      %cst_101 = arith.constant 1.000000e+00 : f32
      %164 = arith.subf %cst_101, %120 : f32
      %cst_102 = arith.constant 2.000000e+01 : f32
      %165 = arith.divf %164, %cst_102 : f32
      %166 = vector.broadcast %165 : f32 to vector<8x20xf32>
      %167 = arith.addf %163, %166 : vector<8x20xf32>
      %168 = vector.broadcast %121 : f32 to vector<8x20xf32>
      %169 = arith.mulf %168, %139 : vector<8x20xf32>
      %cst_103 = arith.constant 1.000000e+00 : f32
      %170 = arith.subf %cst_103, %121 : f32
      %cst_104 = arith.constant 2.000000e+01 : f32
      %171 = arith.divf %170, %cst_104 : f32
      %172 = vector.broadcast %171 : f32 to vector<8x20xf32>
      %173 = arith.addf %169, %172 : vector<8x20xf32>
      %174 = arith.mulf %167, %173 : vector<8x20xf32>
      %cst_105 = arith.constant dense<0.000000e+00> : vector<8xf32>
      %175 = vector.multi_reduction <add>, %174, %cst_105 [1] : vector<8x20xf32> to vector<8xf32>
      %176 = vector.shape_cast %175 : vector<8xf32> to vector<8x1xf32>
      %cst_106 = arith.constant 9.99999993E-9 : f32
      %177 = vector.broadcast %cst_106 : f32 to vector<8x1xf32>
      %178 = arith.addf %176, %177 : vector<8x1xf32>
      %179 = tpu.reciprocal %178 {approx = true} : vector<8x1xf32> -> vector<8x1xf32>
      %180 = vector.broadcast %179 : vector<8x1xf32> to vector<8x20xf32>
      %181 = arith.mulf %174, %180 : vector<8x20xf32>
      %cst_107 = arith.constant 9.99999993E-9 : f32
      %182 = vector.broadcast %cst_107 : f32 to vector<8x20xf32>
      %183 = arith.addf %181, %182 : vector<8x20xf32>
      %184 = math.log %183 : vector<8x20xf32>
      %cst_108 = arith.constant 0.000000e+00 : f32
      %185 = vector.broadcast %cst_108 : f32 to vector<8x20xf32>
      %186 = arith.cmpf ogt, %161, %185 : vector<8x20xf32>
      %cst_109 = arith.constant 1.000000e-30 : f32
      %187 = vector.broadcast %cst_109 : f32 to vector<8x20xf32>
      %188 = arith.maximumf %161, %187 : vector<8x20xf32>
      %189 = math.log %188 : vector<8x20xf32>
      %190 = arith.subf %189, %184 : vector<8x20xf32>
      %191 = arith.mulf %161, %190 : vector<8x20xf32>
      %cst_110 = arith.constant 0.000000e+00 : f32
      %192 = vector.broadcast %cst_110 : f32 to vector<8x20xf32>
      %193 = arith.select %186, %191, %192 : vector<8x20xi1>, vector<8x20xf32>
      %194 = vector.shape_cast %193 : vector<8x20xf32> to vector<1x8x20xf32>
      %cst_111 = arith.constant dense<0.000000e+00> : vector<1xf32>
      %195 = vector.multi_reduction <add>, %194, %cst_111 [1, 2] : vector<1x8x20xf32> to vector<1xf32>
      %196 = vector.shape_cast %195 : vector<1xf32> to vector<1x1x1xf32>
      %197 = vector.extract %196[0, 0, 0] : f32 from vector<1x1x1xf32>
      %198 = vector.broadcast %197 : f32 to vector<1x1xf32>
      %199 = vector.broadcast %122 : f32 to vector<1x1xf32>
      %200 = arith.mulf %198, %199 : vector<1x1xf32>
      %c0_112 = arith.constant 0 : index
      %c0_113 = arith.constant 0 : index
      %201 = vector.load %arg32[%c0_112, %c0_113] : memref<1x1xf32, #tpu.memory_space<vmem>>, vector<1x1xf32>
      tpu.vector_store %arg32[%c0_112, %c0_113], %200 {strides = array<i32>} : memref<1x1xf32, #tpu.memory_space<vmem>>, vector<1x1xf32>,
      %c0_114 = arith.constant 0 : index
      %c0_115 = arith.constant 0 : index
      %202 = vector.load %arg34[%c0_114, %c0_115] : memref<8x3xf32, #tpu.memory_space<vmem>>, vector<8x3xf32>
      %c0_116 = arith.constant 0 : index
      %c0_117 = arith.constant 0 : index
      %203 = vector.load %arg3[%c0_116, %c0_117] : memref<8x3xf32, #tpu.memory_space<vmem>>, vector<8x3xf32>
      %204 = arith.subf %202, %203 : vector<8x3xf32>
      %c0_118 = arith.constant 0 : index
      %c0_119 = arith.constant 0 : index
      %205 = vector.load %arg9[%c0_118, %c0_119] : memref<8x3xf32, #tpu.memory_space<vmem>>, vector<8x3xf32>
      %206 = arith.subf %204, %205 : vector<8x3xf32>
      %207 = arith.mulf %206, %206 : vector<8x3xf32>
      %208 = vector.shape_cast %207 : vector<8x3xf32> to vector<1x8x3xf32>
      %cst_120 = arith.constant dense<0.000000e+00> : vector<1xf32>
      %209 = vector.multi_reduction <add>, %208, %cst_120 [1, 2] : vector<1x8x3xf32> to vector<1xf32>
      %210 = vector.shape_cast %209 : vector<1xf32> to vector<1x1x1xf32>
      %211 = vector.extract %210[0, 0, 0] : f32 from vector<1x1x1xf32>
      %212 = vector.broadcast %211 : f32 to vector<1x1xf32>
      %213 = vector.broadcast %122 : f32 to vector<1x1xf32>
      %214 = arith.mulf %212, %213 : vector<1x1xf32>
      %c0_121 = arith.constant 0 : index
      %c0_122 = arith.constant 0 : index
      %215 = vector.load %arg31[%c0_121, %c0_122] : memref<1x1xf32, #tpu.memory_space<vmem>>, vector<1x1xf32>
      tpu.vector_store %arg31[%c0_121, %c0_122], %214 {strides = array<i32>} : memref<1x1xf32, #tpu.memory_space<vmem>>, vector<1x1xf32>,
    } else {
    }
    return
  }
  func.func @transform_0(%arg0: i32) -> i32 {
    %c0_i32 = arith.constant 0 : i32
    %c0_i32_0 = arith.constant 0 : i32
    return %c0_i32 : i32
  }
  func.func @transform_1(%arg0: i32) -> (i32, i32) {
    %c0_i32 = arith.constant 0 : i32
    %c0_i32_0 = arith.constant 0 : i32
    %c0_i32_1 = arith.constant 0 : i32
    return %c0_i32, %c0_i32_0 : i32, i32
  }
  func.func @transform_2(%arg0: i32) -> (i32, i32) {
    %c0_i32 = arith.constant 0 : i32
    %c0_i32_0 = arith.constant 0 : i32
    %c0_i32_1 = arith.constant 0 : i32
    return %c0_i32, %c0_i32_0 : i32, i32
  }
  func.func @transform_3(%arg0: i32) -> (i32, i32) {
    %c0_i32 = arith.constant 0 : i32
    %c0_i32_0 = arith.constant 0 : i32
    %c0_i32_1 = arith.constant 0 : i32
    return %c0_i32, %c0_i32_0 : i32, i32
  }
  func.func @transform_4(%arg0: i32) -> (i32, i32) {
    %c0_i32 = arith.constant 0 : i32
    %c0_i32_0 = arith.constant 0 : i32
    %c0_i32_1 = arith.constant 0 : i32
    return %c0_i32, %c0_i32_0 : i32, i32
  }
  func.func @transform_5(%arg0: i32) -> (i32, i32) {
    %c0_i32 = arith.constant 0 : i32
    %c0_i32_0 = arith.constant 0 : i32
    %c0_i32_1 = arith.constant 0 : i32
    return %c0_i32, %c0_i32_0 : i32, i32
  }
  func.func @transform_6(%arg0: i32) -> (i32, i32) {
    %c0_i32 = arith.constant 0 : i32
    %c0_i32_0 = arith.constant 0 : i32
    %c0_i32_1 = arith.constant 0 : i32
    return %c0_i32, %c0_i32_0 : i32, i32
  }
  func.func @transform_7(%arg0: i32) -> (i32, i32) {
    %c0_i32 = arith.constant 0 : i32
    %c0_i32_0 = arith.constant 0 : i32
    %c0_i32_1 = arith.constant 0 : i32
    return %c0_i32, %c0_i32_0 : i32, i32
  }
  func.func @transform_8(%arg0: i32) -> (i32, i32) {
    %c0_i32 = arith.constant 0 : i32
    %c0_i32_0 = arith.constant 0 : i32
    %c0_i32_1 = arith.constant 0 : i32
    return %c0_i32, %c0_i32_0 : i32, i32
  }
  func.func @transform_9(%arg0: i32) -> (i32, i32) {
    %c0_i32 = arith.constant 0 : i32
    %c0_i32_0 = arith.constant 0 : i32
    %c0_i32_1 = arith.constant 0 : i32
    return %c0_i32, %c0_i32_0 : i32, i32
  }
  func.func @transform_10(%arg0: i32) -> (i32, i32) {
    %c0_i32 = arith.constant 0 : i32
    %c0_i32_0 = arith.constant 0 : i32
    %c0_i32_1 = arith.constant 0 : i32
    return %c0_i32, %c0_i32_0 : i32, i32
  }
  func.func @transform_11(%arg0: i32) -> (i32, i32) {
    %c0_i32 = arith.constant 0 : i32
    %c0_i32_0 = arith.constant 0 : i32
    %c0_i32_1 = arith.constant 0 : i32
    return %c0_i32, %c0_i32_0 : i32, i32
  }
  func.func @transform_12(%arg0: i32) -> (i32, i32) {
    %c0_i32 = arith.constant 0 : i32
    %c0_i32_0 = arith.constant 0 : i32
    %c0_i32_1 = arith.constant 0 : i32
    return %c0_i32, %c0_i32_0 : i32, i32
  }
  func.func @transform_13(%arg0: i32) -> (i32, i32) {
    %c0_i32 = arith.constant 0 : i32
    %c0_i32_0 = arith.constant 0 : i32
    %c0_i32_1 = arith.constant 0 : i32
    return %c0_i32, %c0_i32_0 : i32, i32
  }
  func.func @transform_14(%arg0: i32) -> (i32, i32) {
    %c0_i32 = arith.constant 0 : i32
    %c0_i32_0 = arith.constant 0 : i32
    %c0_i32_1 = arith.constant 0 : i32
    return %c0_i32, %c0_i32_0 : i32, i32
  }
  func.func @transform_15(%arg0: i32) -> (i32, i32) {
    %c0_i32 = arith.constant 0 : i32
    %c0_i32_0 = arith.constant 0 : i32
    %c0_i32_1 = arith.constant 0 : i32
    return %c0_i32, %c0_i32_0 : i32, i32
  }
  func.func @transform_16(%arg0: i32) -> (i32, i32, i32) {
    %c0_i32 = arith.constant 0 : i32
    %c0_i32_0 = arith.constant 0 : i32
    %c0_i32_1 = arith.constant 0 : i32
    return %arg0, %c0_i32, %c0_i32_0 : i32, i32, i32
  }
  func.func @transform_17(%arg0: i32) -> (i32, i32, i32) {
    %c0_i32 = arith.constant 0 : i32
    %c0_i32_0 = arith.constant 0 : i32
    %c0_i32_1 = arith.constant 0 : i32
    return %arg0, %c0_i32, %c0_i32_0 : i32, i32, i32
  }
  func.func @transform_18(%arg0: i32) -> (i32, i32, i32) {
    %c0_i32 = arith.constant 0 : i32
    %c0_i32_0 = arith.constant 0 : i32
    %c0_i32_1 = arith.constant 0 : i32
    return %arg0, %c0_i32, %c0_i32_0 : i32, i32, i32
  }
  func.func @transform_19(%arg0: i32) -> (i32, i32, i32) {
    %c0_i32 = arith.constant 0 : i32
    %c0_i32_0 = arith.constant 0 : i32
    %c0_i32_1 = arith.constant 0 : i32
    return %arg0, %c0_i32, %c0_i32_0 : i32, i32, i32
  }
  func.func @transform_20(%arg0: i32) -> (i32, i32, i32) {
    %c0_i32 = arith.constant 0 : i32
    %c0_i32_0 = arith.constant 0 : i32
    %c0_i32_1 = arith.constant 0 : i32
    return %arg0, %c0_i32, %c0_i32_0 : i32, i32, i32
  }
  func.func @transform_21(%arg0: i32) -> (i32, i32, i32) {
    %c0_i32 = arith.constant 0 : i32
    %c0_i32_0 = arith.constant 0 : i32
    %c0_i32_1 = arith.constant 0 : i32
    return %arg0, %c0_i32, %c0_i32_0 : i32, i32, i32
  }
  func.func @transform_22(%arg0: i32) -> (i32, i32, i32) {
    %c0_i32 = arith.constant 0 : i32
    %c0_i32_0 = arith.constant 0 : i32
    %c0_i32_1 = arith.constant 0 : i32
    return %arg0, %c0_i32, %c0_i32_0 : i32, i32, i32
  }
  func.func @transform_23(%arg0: i32) -> (i32, i32, i32) {
    %c0_i32 = arith.constant 0 : i32
    %c0_i32_0 = arith.constant 0 : i32
    %c0_i32_1 = arith.constant 0 : i32
    return %arg0, %c0_i32, %c0_i32_0 : i32, i32, i32
  }
  func.func @transform_24(%arg0: i32) -> (i32, i32, i32) {
    %c0_i32 = arith.constant 0 : i32
    %c0_i32_0 = arith.constant 0 : i32
    %c0_i32_1 = arith.constant 0 : i32
    return %arg0, %c0_i32, %c0_i32_0 : i32, i32, i32
  }
  func.func @transform_25(%arg0: i32) -> (i32, i32, i32) {
    %c0_i32 = arith.constant 0 : i32
    %c0_i32_0 = arith.constant 0 : i32
    %c0_i32_1 = arith.constant 0 : i32
    return %arg0, %c0_i32, %c0_i32_0 : i32, i32, i32
  }
  func.func @transform_26(%arg0: i32) -> (i32, i32, i32) {
    %c0_i32 = arith.constant 0 : i32
    %c0_i32_0 = arith.constant 0 : i32
    %c0_i32_1 = arith.constant 0 : i32
    return %arg0, %c0_i32, %c0_i32_0 : i32, i32, i32
  }
  func.func @transform_27(%arg0: i32) -> (i32, i32, i32) {
    %c0_i32 = arith.constant 0 : i32
    %c0_i32_0 = arith.constant 0 : i32
    %c0_i32_1 = arith.constant 0 : i32
    return %arg0, %c0_i32, %c0_i32_0 : i32, i32, i32
  }
  func.func @transform_28(%arg0: i32) -> (i32, i32, i32) {
    %c0_i32 = arith.constant 0 : i32
    %c0_i32_0 = arith.constant 0 : i32
    %c0_i32_1 = arith.constant 0 : i32
    return %arg0, %c0_i32, %c0_i32_0 : i32, i32, i32
  }
  func.func @transform_29(%arg0: i32) -> (i32, i32, i32) {
    %c0_i32 = arith.constant 0 : i32
    %c0_i32_0 = arith.constant 0 : i32
    %c0_i32_1 = arith.constant 0 : i32
    return %arg0, %c0_i32, %c0_i32_0 : i32, i32, i32
  }
  func.func @transform_30(%arg0: i32) -> (i32, i32) {
    %c0_i32 = arith.constant 0 : i32
    %c0_i32_0 = arith.constant 0 : i32
    %c0_i32_1 = arith.constant 0 : i32
    return %c0_i32, %c0_i32_0 : i32, i32
  }
  func.func @transform_31(%arg0: i32) -> (i32, i32) {
    %c0_i32 = arith.constant 0 : i32
    %c0_i32_0 = arith.constant 0 : i32
    %c0_i32_1 = arith.constant 0 : i32
    return %c0_i32, %c0_i32_0 : i32, i32
  }
}

</mosaic_0001>

<llo_original>
// kernel: full_dpm_forward.3
$region0: #{full_dpm_forward.3}
  #allocation0 [shape = 'u32[]', space=smem, size = 0x4, offset = 0x4, fixed_abs, tag = 'smem constant byte address 0x4 - core index']
  #allocation1 [shape = 'u32[144,128]{1,0:T(1,128)}', space=vmem, size = 0x12000, scoped, tag = 'internal scratch']
  #allocation2 [shape = 'f32[8,32]{1,0:T(8,128)}', space=vmem, size = 0x1000, scoped, tag = 'scratch operand']
  #allocation3 [shape = 'f32[8,3]{1,0:T(8,128)}', space=vmem, size = 0x1000, scoped, tag = 'scratch operand']
  %s0 = inlined_call_operand.smem [shape: u32[32], index: -1, kind: input, shape index: {}]
  %s1 = sld [smem:[%s0]]
  %s2 = scalar_lea.smem %s0, 1
  %s3 = sld [smem:[%s2]]
  %s4 = scalar_lea.smem %s0, 2
  %s5 = sld [smem:[%s4]]
  %s6 = scalar_lea.smem %s0, 3
  %s7 = sld [smem:[%s6]]
  %s8 = scalar_lea.smem %s0, 4
  %s9 = sld [smem:[%s8]]
  %s10 = scalar_lea.smem %s0, 5
  %s11 = sld [smem:[%s10]]
  %s12 = scalar_lea.smem %s0, 6
  %s13 = sld [smem:[%s12]]
  %s14 = scalar_lea.smem %s0, 7
  %s15 = sld [smem:[%s14]]
  %s16 = scalar_lea.smem %s0, 8
  %s17 = sld [smem:[%s16]]
  %s18 = scalar_lea.smem %s0, 9
  %s19 = sld [smem:[%s18]]
  %s20 = scalar_lea.smem %s0, 10
  %s21 = sld [smem:[%s20]]
  %s22 = scalar_lea.smem %s0, 11
  %s23 = sld [smem:[%s22]]
  %s24 = scalar_lea.smem %s0, 12
  %s25 = sld [smem:[%s24]]
  %s26 = scalar_lea.smem %s0, 13
  %s27 = sld [smem:[%s26]]
  %s28 = scalar_lea.smem %s0, 14
  %s29 = sld [smem:[%s28]]
  %s30 = scalar_lea.smem %s0, 15
  %s31 = sld [smem:[%s30]]
  %s32 = scalar_lea.smem %s0, 16
  %s33 = sld [smem:[%s32]]
  %s34 = scalar_lea.smem %s0, 17
  %s35 = sld [smem:[%s34]]
  %s36 = scalar_lea.smem %s0, 18
  %s37 = sld [smem:[%s36]]
  %s38 = scalar_lea.smem %s0, 19
  %s39 = sld [smem:[%s38]]
  %s40 = scalar_lea.smem %s0, 20
  %s41 = sld [smem:[%s40]]
  %s42 = scalar_lea.smem %s0, 21
  %s43 = sld [smem:[%s42]]
  %s44 = scalar_lea.smem %s0, 22
  %s45 = sld [smem:[%s44]]
  %s46 = scalar_lea.smem %s0, 23
  %s47 = sld [smem:[%s46]]
  %s48 = scalar_lea.smem %s0, 24
  %s49 = sld [smem:[%s48]]
  %s50 = scalar_lea.smem %s0, 25
  %s51 = sld [smem:[%s50]]
  %s52 = scalar_lea.smem %s0, 26
  %s53 = sld [smem:[%s52]]
  %s54 = scalar_lea.smem %s0, 27
  %s55 = sld [smem:[%s54]]
  %s56 = scalar_lea.smem %s0, 28
  %s57 = sld [smem:[%s56]]
  %s58 = scalar_lea.smem %s0, 29
  %s59 = sld [smem:[%s58]]
  %s60 = scalar_lea.smem %s0, 30
  %s61 = sld [smem:[%s60]]
  %s62 = scalar_lea.smem %s0, 31
  %s63 = sld [smem:[%s62]]
  %64 = xla_tuple %s61, %s63
  %s65 = sld [smem:[#allocation0]]
  $region173: #{full_dpm_forward.3} parent=0
    _
  %s67 = ssub.s32 1, %s65
  %s68 = scalar_select 0, %s67, %s65
  $region1: #{full_dpm_forward.3} parent=0
    #allocation4 [shape = 'u8[512]{0}', space=smem, size = 0x200, scoped, tag = 'input window, operand 0, single buffered']
    #allocation5 [shape = 's32[2]{0}', space=sflag, size = 0x8, scoped, tag = 'scoped memory for full_dpm_forward.3']
    #allocation6 [shape = 's32[2]{0}', space=sflag, size = 0x8, scoped, tag = 'scoped memory for full_dpm_forward.3']
    #allocation7 [shape = 'u8[512]{0}', space=vmem, size = 0x400, scoped, tag = 'output window, operand 0, single buffered']
    #allocation8 [shape = 'u8[512]{0}', space=vmem, size = 0x400, scoped, tag = 'output window, operand 1, single buffered']
    #allocation9 [shape = 's32[1]{0}', space=sflag, size = 0x4, scoped, tag = 'scoped memory for full_dpm_forward.3']
    %69 = vsyncpa [#allocation6], 0
    %70 = vsyncpa [#allocation5], 0
    %71 = vsyncpa [#allocation9], 0
    loop: start=0, step=1, limit=4
    $region2: #{full_dpm_forward.3} parent=1 // loop_pre_header
      _
    $region3: #{full_dpm_forward.3} parent=1 // loop_header
      %s73 = sphi 0, %s77
      %p74 = scmp.ge.s32.totalorder %s73, 4
      %s81 = sphi 0, %s81
      %s83 = sphi 0, %s81
      %s84 = sphi 0, %s83
      %s98 = sphi 0, %s84
      %s102 = sphi 0, %s102
      %s104 = sphi 0, %s102
      %s105 = sphi 0, %s104
      %s119 = sphi 0, %s105
      %s123 = sphi 0, %s123
      %s125 = sphi 0, %s123
      %s126 = sphi 0, %s125
      %s140 = sphi 0, %s126
      %s144 = sphi 0, %s144
      %s146 = sphi 0, %s144
      %s147 = sphi 0, %s146
      %s161 = sphi 0, %s147
      %s165 = sphi 0, %s165
      %s167 = sphi 0, %s165
      %s168 = sphi 0, %s167
      %s182 = sphi 0, %s168
      %s186 = sphi 0, %s186
      %s188 = sphi 0, %s186
      %s189 = sphi 0, %s188
      %s203 = sphi 0, %s189
      %s207 = sphi 0, %s207
      %s209 = sphi 0, %s207
      %s210 = sphi 0, %s209
      %s224 = sphi 0, %s210
      %s228 = sphi 0, %s228
      %s230 = sphi 0, %s228
      %s231 = sphi 0, %s230
      %s245 = sphi 0, %s231
      %s249 = sphi 0, %s249
      %s251 = sphi 0, %s249
      %s252 = sphi 0, %s251
      %s266 = sphi 0, %s252
      %s270 = sphi 0, %s270
      %s272 = sphi 0, %s270
      %s273 = sphi 0, %s272
      %s287 = sphi 0, %s273
      %s291 = sphi 0, %s291
      %s293 = sphi 0, %s291
      %s294 = sphi 0, %s293
      %s308 = sphi 0, %s294
      %s312 = sphi 0, %s312
      %s314 = sphi 0, %s312
      %s315 = sphi 0, %s314
      %s329 = sphi 0, %s315
      %s333 = sphi 0, %s333
      %s335 = sphi 0, %s333
      %s336 = sphi 0, %s335
      %s350 = sphi 0, %s336
      %s354 = sphi 0, %s354
      %s356 = sphi 0, %s354
      %s357 = sphi 0, %s356
      %s371 = sphi 0, %s357
      %s375 = sphi 0, %s375
      %s377 = sphi 0, %s375
      %s378 = sphi 0, %s377
      %s392 = sphi 0, %s378
      %s396 = sphi 0, %s396
      %s398 = sphi 0, %s396
      %s399 = sphi 0, %s398
      %s413 = sphi 0, %s399
      %s419 = sphi 0, %s421
      %s422 = sphi 0, %s419
      %s423 = sphi 0, %s422
      %s439 = sphi 0, %s423
      %s445 = sphi 0, %s447
      %s448 = sphi 0, %s445
      %s449 = sphi 0, %s448
      %s465 = sphi 0, %s449
      %s471 = sphi 0, %s473
      %s474 = sphi 0, %s471
      %s475 = sphi 0, %s474
      %s491 = sphi 0, %s475
      %s497 = sphi 0, %s499
      %s500 = sphi 0, %s497
      %s501 = sphi 0, %s500
      %s517 = sphi 0, %s501
      %s523 = sphi 0, %s525
      %s526 = sphi 0, %s523
      %s527 = sphi 0, %s526
      %s543 = sphi 0, %s527
      %s549 = sphi 0, %s551
      %s552 = sphi 0, %s549
      %s553 = sphi 0, %s552
      %s569 = sphi 0, %s553
      %s575 = sphi 0, %s577
      %s578 = sphi 0, %s575
      %s579 = sphi 0, %s578
      %s595 = sphi 0, %s579
      %s601 = sphi 0, %s603
      %s604 = sphi 0, %s601
      %s605 = sphi 0, %s604
      %s621 = sphi 0, %s605
      %s627 = sphi 0, %s629
      %s630 = sphi 0, %s627
      %s631 = sphi 0, %s630
      %s647 = sphi 0, %s631
      %s653 = sphi 0, %s655
      %s656 = sphi 0, %s653
      %s657 = sphi 0, %s656
      %s673 = sphi 0, %s657
      %s679 = sphi 0, %s681
      %s682 = sphi 0, %s679
      %s683 = sphi 0, %s682
      %s699 = sphi 0, %s683
      %s705 = sphi 0, %s707
      %s708 = sphi 0, %s705
      %s709 = sphi 0, %s708
      %s725 = sphi 0, %s709
      %s731 = sphi 0, %s733
      %s734 = sphi 0, %s731
      %s735 = sphi 0, %s734
      %s751 = sphi 0, %s735
      %s757 = sphi 0, %s759
      %s760 = sphi 0, %s757
      %s761 = sphi 0, %s760
      %s777 = sphi 0, %s761
      %s781 = sphi 0, %s781
      %s783 = sphi 0, %s781
      %s784 = sphi 0, %s783
      %s798 = sphi 0, %s784
      %s802 = sphi 0, %s802
      %s804 = sphi 0, %s802
      %s805 = sphi 0, %s804
      %s819 = sphi 0, %s805
    $region4: #{full_dpm_forward.3} parent=1 // loop_header_branch
      %76 = sbr.rel (%p74) target = $region8
    $region5: #{full_dpm_forward.3} parent=1 // loop_body
      %s78 = ssub.s32 %s73, 1
      %s79 = ssub.s32 %s73, 2
      %s80 = sadd.s32 %s73, 1
      %s82 = sadd.s32 %s81, 1
      %p85 = scmp.eq.s32.totalorder %s73, 1
      %p86 = scmp.ne.s32.totalorder %s81, %s83
      %p87 = scmp.eq.s32.totalorder %s73, 0
      %p88 = por %p86, %p87
      %p89 = scmp.ne.s32.totalorder %s81, %s83
      %p90 = scmp.eq.s32.totalorder %s78, 1
      %p91 = por %p89, %p90
      %p92 = scmp.ne.s32.totalorder %s83, %s84
      %p93 = scmp.eq.s32.totalorder %s78, 0
      %p94 = por %p92, %p93
      %p95 = scmp.ne.s32.totalorder %s83, %s84
      %p96 = scmp.eq.s32.totalorder %s79, 1
      %p97 = por %p95, %p96
      %p99 = scmp.ne.s32.totalorder %s84, %s98
      %p100 = scmp.eq.s32.totalorder %s79, 0
      %p101 = por %p99, %p100
      %s103 = sadd.s32 %s102, 1
      %p106 = scmp.eq.s32.totalorder %s73, 1
      %p107 = scmp.ne.s32.totalorder %s102, %s104
      %p108 = scmp.eq.s32.totalorder %s73, 0
      %p109 = por %p107, %p108
      %p110 = scmp.ne.s32.totalorder %s102, %s104
      %p111 = scmp.eq.s32.totalorder %s78, 1
      %p112 = por %p110, %p111
      %p113 = scmp.ne.s32.totalorder %s104, %s105
      %p114 = scmp.eq.s32.totalorder %s78, 0
      %p115 = por %p113, %p114
      %p116 = scmp.ne.s32.totalorder %s104, %s105
      %p117 = scmp.eq.s32.totalorder %s79, 1
      %p118 = por %p116, %p117
      %p120 = scmp.ne.s32.totalorder %s105, %s119
      %p121 = scmp.eq.s32.totalorder %s79, 0
      %p122 = por %p120, %p121
      %s124 = sadd.s32 %s123, 1
      %p127 = scmp.eq.s32.totalorder %s73, 1
      %p128 = scmp.ne.s32.totalorder %s123, %s125
      %p129 = scmp.eq.s32.totalorder %s73, 0
      %p130 = por %p128, %p129
      %p131 = scmp.ne.s32.totalorder %s123, %s125
      %p132 = scmp.eq.s32.totalorder %s78, 1
      %p133 = por %p131, %p132
      %p134 = scmp.ne.s32.totalorder %s125, %s126
      %p135 = scmp.eq.s32.totalorder %s78, 0
      %p136 = por %p134, %p135
      %p137 = scmp.ne.s32.totalorder %s125, %s126
      %p138 = scmp.eq.s32.totalorder %s79, 1
      %p139 = por %p137, %p138
      %p141 = scmp.ne.s32.totalorder %s126, %s140
      %p142 = scmp.eq.s32.totalorder %s79, 0
      %p143 = por %p141, %p142
      %s145 = sadd.s32 %s144, 1
      %p148 = scmp.eq.s32.totalorder %s73, 1
      %p149 = scmp.ne.s32.totalorder %s144, %s146
      %p150 = scmp.eq.s32.totalorder %s73, 0
      %p151 = por %p149, %p150
      %p152 = scmp.ne.s32.totalorder %s144, %s146
      %p153 = scmp.eq.s32.totalorder %s78, 1
      %p154 = por %p152, %p153
      %p155 = scmp.ne.s32.totalorder %s146, %s147
      %p156 = scmp.eq.s32.totalorder %s78, 0
      %p157 = por %p155, %p156
      %p158 = scmp.ne.s32.totalorder %s146, %s147
      %p159 = scmp.eq.s32.totalorder %s79, 1
      %p160 = por %p158, %p159
      %p162 = scmp.ne.s32.totalorder %s147, %s161
      %p163 = scmp.eq.s32.totalorder %s79, 0
      %p164 = por %p162, %p163
      %s166 = sadd.s32 %s165, 1
      %p169 = scmp.eq.s32.totalorder %s73, 1
      %p170 = scmp.ne.s32.totalorder %s165, %s167
      %p171 = scmp.eq.s32.totalorder %s73, 0
      %p172 = por %p170, %p171
      %p173 = scmp.ne.s32.totalorder %s165, %s167
      %p174 = scmp.eq.s32.totalorder %s78, 1
      %p175 = por %p173, %p174
      %p176 = scmp.ne.s32.totalorder %s167, %s168
      %p177 = scmp.eq.s32.totalorder %s78, 0
      %p178 = por %p176, %p177
      %p179 = scmp.ne.s32.totalorder %s167, %s168
      %p180 = scmp.eq.s32.totalorder %s79, 1
      %p181 = por %p179, %p180
      %p183 = scmp.ne.s32.totalorder %s168, %s182
      %p184 = scmp.eq.s32.totalorder %s79, 0
      %p185 = por %p183, %p184
      %s187 = sadd.s32 %s186, 1
      %p190 = scmp.eq.s32.totalorder %s73, 1
      %p191 = scmp.ne.s32.totalorder %s186, %s188
      %p192 = scmp.eq.s32.totalorder %s73, 0
      %p193 = por %p191, %p192
      %p194 = scmp.ne.s32.totalorder %s186, %s188
      %p195 = scmp.eq.s32.totalorder %s78, 1
      %p196 = por %p194, %p195
      %p197 = scmp.ne.s32.totalorder %s188, %s189
      %p198 = scmp.eq.s32.totalorder %s78, 0
      %p199 = por %p197, %p198
      %p200 = scmp.ne.s32.totalorder %s188, %s189
      %p201 = scmp.eq.s32.totalorder %s79, 1
      %p202 = por %p200, %p201
      %p204 = scmp.ne.s32.totalorder %s189, %s203
      %p205 = scmp.eq.s32.totalorder %s79, 0
      %p206 = por %p204, %p205
      %s208 = sadd.s32 %s207, 1
      %p211 = scmp.eq.s32.totalorder %s73, 1
      %p212 = scmp.ne.s32.totalorder %s207, %s209
      %p213 = scmp.eq.s32.totalorder %s73, 0
      %p214 = por %p212, %p213
      %p215 = scmp.ne.s32.totalorder %s207, %s209
      %p216 = scmp.eq.s32.totalorder %s78, 1
      %p217 = por %p215, %p216
      %p218 = scmp.ne.s32.totalorder %s209, %s210
      %p219 = scmp.eq.s32.totalorder %s78, 0
      %p220 = por %p218, %p219
      %p221 = scmp.ne.s32.totalorder %s209, %s210
      %p222 = scmp.eq.s32.totalorder %s79, 1
      %p223 = por %p221, %p222
      %p225 = scmp.ne.s32.totalorder %s210, %s224
      %p226 = scmp.eq.s32.totalorder %s79, 0
      %p227 = por %p225, %p226
      %s229 = sadd.s32 %s228, 1
      %p232 = scmp.eq.s32.totalorder %s73, 1
      %p233 = scmp.ne.s32.totalorder %s228, %s230
      %p234 = scmp.eq.s32.totalorder %s73, 0
      %p235 = por %p233, %p234
      %p236 = scmp.ne.s32.totalorder %s228, %s230
      %p237 = scmp.eq.s32.totalorder %s78, 1
      %p238 = por %p236, %p237
      %p239 = scmp.ne.s32.totalorder %s230, %s231
      %p240 = scmp.eq.s32.totalorder %s78, 0
      %p241 = por %p239, %p240
      %p242 = scmp.ne.s32.totalorder %s230, %s231
      %p243 = scmp.eq.s32.totalorder %s79, 1
      %p244 = por %p242, %p243
      %p246 = scmp.ne.s32.totalorder %s231, %s245
      %p247 = scmp.eq.s32.totalorder %s79, 0
      %p248 = por %p246, %p247
      %s250 = sadd.s32 %s249, 1
      %p253 = scmp.eq.s32.totalorder %s73, 1
      %p254 = scmp.ne.s32.totalorder %s249, %s251
      %p255 = scmp.eq.s32.totalorder %s73, 0
      %p256 = por %p254, %p255
      %p257 = scmp.ne.s32.totalorder %s249, %s251
      %p258 = scmp.eq.s32.totalorder %s78, 1
      %p259 = por %p257, %p258
      %p260 = scmp.ne.s32.totalorder %s251, %s252
      %p261 = scmp.eq.s32.totalorder %s78, 0
      %p262 = por %p260, %p261
      %p263 = scmp.ne.s32.totalorder %s251, %s252
      %p264 = scmp.eq.s32.totalorder %s79, 1
      %p265 = por %p263, %p264
      %p267 = scmp.ne.s32.totalorder %s252, %s266
      %p268 = scmp.eq.s32.totalorder %s79, 0
      %p269 = por %p267, %p268
      %s271 = sadd.s32 %s270, 1
      %p274 = scmp.eq.s32.totalorder %s73, 1
      %p275 = scmp.ne.s32.totalorder %s270, %s272
      %p276 = scmp.eq.s32.totalorder %s73, 0
      %p277 = por %p275, %p276
      %p278 = scmp.ne.s32.totalorder %s270, %s272
      %p279 = scmp.eq.s32.totalorder %s78, 1
      %p280 = por %p278, %p279
      %p281 = scmp.ne.s32.totalorder %s272, %s273
      %p282 = scmp.eq.s32.totalorder %s78, 0
      %p283 = por %p281, %p282
      %p284 = scmp.ne.s32.totalorder %s272, %s273
      %p285 = scmp.eq.s32.totalorder %s79, 1
      %p286 = por %p284, %p285
      %p288 = scmp.ne.s32.totalorder %s273, %s287
      %p289 = scmp.eq.s32.totalorder %s79, 0
      %p290 = por %p288, %p289
      %s292 = sadd.s32 %s291, 1
      %p295 = scmp.eq.s32.totalorder %s73, 1
      %p296 = scmp.ne.s32.totalorder %s291, %s293
      %p297 = scmp.eq.s32.totalorder %s73, 0
      %p298 = por %p296, %p297
      %p299 = scmp.ne.s32.totalorder %s291, %s293
      %p300 = scmp.eq.s32.totalorder %s78, 1
      %p301 = por %p299, %p300
      %p302 = scmp.ne.s32.totalorder %s293, %s294
      %p303 = scmp.eq.s32.totalorder %s78, 0
      %p304 = por %p302, %p303
      %p305 = scmp.ne.s32.totalorder %s293, %s294
      %p306 = scmp.eq.s32.totalorder %s79, 1
      %p307 = por %p305, %p306
      %p309 = scmp.ne.s32.totalorder %s294, %s308
      %p310 = scmp.eq.s32.totalorder %s79, 0
      %p311 = por %p309, %p310
      %s313 = sadd.s32 %s312, 1
      %p316 = scmp.eq.s32.totalorder %s73, 1
      %p317 = scmp.ne.s32.totalorder %s312, %s314
      %p318 = scmp.eq.s32.totalorder %s73, 0
      %p319 = por %p317, %p318
      %p320 = scmp.ne.s32.totalorder %s312, %s314
      %p321 = scmp.eq.s32.totalorder %s78, 1
      %p322 = por %p320, %p321
      %p323 = scmp.ne.s32.totalorder %s314, %s315
      %p324 = scmp.eq.s32.totalorder %s78, 0
      %p325 = por %p323, %p324
      %p326 = scmp.ne.s32.totalorder %s314, %s315
      %p327 = scmp.eq.s32.totalorder %s79, 1
      %p328 = por %p326, %p327
      %p330 = scmp.ne.s32.totalorder %s315, %s329
      %p331 = scmp.eq.s32.totalorder %s79, 0
      %p332 = por %p330, %p331
      %s334 = sadd.s32 %s333, 1
      %p337 = scmp.eq.s32.totalorder %s73, 1
      %p338 = scmp.ne.s32.totalorder %s333, %s335
      %p339 = scmp.eq.s32.totalorder %s73, 0
      %p340 = por %p338, %p339
      %p341 = scmp.ne.s32.totalorder %s333, %s335
      %p342 = scmp.eq.s32.totalorder %s78, 1
      %p343 = por %p341, %p342
      %p344 = scmp.ne.s32.totalorder %s335, %s336
      %p345 = scmp.eq.s32.totalorder %s78, 0
      %p346 = por %p344, %p345
      %p347 = scmp.ne.s32.totalorder %s335, %s336
      %p348 = scmp.eq.s32.totalorder %s79, 1
      %p349 = por %p347, %p348
      %p351 = scmp.ne.s32.totalorder %s336, %s350
      %p352 = scmp.eq.s32.totalorder %s79, 0
      %p353 = por %p351, %p352
      %s355 = sadd.s32 %s354, 1
      %p358 = scmp.eq.s32.totalorder %s73, 1
      %p359 = scmp.ne.s32.totalorder %s354, %s356
      %p360 = scmp.eq.s32.totalorder %s73, 0
      %p361 = por %p359, %p360
      %p362 = scmp.ne.s32.totalorder %s354, %s356
      %p363 = scmp.eq.s32.totalorder %s78, 1
      %p364 = por %p362, %p363
      %p365 = scmp.ne.s32.totalorder %s356, %s357
      %p366 = scmp.eq.s32.totalorder %s78, 0
      %p367 = por %p365, %p366
      %p368 = scmp.ne.s32.totalorder %s356, %s357
      %p369 = scmp.eq.s32.totalorder %s79, 1
      %p370 = por %p368, %p369
      %p372 = scmp.ne.s32.totalorder %s357, %s371
      %p373 = scmp.eq.s32.totalorder %s79, 0
      %p374 = por %p372, %p373
      %s376 = sadd.s32 %s375, 1
      %p379 = scmp.eq.s32.totalorder %s73, 1
      %p380 = scmp.ne.s32.totalorder %s375, %s377
      %p381 = scmp.eq.s32.totalorder %s73, 0
      %p382 = por %p380, %p381
      %p383 = scmp.ne.s32.totalorder %s375, %s377
      %p384 = scmp.eq.s32.totalorder %s78, 1
      %p385 = por %p383, %p384
      %p386 = scmp.ne.s32.totalorder %s377, %s378
      %p387 = scmp.eq.s32.totalorder %s78, 0
      %p388 = por %p386, %p387
      %p389 = scmp.ne.s32.totalorder %s377, %s378
      %p390 = scmp.eq.s32.totalorder %s79, 1
      %p391 = por %p389, %p390
      %p393 = scmp.ne.s32.totalorder %s378, %s392
      %p394 = scmp.eq.s32.totalorder %s79, 0
      %p395 = por %p393, %p394
      %s397 = sadd.s32 %s396, 1
      %p400 = scmp.eq.s32.totalorder %s73, 1
      %p401 = scmp.ne.s32.totalorder %s396, %s398
      %p402 = scmp.eq.s32.totalorder %s73, 0
      %p403 = por %p401, %p402
      %p404 = scmp.ne.s32.totalorder %s396, %s398
      %p405 = scmp.eq.s32.totalorder %s78, 1
      %p406 = por %p404, %p405
      %p407 = scmp.ne.s32.totalorder %s398, %s399
      %p408 = scmp.eq.s32.totalorder %s78, 0
      %p409 = por %p407, %p408
      %p410 = scmp.ne.s32.totalorder %s398, %s399
      %p411 = scmp.eq.s32.totalorder %s79, 1
      %p412 = por %p410, %p411
      %p414 = scmp.ne.s32.totalorder %s399, %s413
      %p415 = scmp.eq.s32.totalorder %s79, 0
      %p416 = por %p414, %p415
      %s417 = ssub.s32 %s73, %s80
      %p418 = scmp.eq.s32.totalorder %s417, 0
      %s420 = sadd.s32 %s419, 1
      %s421 = scalar_select %p418, %s419, %s420
      %p424 = pneg %p418
      %p425 = scmp.eq.s32.totalorder %s73, 1
      %p426 = por %p424, %p425
      %p427 = scmp.ne.s32.totalorder %s419, %s422
      %p428 = scmp.eq.s32.totalorder %s73, 0
      %p429 = por %p427, %p428
      %p430 = scmp.ne.s32.totalorder %s419, %s422
      %p431 = scmp.eq.s32.totalorder %s78, 1
      %p432 = por %p430, %p431
      %p433 = scmp.ne.s32.totalorder %s422, %s423
      %p434 = scmp.eq.s32.totalorder %s78, 0
      %p435 = por %p433, %p434
      %p436 = scmp.ne.s32.totalorder %s422, %s423
      %p437 = scmp.eq.s32.totalorder %s79, 1
      %p438 = por %p436, %p437
      %p440 = scmp.ne.s32.totalorder %s423, %s439
      %p441 = scmp.eq.s32.totalorder %s79, 0
      %p442 = por %p440, %p441
      %s443 = ssub.s32 %s73, %s80
      %p444 = scmp.eq.s32.totalorder %s443, 0
      %s446 = sadd.s32 %s445, 1
      %s447 = scalar_select %p444, %s445, %s446
      %p450 = pneg %p444
      %p451 = scmp.eq.s32.totalorder %s73, 1
      %p452 = por %p450, %p451
      %p453 = scmp.ne.s32.totalorder %s445, %s448
      %p454 = scmp.eq.s32.totalorder %s73, 0
      %p455 = por %p453, %p454
      %p456 = scmp.ne.s32.totalorder %s445, %s448
      %p457 = scmp.eq.s32.totalorder %s78, 1
      %p458 = por %p456, %p457
      %p459 = scmp.ne.s32.totalorder %s448, %s449
      %p460 = scmp.eq.s32.totalorder %s78, 0
      %p461 = por %p459, %p460
      %p462 = scmp.ne.s32.totalorder %s448, %s449
      %p463 = scmp.eq.s32.totalorder %s79, 1
      %p464 = por %p462, %p463
      %p466 = scmp.ne.s32.totalorder %s449, %s465
      %p467 = scmp.eq.s32.totalorder %s79, 0
      %p468 = por %p466, %p467
      %s469 = ssub.s32 %s73, %s80
      %p470 = scmp.eq.s32.totalorder %s469, 0
      %s472 = sadd.s32 %s471, 1
      %s473 = scalar_select %p470, %s471, %s472
      %p476 = pneg %p470
      %p477 = scmp.eq.s32.totalorder %s73, 1
      %p478 = por %p476, %p477
      %p479 = scmp.ne.s32.totalorder %s471, %s474
      %p480 = scmp.eq.s32.totalorder %s73, 0
      %p481 = por %p479, %p480
      %p482 = scmp.ne.s32.totalorder %s471, %s474
      %p483 = scmp.eq.s32.totalorder %s78, 1
      %p484 = por %p482, %p483
      %p485 = scmp.ne.s32.totalorder %s474, %s475
      %p486 = scmp.eq.s32.totalorder %s78, 0
      %p487 = por %p485, %p486
      %p488 = scmp.ne.s32.totalorder %s474, %s475
      %p489 = scmp.eq.s32.totalorder %s79, 1
      %p490 = por %p488, %p489
      %p492 = scmp.ne.s32.totalorder %s475, %s491
      %p493 = scmp.eq.s32.totalorder %s79, 0
      %p494 = por %p492, %p493
      %s495 = ssub.s32 %s73, %s80
      %p496 = scmp.eq.s32.totalorder %s495, 0
      %s498 = sadd.s32 %s497, 1
      %s499 = scalar_select %p496, %s497, %s498
      %p502 = pneg %p496
      %p503 = scmp.eq.s32.totalorder %s73, 1
      %p504 = por %p502, %p503
      %p505 = scmp.ne.s32.totalorder %s497, %s500
      %p506 = scmp.eq.s32.totalorder %s73, 0
      %p507 = por %p505, %p506
      %p508 = scmp.ne.s32.totalorder %s497, %s500
      %p509 = scmp.eq.s32.totalorder %s78, 1
      %p510 = por %p508, %p509
      %p511 = scmp.ne.s32.totalorder %s500, %s501
      %p512 = scmp.eq.s32.totalorder %s78, 0
      %p513 = por %p511, %p512
      %p514 = scmp.ne.s32.totalorder %s500, %s501
      %p515 = scmp.eq.s32.totalorder %s79, 1
      %p516 = por %p514, %p515
      %p518 = scmp.ne.s32.totalorder %s501, %s517
      %p519 = scmp.eq.s32.totalorder %s79, 0
      %p520 = por %p518, %p519
      %s521 = ssub.s32 %s73, %s80
      %p522 = scmp.eq.s32.totalorder %s521, 0
      %s524 = sadd.s32 %s523, 1
      %s525 = scalar_select %p522, %s523, %s524
      %p528 = pneg %p522
      %p529 = scmp.eq.s32.totalorder %s73, 1
      %p530 = por %p528, %p529
      %p531 = scmp.ne.s32.totalorder %s523, %s526
      %p532 = scmp.eq.s32.totalorder %s73, 0
      %p533 = por %p531, %p532
      %p534 = scmp.ne.s32.totalorder %s523, %s526
      %p535 = scmp.eq.s32.totalorder %s78, 1
      %p536 = por %p534, %p535
      %p537 = scmp.ne.s32.totalorder %s526, %s527
      %p538 = scmp.eq.s32.totalorder %s78, 0
      %p539 = por %p537, %p538
      %p540 = scmp.ne.s32.totalorder %s526, %s527
      %p541 = scmp.eq.s32.totalorder %s79, 1
      %p542 = por %p540, %p541
      %p544 = scmp.ne.s32.totalorder %s527, %s543
      %p545 = scmp.eq.s32.totalorder %s79, 0
      %p546 = por %p544, %p545
      %s547 = ssub.s32 %s73, %s80
      %p548 = scmp.eq.s32.totalorder %s547, 0
      %s550 = sadd.s32 %s549, 1
      %s551 = scalar_select %p548, %s549, %s550
      %p554 = pneg %p548
      %p555 = scmp.eq.s32.totalorder %s73, 1
      %p556 = por %p554, %p555
      %p557 = scmp.ne.s32.totalorder %s549, %s552
      %p558 = scmp.eq.s32.totalorder %s73, 0
      %p559 = por %p557, %p558
      %p560 = scmp.ne.s32.totalorder %s549, %s552
      %p561 = scmp.eq.s32.totalorder %s78, 1
      %p562 = por %p560, %p561
      %p563 = scmp.ne.s32.totalorder %s552, %s553
      %p564 = scmp.eq.s32.totalorder %s78, 0
      %p565 = por %p563, %p564
      %p566 = scmp.ne.s32.totalorder %s552, %s553
      %p567 = scmp.eq.s32.totalorder %s79, 1
      %p568 = por %p566, %p567
      %p570 = scmp.ne.s32.totalorder %s553, %s569
      %p571 = scmp.eq.s32.totalorder %s79, 0
      %p572 = por %p570, %p571
      %s573 = ssub.s32 %s73, %s80
      %p574 = scmp.eq.s32.totalorder %s573, 0
      %s576 = sadd.s32 %s575, 1
      %s577 = scalar_select %p574, %s575, %s576
      %p580 = pneg %p574
      %p581 = scmp.eq.s32.totalorder %s73, 1
      %p582 = por %p580, %p581
      %p583 = scmp.ne.s32.totalorder %s575, %s578
      %p584 = scmp.eq.s32.totalorder %s73, 0
      %p585 = por %p583, %p584
      %p586 = scmp.ne.s32.totalorder %s575, %s578
      %p587 = scmp.eq.s32.totalorder %s78, 1
      %p588 = por %p586, %p587
      %p589 = scmp.ne.s32.totalorder %s578, %s579
      %p590 = scmp.eq.s32.totalorder %s78, 0
      %p591 = por %p589, %p590
      %p592 = scmp.ne.s32.totalorder %s578, %s579
      %p593 = scmp.eq.s32.totalorder %s79, 1
      %p594 = por %p592, %p593
      %p596 = scmp.ne.s32.totalorder %s579, %s595
      %p597 = scmp.eq.s32.totalorder %s79, 0
      %p598 = por %p596, %p597
      %s599 = ssub.s32 %s73, %s80
      %p600 = scmp.eq.s32.totalorder %s599, 0
      %s602 = sadd.s32 %s601, 1
      %s603 = scalar_select %p600, %s601, %s602
      %p606 = pneg %p600
      %p607 = scmp.eq.s32.totalorder %s73, 1
      %p608 = por %p606, %p607
      %p609 = scmp.ne.s32.totalorder %s601, %s604
      %p610 = scmp.eq.s32.totalorder %s73, 0
      %p611 = por %p609, %p610
      %p612 = scmp.ne.s32.totalorder %s601, %s604
      %p613 = scmp.eq.s32.totalorder %s78, 1
      %p614 = por %p612, %p613
      %p615 = scmp.ne.s32.totalorder %s604, %s605
      %p616 = scmp.eq.s32.totalorder %s78, 0
      %p617 = por %p615, %p616
      %p618 = scmp.ne.s32.totalorder %s604, %s605
      %p619 = scmp.eq.s32.totalorder %s79, 1
      %p620 = por %p618, %p619
      %p622 = scmp.ne.s32.totalorder %s605, %s621
      %p623 = scmp.eq.s32.totalorder %s79, 0
      %p624 = por %p622, %p623
      %s625 = ssub.s32 %s73, %s80
      %p626 = scmp.eq.s32.totalorder %s625, 0
      %s628 = sadd.s32 %s627, 1
      %s629 = scalar_select %p626, %s627, %s628
      %p632 = pneg %p626
      %p633 = scmp.eq.s32.totalorder %s73, 1
      %p634 = por %p632, %p633
      %p635 = scmp.ne.s32.totalorder %s627, %s630
      %p636 = scmp.eq.s32.totalorder %s73, 0
      %p637 = por %p635, %p636
      %p638 = scmp.ne.s32.totalorder %s627, %s630
      %p639 = scmp.eq.s32.totalorder %s78, 1
      %p640 = por %p638, %p639
      %p641 = scmp.ne.s32.totalorder %s630, %s631
      %p642 = scmp.eq.s32.totalorder %s78, 0
      %p643 = por %p641, %p642
      %p644 = scmp.ne.s32.totalorder %s630, %s631
      %p645 = scmp.eq.s32.totalorder %s79, 1
      %p646 = por %p644, %p645
      %p648 = scmp.ne.s32.totalorder %s631, %s647
      %p649 = scmp.eq.s32.totalorder %s79, 0
      %p650 = por %p648, %p649
      %s651 = ssub.s32 %s73, %s80
      %p652 = scmp.eq.s32.totalorder %s651, 0
      %s654 = sadd.s32 %s653, 1
      %s655 = scalar_select %p652, %s653, %s654
      %p658 = pneg %p652
      %p659 = scmp.eq.s32.totalorder %s73, 1
      %p660 = por %p658, %p659
      %p661 = scmp.ne.s32.totalorder %s653, %s656
      %p662 = scmp.eq.s32.totalorder %s73, 0
      %p663 = por %p661, %p662
      %p664 = scmp.ne.s32.totalorder %s653, %s656
      %p665 = scmp.eq.s32.totalorder %s78, 1
      %p666 = por %p664, %p665
      %p667 = scmp.ne.s32.totalorder %s656, %s657
      %p668 = scmp.eq.s32.totalorder %s78, 0
      %p669 = por %p667, %p668
      %p670 = scmp.ne.s32.totalorder %s656, %s657
      %p671 = scmp.eq.s32.totalorder %s79, 1
      %p672 = por %p670, %p671
      %p674 = scmp.ne.s32.totalorder %s657, %s673
      %p675 = scmp.eq.s32.totalorder %s79, 0
      %p676 = por %p674, %p675
      %s677 = ssub.s32 %s73, %s80
      %p678 = scmp.eq.s32.totalorder %s677, 0
      %s680 = sadd.s32 %s679, 1
      %s681 = scalar_select %p678, %s679, %s680
      %p684 = pneg %p678
      %p685 = scmp.eq.s32.totalorder %s73, 1
      %p686 = por %p684, %p685
      %p687 = scmp.ne.s32.totalorder %s679, %s682
      %p688 = scmp.eq.s32.totalorder %s73, 0
      %p689 = por %p687, %p688
      %p690 = scmp.ne.s32.totalorder %s679, %s682
      %p691 = scmp.eq.s32.totalorder %s78, 1
      %p692 = por %p690, %p691
      %p693 = scmp.ne.s32.totalorder %s682, %s683
      %p694 = scmp.eq.s32.totalorder %s78, 0
      %p695 = por %p693, %p694
      %p696 = scmp.ne.s32.totalorder %s682, %s683
      %p697 = scmp.eq.s32.totalorder %s79, 1
      %p698 = por %p696, %p697
      %p700 = scmp.ne.s32.totalorder %s683, %s699
      %p701 = scmp.eq.s32.totalorder %s79, 0
      %p702 = por %p700, %p701
      %s703 = ssub.s32 %s73, %s80
      %p704 = scmp.eq.s32.totalorder %s703, 0
      %s706 = sadd.s32 %s705, 1
      %s707 = scalar_select %p704, %s705, %s706
      %p710 = pneg %p704
      %p711 = scmp.eq.s32.totalorder %s73, 1
      %p712 = por %p710, %p711
      %p713 = scmp.ne.s32.totalorder %s705, %s708
      %p714 = scmp.eq.s32.totalorder %s73, 0
      %p715 = por %p713, %p714
      %p716 = scmp.ne.s32.totalorder %s705, %s708
      %p717 = scmp.eq.s32.totalorder %s78, 1
      %p718 = por %p716, %p717
      %p719 = scmp.ne.s32.totalorder %s708, %s709
      %p720 = scmp.eq.s32.totalorder %s78, 0
      %p721 = por %p719, %p720
      %p722 = scmp.ne.s32.totalorder %s708, %s709
      %p723 = scmp.eq.s32.totalorder %s79, 1
      %p724 = por %p722, %p723
      %p726 = scmp.ne.s32.totalorder %s709, %s725
      %p727 = scmp.eq.s32.totalorder %s79, 0
      %p728 = por %p726, %p727
      %s729 = ssub.s32 %s73, %s80
      %p730 = scmp.eq.s32.totalorder %s729, 0
      %s732 = sadd.s32 %s731, 1
      %s733 = scalar_select %p730, %s731, %s732
      %p736 = pneg %p730
      %p737 = scmp.eq.s32.totalorder %s73, 1
      %p738 = por %p736, %p737
      %p739 = scmp.ne.s32.totalorder %s731, %s734
      %p740 = scmp.eq.s32.totalorder %s73, 0
      %p741 = por %p739, %p740
      %p742 = scmp.ne.s32.totalorder %s731, %s734
      %p743 = scmp.eq.s32.totalorder %s78, 1
      %p744 = por %p742, %p743
      %p745 = scmp.ne.s32.totalorder %s734, %s735
      %p746 = scmp.eq.s32.totalorder %s78, 0
      %p747 = por %p745, %p746
      %p748 = scmp.ne.s32.totalorder %s734, %s735
      %p749 = scmp.eq.s32.totalorder %s79, 1
      %p750 = por %p748, %p749
      %p752 = scmp.ne.s32.totalorder %s735, %s751
      %p753 = scmp.eq.s32.totalorder %s79, 0
      %p754 = por %p752, %p753
      %s755 = ssub.s32 %s73, %s80
      %p756 = scmp.eq.s32.totalorder %s755, 0
      %s758 = sadd.s32 %s757, 1
      %s759 = scalar_select %p756, %s757, %s758
      %p762 = pneg %p756
      %p763 = scmp.eq.s32.totalorder %s73, 1
      %p764 = por %p762, %p763
      %p765 = scmp.ne.s32.totalorder %s757, %s760
      %p766 = scmp.eq.s32.totalorder %s73, 0
      %p767 = por %p765, %p766
      %p768 = scmp.ne.s32.totalorder %s757, %s760
      %p769 = scmp.eq.s32.totalorder %s78, 1
      %p770 = por %p768, %p769
      %p771 = scmp.ne.s32.totalorder %s760, %s761
      %p772 = scmp.eq.s32.totalorder %s78, 0
      %p773 = por %p771, %p772
      %p774 = scmp.ne.s32.totalorder %s760, %s761
      %p775 = scmp.eq.s32.totalorder %s79, 1
      %p776 = por %p774, %p775
      %p778 = scmp.ne.s32.totalorder %s761, %s777
      %p779 = scmp.eq.s32.totalorder %s79, 0
      %p780 = por %p778, %p779
      %s782 = sadd.s32 %s781, 1
      %p785 = scmp.eq.s32.totalorder %s73, 1
      %p786 = scmp.ne.s32.totalorder %s781, %s783
      %p787 = scmp.eq.s32.totalorder %s73, 0
      %p788 = por %p786, %p787
      %p789 = scmp.ne.s32.totalorder %s781, %s783
      %p790 = scmp.eq.s32.totalorder %s78, 1
      %p791 = por %p789, %p790
      %p792 = scmp.ne.s32.totalorder %s783, %s784
      %p793 = scmp.eq.s32.totalorder %s78, 0
      %p794 = por %p792, %p793
      %p795 = scmp.ne.s32.totalorder %s783, %s784
      %p796 = scmp.eq.s32.totalorder %s79, 1
      %p797 = por %p795, %p796
      %p799 = scmp.ne.s32.totalorder %s784, %s798
      %p800 = scmp.eq.s32.totalorder %s79, 0
      %p801 = por %p799, %p800
      %s803 = sadd.s32 %s802, 1
      %p806 = scmp.eq.s32.totalorder %s73, 1
      %p807 = scmp.ne.s32.totalorder %s802, %s804
      %p808 = scmp.eq.s32.totalorder %s73, 0
      %p809 = por %p807, %p808
      %p810 = scmp.ne.s32.totalorder %s802, %s804
      %p811 = scmp.eq.s32.totalorder %s78, 1
      %p812 = por %p810, %p811
      %p813 = scmp.ne.s32.totalorder %s804, %s805
      %p814 = scmp.eq.s32.totalorder %s78, 0
      %p815 = por %p813, %p814
      %p816 = scmp.ne.s32.totalorder %s804, %s805
      %p817 = scmp.eq.s32.totalorder %s79, 1
      %p818 = por %p816, %p817
      %p820 = scmp.ne.s32.totalorder %s805, %s819
      %p821 = scmp.eq.s32.totalorder %s79, 0
      %p822 = por %p820, %p821
      %p823 = scmp.le.s32.totalorder 1, %s73
      %p824 = scmp.lt.s32.totalorder %s73, 3
      %p825 = pnand %p823, %p824
      %p826 = pneg %p825
      // Predicated region
      $region9: #{full_dpm_forward.3} parent=5 // pred_check
        _
      $region10: #{full_dpm_forward.3} parent=5 // pred_check_branch
        %828 = sbr.rel (%p825) target = $region12
      $region11: #{full_dpm_forward.3} parent=5 // pred_region
        %s829 = ssub.s32 %s73, 1
        // Predicated region
        $region13: #{full_dpm_forward.3} parent=11 // pred_check
          %p830 = pneg %p94
        $region14: #{full_dpm_forward.3} parent=11 // pred_check_branch
          %832 = sbr.rel (%p830) target = $region16
        $region15: #{full_dpm_forward.3} parent=11 // pred_region
          %s834 = ssub.s32 16, 16
          %835 = vsyncadd [#allocation6], %s834
          %s837 = sshll.u32 %s1, 4
          %s838 = int_to_ptr.vmem [resolvable:$true] %s837
          %840 = dma.vmem_to_smem %s838, 16, [#allocation4], [#allocation6]
        $region16: #{full_dpm_forward.3} parent=11 // pred_fallthru
          _
        // Predicated region
        $region17: #{full_dpm_forward.3} parent=11 // pred_check
          %p841 = pneg %p115
        $region18: #{full_dpm_forward.3} parent=11 // pred_check_branch
          %843 = sbr.rel (%p841) target = $region20
        $region19: #{full_dpm_forward.3} parent=11 // pred_region
          _
        $region20: #{full_dpm_forward.3} parent=11 // pred_fallthru
          _
        // Predicated region
        $region21: #{full_dpm_forward.3} parent=11 // pred_check
          %p844 = pneg %p136
        $region22: #{full_dpm_forward.3} parent=11 // pred_check_branch
          %846 = sbr.rel (%p844) target = $region24
        $region23: #{full_dpm_forward.3} parent=11 // pred_region
          _
        $region24: #{full_dpm_forward.3} parent=11 // pred_fallthru
          _
        // Predicated region
        $region25: #{full_dpm_forward.3} parent=11 // pred_check
          %p847 = pneg %p157
        $region26: #{full_dpm_forward.3} parent=11 // pred_check_branch
          %849 = sbr.rel (%p847) target = $region28
        $region27: #{full_dpm_forward.3} parent=11 // pred_region
          _
        $region28: #{full_dpm_forward.3} parent=11 // pred_fallthru
          _
        // Predicated region
        $region29: #{full_dpm_forward.3} parent=11 // pred_check
          %p850 = pneg %p178
        $region30: #{full_dpm_forward.3} parent=11 // pred_check_branch
          %852 = sbr.rel (%p850) target = $region32
        $region31: #{full_dpm_forward.3} parent=11 // pred_region
          _
        $region32: #{full_dpm_forward.3} parent=11 // pred_fallthru
          _
        // Predicated region
        $region33: #{full_dpm_forward.3} parent=11 // pred_check
          %p853 = pneg %p199
        $region34: #{full_dpm_forward.3} parent=11 // pred_check_branch
          %855 = sbr.rel (%p853) target = $region36
        $region35: #{full_dpm_forward.3} parent=11 // pred_region
          _
        $region36: #{full_dpm_forward.3} parent=11 // pred_fallthru
          _
        // Predicated region
        $region37: #{full_dpm_forward.3} parent=11 // pred_check
          %p856 = pneg %p220
        $region38: #{full_dpm_forward.3} parent=11 // pred_check_branch
          %858 = sbr.rel (%p856) target = $region40
        $region39: #{full_dpm_forward.3} parent=11 // pred_region
          _
        $region40: #{full_dpm_forward.3} parent=11 // pred_fallthru
          _
        // Predicated region
        $region41: #{full_dpm_forward.3} parent=11 // pred_check
          %p859 = pneg %p241
        $region42: #{full_dpm_forward.3} parent=11 // pred_check_branch
          %861 = sbr.rel (%p859) target = $region44
        $region43: #{full_dpm_forward.3} parent=11 // pred_region
          _
        $region44: #{full_dpm_forward.3} parent=11 // pred_fallthru
          _
        // Predicated region
        $region45: #{full_dpm_forward.3} parent=11 // pred_check
          %p862 = pneg %p262
        $region46: #{full_dpm_forward.3} parent=11 // pred_check_branch
          %864 = sbr.rel (%p862) target = $region48
        $region47: #{full_dpm_forward.3} parent=11 // pred_region
          _
        $region48: #{full_dpm_forward.3} parent=11 // pred_fallthru
          _
        // Predicated region
        $region49: #{full_dpm_forward.3} parent=11 // pred_check
          %p865 = pneg %p283
        $region50: #{full_dpm_forward.3} parent=11 // pred_check_branch
          %867 = sbr.rel (%p865) target = $region52
        $region51: #{full_dpm_forward.3} parent=11 // pred_region
          _
        $region52: #{full_dpm_forward.3} parent=11 // pred_fallthru
          _
        // Predicated region
        $region53: #{full_dpm_forward.3} parent=11 // pred_check
          %p868 = pneg %p304
        $region54: #{full_dpm_forward.3} parent=11 // pred_check_branch
          %870 = sbr.rel (%p868) target = $region56
        $region55: #{full_dpm_forward.3} parent=11 // pred_region
          _
        $region56: #{full_dpm_forward.3} parent=11 // pred_fallthru
          _
        // Predicated region
        $region57: #{full_dpm_forward.3} parent=11 // pred_check
          %p871 = pneg %p325
        $region58: #{full_dpm_forward.3} parent=11 // pred_check_branch
          %873 = sbr.rel (%p871) target = $region60
        $region59: #{full_dpm_forward.3} parent=11 // pred_region
          _
        $region60: #{full_dpm_forward.3} parent=11 // pred_fallthru
          _
        // Predicated region
        $region61: #{full_dpm_forward.3} parent=11 // pred_check
          %p874 = pneg %p346
        $region62: #{full_dpm_forward.3} parent=11 // pred_check_branch
          %876 = sbr.rel (%p874) target = $region64
        $region63: #{full_dpm_forward.3} parent=11 // pred_region
          _
        $region64: #{full_dpm_forward.3} parent=11 // pred_fallthru
          _
        // Predicated region
        $region65: #{full_dpm_forward.3} parent=11 // pred_check
          %p877 = pneg %p367
        $region66: #{full_dpm_forward.3} parent=11 // pred_check_branch
          %879 = sbr.rel (%p877) target = $region68
        $region67: #{full_dpm_forward.3} parent=11 // pred_region
          _
        $region68: #{full_dpm_forward.3} parent=11 // pred_fallthru
          _
        // Predicated region
        $region69: #{full_dpm_forward.3} parent=11 // pred_check
          %p880 = pneg %p388
        $region70: #{full_dpm_forward.3} parent=11 // pred_check_branch
          %882 = sbr.rel (%p880) target = $region72
        $region71: #{full_dpm_forward.3} parent=11 // pred_region
          _
        $region72: #{full_dpm_forward.3} parent=11 // pred_fallthru
          _
        // Predicated region
        $region73: #{full_dpm_forward.3} parent=11 // pred_check
          %p883 = pneg %p409
        $region74: #{full_dpm_forward.3} parent=11 // pred_check_branch
          %885 = sbr.rel (%p883) target = $region76
        $region75: #{full_dpm_forward.3} parent=11 // pred_region
          _
        $region76: #{full_dpm_forward.3} parent=11 // pred_fallthru
          _
      $region12: #{full_dpm_forward.3} parent=5 // pred_fallthru
        _
      %p886 = scmp.lt.s32.totalorder %s73, 2
      // Predicated region
      $region77: #{full_dpm_forward.3} parent=5 // pred_check
        %p887 = pneg %p886
      $region78: #{full_dpm_forward.3} parent=5 // pred_check_branch
        %889 = sbr.rel (%p887) target = $region80
      $region79: #{full_dpm_forward.3} parent=5 // pred_region
        // Predicated region
        $region81: #{full_dpm_forward.3} parent=79 // pred_check
          %p890 = pneg %p429
        $region82: #{full_dpm_forward.3} parent=79 // pred_check_branch
          %892 = sbr.rel (%p890) target = $region84
        $region83: #{full_dpm_forward.3} parent=79 // pred_region
          %p893 = scmp.lt.s32.totalorder %s73, 1
          %s894 = scalar_select %p893, %s73, 1
          %s895 = smul.addr %s894, 4
          %s896 = smul.addr %s895, 4
          %s897 = scalar_lea.vmem %s33, %s896
        $region84: #{full_dpm_forward.3} parent=79 // pred_fallthru
          _
        // Predicated region
        $region85: #{full_dpm_forward.3} parent=79 // pred_check
          %p898 = pneg %p455
        $region86: #{full_dpm_forward.3} parent=79 // pred_check_branch
          %900 = sbr.rel (%p898) target = $region88
        $region87: #{full_dpm_forward.3} parent=79 // pred_region
          %p901 = scmp.lt.s32.totalorder %s73, 1
          %s902 = scalar_select %p901, %s73, 1
          %s903 = smul.addr %s902, 4
          %s904 = smul.addr %s903, 4
          %s905 = scalar_lea.vmem %s35, %s904
        $region88: #{full_dpm_forward.3} parent=79 // pred_fallthru
          _
        // Predicated region
        $region89: #{full_dpm_forward.3} parent=79 // pred_check
          %p906 = pneg %p481
        $region90: #{full_dpm_forward.3} parent=79 // pred_check_branch
          %908 = sbr.rel (%p906) target = $region92
        $region91: #{full_dpm_forward.3} parent=79 // pred_region
          %p909 = scmp.lt.s32.totalorder %s73, 1
          %s910 = scalar_select %p909, %s73, 1
          %s911 = scalar_lea.vmem %s37, %s910
        $region92: #{full_dpm_forward.3} parent=79 // pred_fallthru
          _
        // Predicated region
        $region93: #{full_dpm_forward.3} parent=79 // pred_check
          %p912 = pneg %p507
        $region94: #{full_dpm_forward.3} parent=79 // pred_check_branch
          %914 = sbr.rel (%p912) target = $region96
        $region95: #{full_dpm_forward.3} parent=79 // pred_region
          %p915 = scmp.lt.s32.totalorder %s73, 1
          %s916 = scalar_select %p915, %s73, 1
          %s917 = scalar_lea.vmem %s39, %s916
        $region96: #{full_dpm_forward.3} parent=79 // pred_fallthru
          _
        // Predicated region
        $region97: #{full_dpm_forward.3} parent=79 // pred_check
          %p918 = pneg %p533
        $region98: #{full_dpm_forward.3} parent=79 // pred_check_branch
          %920 = sbr.rel (%p918) target = $region100
        $region99: #{full_dpm_forward.3} parent=79 // pred_region
          %p921 = scmp.lt.s32.totalorder %s73, 1
          %s922 = scalar_select %p921, %s73, 1
          %s923 = smul.addr %s922, 4
          %s924 = smul.addr %s923, 4
          %s925 = scalar_lea.vmem %s41, %s924
        $region100: #{full_dpm_forward.3} parent=79 // pred_fallthru
          _
        // Predicated region
        $region101: #{full_dpm_forward.3} parent=79 // pred_check
          %p926 = pneg %p559
        $region102: #{full_dpm_forward.3} parent=79 // pred_check_branch
          %928 = sbr.rel (%p926) target = $region104
        $region103: #{full_dpm_forward.3} parent=79 // pred_region
          %p929 = scmp.lt.s32.totalorder %s73, 1
          %s930 = scalar_select %p929, %s73, 1
          %s931 = scalar_lea.vmem %s43, %s930
        $region104: #{full_dpm_forward.3} parent=79 // pred_fallthru
          _
        // Predicated region
        $region105: #{full_dpm_forward.3} parent=79 // pred_check
          %p932 = pneg %p585
        $region106: #{full_dpm_forward.3} parent=79 // pred_check_branch
          %934 = sbr.rel (%p932) target = $region108
        $region107: #{full_dpm_forward.3} parent=79 // pred_region
          %p935 = scmp.lt.s32.totalorder %s73, 1
          %s936 = scalar_select %p935, %s73, 1
          %s937 = smul.addr %s936, 4
          %s938 = smul.addr %s937, 4
          %s939 = scalar_lea.vmem %s45, %s938
        $region108: #{full_dpm_forward.3} parent=79 // pred_fallthru
          _
        // Predicated region
        $region109: #{full_dpm_forward.3} parent=79 // pred_check
          %p940 = pneg %p611
        $region110: #{full_dpm_forward.3} parent=79 // pred_check_branch
          %942 = sbr.rel (%p940) target = $region112
        $region111: #{full_dpm_forward.3} parent=79 // pred_region
          %p943 = scmp.lt.s32.totalorder %s73, 1
          %s944 = scalar_select %p943, %s73, 1
          %s945 = scalar_lea.vmem %s47, %s944
        $region112: #{full_dpm_forward.3} parent=79 // pred_fallthru
          _
        // Predicated region
        $region113: #{full_dpm_forward.3} parent=79 // pred_check
          %p946 = pneg %p637
        $region114: #{full_dpm_forward.3} parent=79 // pred_check_branch
          %948 = sbr.rel (%p946) target = $region116
        $region115: #{full_dpm_forward.3} parent=79 // pred_region
          %p949 = scmp.lt.s32.totalorder %s73, 1
          %s950 = scalar_select %p949, %s73, 1
          %s951 = scalar_lea.vmem %s49, %s950
        $region116: #{full_dpm_forward.3} parent=79 // pred_fallthru
          _
        // Predicated region
        $region117: #{full_dpm_forward.3} parent=79 // pred_check
          %p952 = pneg %p663
        $region118: #{full_dpm_forward.3} parent=79 // pred_check_branch
          %954 = sbr.rel (%p952) target = $region120
        $region119: #{full_dpm_forward.3} parent=79 // pred_region
          %p955 = scmp.lt.s32.totalorder %s73, 1
          %s956 = scalar_select %p955, %s73, 1
          %s957 = smul.addr %s956, 4
          %s958 = smul.addr %s957, 4
          %s959 = scalar_lea.vmem %s51, %s958
        $region120: #{full_dpm_forward.3} parent=79 // pred_fallthru
          _
        // Predicated region
        $region121: #{full_dpm_forward.3} parent=79 // pred_check
          %p960 = pneg %p689
        $region122: #{full_dpm_forward.3} parent=79 // pred_check_branch
          %962 = sbr.rel (%p960) target = $region124
        $region123: #{full_dpm_forward.3} parent=79 // pred_region
          %p963 = scmp.lt.s32.totalorder %s73, 1
          %s964 = scalar_select %p963, %s73, 1
          %s965 = smul.addr %s964, 4
          %s966 = smul.addr %s965, 4
          %s967 = scalar_lea.vmem %s53, %s966
        $region124: #{full_dpm_forward.3} parent=79 // pred_fallthru
          _
        // Predicated region
        $region125: #{full_dpm_forward.3} parent=79 // pred_check
          %p968 = pneg %p715
        $region126: #{full_dpm_forward.3} parent=79 // pred_check_branch
          %970 = sbr.rel (%p968) target = $region128
        $region127: #{full_dpm_forward.3} parent=79 // pred_region
          %p971 = scmp.lt.s32.totalorder %s73, 1
          %s972 = scalar_select %p971, %s73, 1
          %s973 = scalar_lea.vmem %s55, %s972
        $region128: #{full_dpm_forward.3} parent=79 // pred_fallthru
          _
        // Predicated region
        $region129: #{full_dpm_forward.3} parent=79 // pred_check
          %p974 = pneg %p741
        $region130: #{full_dpm_forward.3} parent=79 // pred_check_branch
          %976 = sbr.rel (%p974) target = $region132
        $region131: #{full_dpm_forward.3} parent=79 // pred_region
          %p977 = scmp.lt.s32.totalorder %s73, 1
          %s978 = scalar_select %p977, %s73, 1
          %s979 = smul.addr %s978, 4
          %s980 = smul.addr %s979, 4
          %s981 = scalar_lea.vmem %s57, %s980
        $region132: #{full_dpm_forward.3} parent=79 // pred_fallthru
          _
        // Predicated region
        $region133: #{full_dpm_forward.3} parent=79 // pred_check
          %p982 = pneg %p767
        $region134: #{full_dpm_forward.3} parent=79 // pred_check_branch
          %984 = sbr.rel (%p982) target = $region136
        $region135: #{full_dpm_forward.3} parent=79 // pred_region
          %p985 = scmp.lt.s32.totalorder %s73, 1
          %s986 = scalar_select %p985, %s73, 1
          %s987 = scalar_lea.vmem %s59, %s986
        $region136: #{full_dpm_forward.3} parent=79 // pred_fallthru
          _
      $region80: #{full_dpm_forward.3} parent=5 // pred_fallthru
        _
      %p988 = scmp.le.s32.totalorder 1, %s73
      %p989 = scmp.lt.s32.totalorder %s73, 3
      %p990 = pnand %p988, %p989
      %p991 = pneg %p990
      // Predicated region
      $region137: #{full_dpm_forward.3} parent=5 // pred_check
        _
      $region138: #{full_dpm_forward.3} parent=5 // pred_check_branch
        %993 = sbr.rel (%p990) target = $region140
      $region139: #{full_dpm_forward.3} parent=5 // pred_region
        %s994 = ssub.s32 %s73, 1
        // Predicated region
        $region141: #{full_dpm_forward.3} parent=139 // pred_check
          %p995 = pneg %p94
        $region142: #{full_dpm_forward.3} parent=139 // pred_check_branch
          %997 = sbr.rel (%p995) target = $region144
        $region143: #{full_dpm_forward.3} parent=139 // pred_region
          %998 = dma.done [#allocation6], 16
        $region144: #{full_dpm_forward.3} parent=139 // pred_fallthru
          _
        %999 = sfence
        %p1000 = pneg %p94
        %p1001 = pneg %p91
        %p1002 = pneg %p115
        %p1003 = pneg %p112
        %p1004 = pneg %p136
        %p1005 = pneg %p133
        %p1006 = pneg %p157
        %p1007 = pneg %p154
        %p1008 = pneg %p178
        %p1009 = pneg %p175
        %p1010 = pneg %p199
        %p1011 = pneg %p196
        %p1012 = pneg %p220
        %p1013 = pneg %p217
        %p1014 = pneg %p241
        %p1015 = pneg %p238
        %p1016 = pneg %p262
        %p1017 = pneg %p259
        %p1018 = pneg %p283
        %p1019 = pneg %p280
        %p1020 = pneg %p304
        %p1021 = pneg %p301
        %p1022 = pneg %p325
        %p1023 = pneg %p322
        %p1024 = pneg %p346
        %p1025 = pneg %p343
        %p1026 = pneg %p367
        %p1027 = pneg %p364
        %p1028 = pneg %p388
        %p1029 = pneg %p385
        %p1030 = pneg %p409
        %p1031 = pneg %p406
        %p1032 = scmp.lt.s32.totalorder %s78, 1
        %s1033 = scalar_select %p1032, %s78, 1
        %s1034 = smul.addr %s1033, 4
        %s1035 = smul.addr %s1034, 4
        %s1036 = scalar_lea.vmem %s33, %s1035
        %p1037 = pneg %p435
        %p1038 = pneg %p432
        %p1039 = scmp.lt.s32.totalorder %s78, 1
        %s1040 = scalar_select %p1039, %s78, 1
        %s1041 = smul.addr %s1040, 4
        %s1042 = smul.addr %s1041, 4
        %s1043 = scalar_lea.vmem %s35, %s1042
        %p1044 = pneg %p461
        %p1045 = pneg %p458
        %p1046 = scmp.lt.s32.totalorder %s78, 1
        %s1047 = scalar_select %p1046, %s78, 1
        %s1048 = scalar_lea.vmem %s37, %s1047
        %p1049 = pneg %p487
        %p1050 = pneg %p484
        %p1051 = scmp.lt.s32.totalorder %s78, 1
        %s1052 = scalar_select %p1051, %s78, 1
        %s1053 = scalar_lea.vmem %s39, %s1052
        %p1054 = pneg %p513
        %p1055 = pneg %p510
        %p1056 = scmp.lt.s32.totalorder %s78, 1
        %s1057 = scalar_select %p1056, %s78, 1
        %s1058 = smul.addr %s1057, 4
        %s1059 = smul.addr %s1058, 4
        %s1060 = scalar_lea.vmem %s41, %s1059
        %p1061 = pneg %p539
        %p1062 = pneg %p536
        %p1063 = scmp.lt.s32.totalorder %s78, 1
        %s1064 = scalar_select %p1063, %s78, 1
        %s1065 = scalar_lea.vmem %s43, %s1064
        %p1066 = pneg %p565
        %p1067 = pneg %p562
        %p1068 = scmp.lt.s32.totalorder %s78, 1
        %s1069 = scalar_select %p1068, %s78, 1
        %s1070 = smul.addr %s1069, 4
        %s1071 = smul.addr %s1070, 4
        %s1072 = scalar_lea.vmem %s45, %s1071
        %p1073 = pneg %p591
        %p1074 = pneg %p588
        %p1075 = scmp.lt.s32.totalorder %s78, 1
        %s1076 = scalar_select %p1075, %s78, 1
        %s1077 = scalar_lea.vmem %s47, %s1076
        %p1078 = pneg %p617
        %p1079 = pneg %p614
        %p1080 = scmp.lt.s32.totalorder %s78, 1
        %s1081 = scalar_select %p1080, %s78, 1
        %s1082 = scalar_lea.vmem %s49, %s1081
        %p1083 = pneg %p643
        %p1084 = pneg %p640
        %p1085 = scmp.lt.s32.totalorder %s78, 1
        %s1086 = scalar_select %p1085, %s78, 1
        %s1087 = smul.addr %s1086, 4
        %s1088 = smul.addr %s1087, 4
        %s1089 = scalar_lea.vmem %s51, %s1088
        %p1090 = pneg %p669
        %p1091 = pneg %p666
        %p1092 = scmp.lt.s32.totalorder %s78, 1
        %s1093 = scalar_select %p1092, %s78, 1
        %s1094 = smul.addr %s1093, 4
        %s1095 = smul.addr %s1094, 4
        %s1096 = scalar_lea.vmem %s53, %s1095
        %p1097 = pneg %p695
        %p1098 = pneg %p692
        %p1099 = scmp.lt.s32.totalorder %s78, 1
        %s1100 = scalar_select %p1099, %s78, 1
        %s1101 = scalar_lea.vmem %s55, %s1100
        %p1102 = pneg %p721
        %p1103 = pneg %p718
        %p1104 = scmp.lt.s32.totalorder %s78, 1
        %s1105 = scalar_select %p1104, %s78, 1
        %s1106 = smul.addr %s1105, 4
        %s1107 = smul.addr %s1106, 4
        %s1108 = scalar_lea.vmem %s57, %s1107
        %p1109 = pneg %p747
        %p1110 = pneg %p744
        %p1111 = scmp.lt.s32.totalorder %s78, 1
        %s1112 = scalar_select %p1111, %s78, 1
        %s1113 = scalar_lea.vmem %s59, %s1112
        %p1114 = pneg %p773
        %p1115 = pneg %p770
        %p1116 = pneg %p794
        %p1117 = pneg %p791
        %p1118 = pneg %p815
        %p1119 = pneg %p812
        %p1120 = scmp.lt.s32.totalorder %s78, 1
        %s1121 = scalar_select %p1120, %s78, 1
        %s1122 = smul.addr %s1121, 4
        %s1123 = smul.addr %s1122, 4
        %s1124 = scalar_lea.vmem %s33, %s1123
        %p1125 = scmp.lt.s32.totalorder %s78, 1
        %s1126 = scalar_select %p1125, %s78, 1
        %s1127 = smul.addr %s1126, 4
        %s1128 = smul.addr %s1127, 4
        %s1129 = scalar_lea.vmem %s35, %s1128
        %p1130 = scmp.lt.s32.totalorder %s78, 1
        %s1131 = scalar_select %p1130, %s78, 1
        %s1132 = scalar_lea.vmem %s37, %s1131
        %p1133 = scmp.lt.s32.totalorder %s78, 1
        %s1134 = scalar_select %p1133, %s78, 1
        %s1135 = scalar_lea.vmem %s39, %s1134
        %p1136 = scmp.lt.s32.totalorder %s78, 1
        %s1137 = scalar_select %p1136, %s78, 1
        %s1138 = smul.addr %s1137, 4
        %s1139 = smul.addr %s1138, 4
        %s1140 = scalar_lea.vmem %s41, %s1139
        %p1141 = scmp.lt.s32.totalorder %s78, 1
        %s1142 = scalar_select %p1141, %s78, 1
        %s1143 = scalar_lea.vmem %s43, %s1142
        %p1144 = scmp.lt.s32.totalorder %s78, 1
        %s1145 = scalar_select %p1144, %s78, 1
        %s1146 = smul.addr %s1145, 4
        %s1147 = smul.addr %s1146, 4
        %s1148 = scalar_lea.vmem %s45, %s1147
        %p1149 = scmp.lt.s32.totalorder %s78, 1
        %s1150 = scalar_select %p1149, %s78, 1
        %s1151 = scalar_lea.vmem %s47, %s1150
        %p1152 = scmp.lt.s32.totalorder %s78, 1
        %s1153 = scalar_select %p1152, %s78, 1
        %s1154 = scalar_lea.vmem %s49, %s1153
        %p1155 = scmp.lt.s32.totalorder %s78, 1
        %s1156 = scalar_select %p1155, %s78, 1
        %s1157 = smul.addr %s1156, 4
        %s1158 = smul.addr %s1157, 4
        %s1159 = scalar_lea.vmem %s51, %s1158
        %p1160 = scmp.lt.s32.totalorder %s78, 1
        %s1161 = scalar_select %p1160, %s78, 1
        %s1162 = smul.addr %s1161, 4
        %s1163 = smul.addr %s1162, 4
        %s1164 = scalar_lea.vmem %s53, %s1163
        %p1165 = scmp.lt.s32.totalorder %s78, 1
        %s1166 = scalar_select %p1165, %s78, 1
        %s1167 = scalar_lea.vmem %s55, %s1166
        %p1168 = scmp.lt.s32.totalorder %s78, 1
        %s1169 = scalar_select %p1168, %s78, 1
        %s1170 = smul.addr %s1169, 4
        %s1171 = smul.addr %s1170, 4
        %s1172 = scalar_lea.vmem %s57, %s1171
        %p1173 = scmp.lt.s32.totalorder %s78, 1
        %s1174 = scalar_select %p1173, %s78, 1
        %s1175 = scalar_lea.vmem %s59, %s1174
        %p1177 = scmp.eq.s32.totalorder %s78, 0
        // Predicated region
        $region145: #{full_dpm_forward.3} parent=139 // pred_check
          %p1178 = pneg %p1177
        $region146: #{full_dpm_forward.3} parent=139 // pred_check_branch
          %1180 = sbr.rel (%p1178) target = $region148
        $region147: #{full_dpm_forward.3} parent=139 // pred_region
          %v1181 = vld [vmem:[%s5] sm:$0xff]
          %vm1182 = vcmask 23552
          %1183 = vst.msk [vmem:[#allocation3] sm:$0xff] %vm1182, %v1181
          %v1184 = vld [vmem:[%s3] sm:$0xff]
          %v1185 = vld [vmem:[%s21] sm:$0xff]
          %v1186 = vld [vmem:[%s21 + $0x8] sm:$0xff]
          %v1187 = vld [vmem:[%s21 + $0x10] sm:$0xf]
          %v1188 = vld [vmem:[%s7] sm:$0xff]
          %v1189 = vld [vmem:[%s23] sm:$0x7]
          %v1191 = vsel %vm1182, %v1188, 0
          %vm1193 = vcmask 1042432
          %v1195 = vsel %vm1193, %v1189, 0
          %1197 = vmatprep.subr.mxu0 0.0
          %1198 = vmatpush1.msra.mxu0 0.0
          %1199 = vmatprep.subr.mxu0 0.0
          %1200 = vmatpush1.msra.mxu0 0.0
          %1201 = vmatprep.subr.mxu0 0.0
          %1202 = vmatpush1.msra.mxu0 0.0
          %1203 = vmatprep.subr.mxu0 0.0
          %1204 = vmatpush1.msra.mxu0 0.0
          %1205 = vmatprep.subr.mxu0 0.0
          %1206 = vmatpush1.msra.mxu0 0.0
          %1207 = vmatprep.subr.mxu0 0.0
          %1208 = vmatpush1.msra.mxu0 0.0
          %1209 = vmatprep.subr.mxu0 0.0
          %1210 = vmatpush1.msra.mxu0 0.0
          %1211 = vmatprep.subr.mxu0 0.0
          %1212 = vmatpush1.msra.mxu0 0.0
          %1213 = vmatprep.subr.mxu0 0.0
          %1214 = vmatpush1.msra.mxu0 0.0
          %1215 = vmatprep.subr.mxu0 0.0
          %1216 = vmatpush1.msra.mxu0 0.0
          %1217 = vmatprep.subr.mxu0 0.0
          %1218 = vmatpush1.msra.mxu0 0.0
          %1219 = vmatprep.subr.mxu0 0.0
          %1220 = vmatpush1.msra.mxu0 0.0
          %1221 = vmatprep.subr.mxu0 0.0
          %1222 = vmatpush1.msra.mxu0 0.0
          %1223 = vmatprep.subr.mxu0 0.0
          %1224 = vmatpush1.msra.mxu0 0.0
          %1225 = vmatprep.subr.mxu0 0.0
          %1226 = vmatpush1.msra.mxu0 0.0
          %1227 = vmatprep.subr.mxu0 0.0
          %1228 = vmatpush1.msra.mxu0 %v1195
          %1229 = vmatprep.subr.mxu0 0.0
          %1230 = vmatpush2.msra.mxu0 0.0
          %1231 = vmatprep.subr.mxu0 0.0
          %1232 = vmatpush2.msra.mxu0 0.0
          %1233 = vmatprep.subr.mxu0 0.0
          %1234 = vmatpush2.msra.mxu0 0.0
          %1235 = vmatprep.subr.mxu0 0.0
          %1236 = vmatpush2.msra.mxu0 0.0
          %1237 = vmatprep.subr.mxu0 0.0
          %1238 = vmatpush2.msra.mxu0 0.0
          %1239 = vmatprep.subr.mxu0 0.0
          %1240 = vmatpush2.msra.mxu0 0.0
          %1241 = vmatprep.subr.mxu0 0.0
          %1242 = vmatpush2.msra.mxu0 0.0
          %1243 = vmatprep.subr.mxu0 0.0
          %1244 = vmatpush2.msra.mxu0 0.0
          %1245 = vmatprep.subr.mxu0 0.0
          %1246 = vmatpush2.msra.mxu0 0.0
          %1247 = vmatprep.subr.mxu0 0.0
          %1248 = vmatpush2.msra.mxu0 0.0
          %1249 = vmatprep.subr.mxu0 0.0
          %1250 = vmatpush2.msra.mxu0 0.0
          %1251 = vmatprep.subr.mxu0 0.0
          %1252 = vmatpush2.msra.mxu0 0.0
          %1253 = vmatprep.subr.mxu0 0.0
          %1254 = vmatpush2.msra.mxu0 0.0
          %1255 = vmatprep.subr.mxu0 0.0
          %1256 = vmatpush2.msra.mxu0 0.0
          %1257 = vmatprep.subr.mxu0 0.0
          %1258 = vmatpush2.msra.mxu0 0.0
          %1259 = vmatprep.subr.mxu0 0.0
          %1260 = vmatpush2.msra.mxu0 0.0
          %1261 = vmatprep.mubr.f32.mxu0 0.0
          %1262 = vmatmul.mubr.f32.gmra.mxu0 %v1191
          %v1263 = vpop.f32.mrf.mxu0
          %v1264 = vadd.f32 0.0, %v1263
          %v1265 = vpop.f32.mrf.mxu0
          %1266 = vdwg.mxu0
          %vm1267 = vcmask 162816
          %v1269 = vsel %vm1267, %v1184, 0
          %vm1271 = vcmask 1043456
          %v1273 = vsel %vm1271, %v1187, 0
          %1275 = vmatprep.subr.mxu0 0.0
          %1276 = vmatpush1.msra.mxu0 0.0
          %1277 = vmatprep.subr.mxu0 0.0
          %1278 = vmatpush1.msra.mxu0 0.0
          %1279 = vmatprep.subr.mxu0 0.0
          %1280 = vmatpush1.msra.mxu0 0.0
          %1281 = vmatprep.subr.mxu0 0.0
          %1282 = vmatpush1.msra.mxu0 0.0
          %1283 = vmatprep.subr.mxu0 0.0
          %1284 = vmatpush1.msra.mxu0 0.0
          %1285 = vmatprep.subr.mxu0 0.0
          %1286 = vmatpush1.msra.mxu0 0.0
          %1287 = vmatprep.subr.mxu0 0.0
          %1288 = vmatpush1.msra.mxu0 0.0
          %1289 = vmatprep.subr.mxu0 0.0
          %1290 = vmatpush1.msra.mxu0 0.0
          %1291 = vmatprep.subr.mxu0 0.0
          %1292 = vmatpush1.msra.mxu0 0.0
          %1293 = vmatprep.subr.mxu0 0.0
          %1294 = vmatpush1.msra.mxu0 0.0
          %1295 = vmatprep.subr.mxu0 0.0
          %1296 = vmatpush1.msra.mxu0 0.0
          %1297 = vmatprep.subr.mxu0 0.0
          %1298 = vmatpush1.msra.mxu0 0.0
          %1299 = vmatprep.subr.mxu0 0.0
          %1300 = vmatpush1.msra.mxu0 0.0
          %1301 = vmatprep.subr.mxu0 0.0
          %1302 = vmatpush1.msra.mxu0 %v1273
          %1303 = vmatprep.subr.mxu0 0.0
          %1304 = vmatpush1.msra.mxu0 %v1186
          %1305 = vmatprep.subr.mxu0 0.0
          %1306 = vmatpush1.msra.mxu0 %v1185
          %1307 = vmatprep.subr.mxu0 0.0
          %1308 = vmatpush2.msra.mxu0 0.0
          %1309 = vmatprep.subr.mxu0 0.0
          %1310 = vmatpush2.msra.mxu0 0.0
          %1311 = vmatprep.subr.mxu0 0.0
          %1312 = vmatpush2.msra.mxu0 0.0
          %1313 = vmatprep.subr.mxu0 0.0
          %1314 = vmatpush2.msra.mxu0 0.0
          %1315 = vmatprep.subr.mxu0 0.0
          %1316 = vmatpush2.msra.mxu0 0.0
          %1317 = vmatprep.subr.mxu0 0.0
          %1318 = vmatpush2.msra.mxu0 0.0
          %1319 = vmatprep.subr.mxu0 0.0
          %1320 = vmatpush2.msra.mxu0 0.0
          %1321 = vmatprep.subr.mxu0 0.0
          %1322 = vmatpush2.msra.mxu0 0.0
          %1323 = vmatprep.subr.mxu0 0.0
          %1324 = vmatpush2.msra.mxu0 0.0
          %1325 = vmatprep.subr.mxu0 0.0
          %1326 = vmatpush2.msra.mxu0 0.0
          %1327 = vmatprep.subr.mxu0 0.0
          %1328 = vmatpush2.msra.mxu0 0.0
          %1329 = vmatprep.subr.mxu0 0.0
          %1330 = vmatpush2.msra.mxu0 0.0
          %1331 = vmatprep.subr.mxu0 0.0
          %1332 = vmatpush2.msra.mxu0 0.0
          %1333 = vmatprep.subr.mxu0 0.0
          %1334 = vmatpush2.msra.mxu0 0.0
          %1335 = vmatprep.subr.mxu0 0.0
          %1336 = vmatpush2.msra.mxu0 0.0
          %1337 = vmatprep.subr.mxu0 0.0
          %1338 = vmatpush2.msra.mxu0 0.0
          %1339 = vmatprep.mubr.f32.mxu0 0.0
          %1340 = vmatmul.mubr.f32.gmra.mxu0 %v1269
          %v1341 = vpop.f32.mrf.mxu0
          %v1342 = vadd.f32 %v1264, %v1341
          %v1343 = vpop.f32.mrf.mxu0
          %1344 = vdwg.mxu0
          %v1345 = vld [vmem:[%s5] sm:$0xff]
          %v1346 = vld [vmem:[%s25] sm:$0x7]
          %v1348 = vsel %vm1182, %v1345, 0
          %v1351 = vsel %vm1193, %v1346, 0
          %1353 = vmatprep.subr.mxu0 0.0
          %1354 = vmatpush1.msra.mxu0 0.0
          %1355 = vmatprep.subr.mxu0 0.0
          %1356 = vmatpush1.msra.mxu0 0.0
          %1357 = vmatprep.subr.mxu0 0.0
          %1358 = vmatpush1.msra.mxu0 0.0
          %1359 = vmatprep.subr.mxu0 0.0
          %1360 = vmatpush1.msra.mxu0 0.0
          %1361 = vmatprep.subr.mxu0 0.0
          %1362 = vmatpush1.msra.mxu0 0.0
          %1363 = vmatprep.subr.mxu0 0.0
          %1364 = vmatpush1.msra.mxu0 0.0
          %1365 = vmatprep.subr.mxu0 0.0
          %1366 = vmatpush1.msra.mxu0 0.0
          %1367 = vmatprep.subr.mxu0 0.0
          %1368 = vmatpush1.msra.mxu0 0.0
          %1369 = vmatprep.subr.mxu0 0.0
          %1370 = vmatpush1.msra.mxu0 0.0
          %1371 = vmatprep.subr.mxu0 0.0
          %1372 = vmatpush1.msra.mxu0 0.0
          %1373 = vmatprep.subr.mxu0 0.0
          %1374 = vmatpush1.msra.mxu0 0.0
          %1375 = vmatprep.subr.mxu0 0.0
          %1376 = vmatpush1.msra.mxu0 0.0
          %1377 = vmatprep.subr.mxu0 0.0
          %1378 = vmatpush1.msra.mxu0 0.0
          %1379 = vmatprep.subr.mxu0 0.0
          %1380 = vmatpush1.msra.mxu0 0.0
          %1381 = vmatprep.subr.mxu0 0.0
          %1382 = vmatpush1.msra.mxu0 0.0
          %1383 = vmatprep.subr.mxu0 0.0
          %1384 = vmatpush1.msra.mxu0 %v1351
          %1385 = vmatprep.subr.mxu0 0.0
          %1386 = vmatpush2.msra.mxu0 0.0
          %1387 = vmatprep.subr.mxu0 0.0
          %1388 = vmatpush2.msra.mxu0 0.0
          %1389 = vmatprep.subr.mxu0 0.0
          %1390 = vmatpush2.msra.mxu0 0.0
          %1391 = vmatprep.subr.mxu0 0.0
          %1392 = vmatpush2.msra.mxu0 0.0
          %1393 = vmatprep.subr.mxu0 0.0
          %1394 = vmatpush2.msra.mxu0 0.0
          %1395 = vmatprep.subr.mxu0 0.0
          %1396 = vmatpush2.msra.mxu0 0.0
          %1397 = vmatprep.subr.mxu0 0.0
          %1398 = vmatpush2.msra.mxu0 0.0
          %1399 = vmatprep.subr.mxu0 0.0
          %1400 = vmatpush2.msra.mxu0 0.0
          %1401 = vmatprep.subr.mxu0 0.0
          %1402 = vmatpush2.msra.mxu0 0.0
          %1403 = vmatprep.subr.mxu0 0.0
          %1404 = vmatpush2.msra.mxu0 0.0
          %1405 = vmatprep.subr.mxu0 0.0
          %1406 = vmatpush2.msra.mxu0 0.0
          %1407 = vmatprep.subr.mxu0 0.0
          %1408 = vmatpush2.msra.mxu0 0.0
          %1409 = vmatprep.subr.mxu0 0.0
          %1410 = vmatpush2.msra.mxu0 0.0
          %1411 = vmatprep.subr.mxu0 0.0
          %1412 = vmatpush2.msra.mxu0 0.0
          %1413 = vmatprep.subr.mxu0 0.0
          %1414 = vmatpush2.msra.mxu0 0.0
          %1415 = vmatprep.subr.mxu0 0.0
          %1416 = vmatpush2.msra.mxu0 0.0
          %1417 = vmatprep.mubr.f32.mxu0 0.0
          %1418 = vmatmul.mubr.f32.gmra.mxu0 %v1348
          %v1419 = vpop.f32.mrf.mxu0
          %v1420 = vadd.f32 0.0, %v1419
          %v1421 = vpop.f32.mrf.mxu0
          %1422 = vdwg.mxu0
          %v1423 = vadd.f32 %v1342, %v1420
          %v1424 = vld [vmem:[%s27] sm:$0x1]
          %v1426 = vlaneseq
          %v1427 = vshrl.u32 %v1426, 7
          %v1428 = vsub.s32 0, %v1427
          %v1429 = vrot.slane %v1424, %v1428
          %v1431 = vadd.f32 %v1423, %v1429
          %vm1432 = vcmask 261120
          %1433 = vst.msk [vmem:[#allocation2] sm:$0xff] %vm1432, %v1431
        $region148: #{full_dpm_forward.3} parent=139 // pred_fallthru
          _
        %v1434 = vld [vmem:[#allocation2] sm:$0xff]
        %v1435 = vld [vmem:[#allocation3] sm:$0xff]
        %v1436 = vpack.c.bf16 %v1434, %v1434
        %v1437 = vld [vmem:[%s9] sm:$0xf]
        %v1438 = vld [vmem:[%s9 + $0x4] sm:$0xf]
        %v1439 = vld [vmem:[%s9 + $0x8] sm:$0xf]
        %v1440 = vld [vmem:[%s9 + $0xc] sm:$0xf]
        %v1441 = vld [vmem:[%s9 + $0x10] sm:$0xf]
        %v1442 = vld [vmem:[%s9 + $0x14] sm:$0xf]
        %v1443 = vld [vmem:[%s9 + $0x18] sm:$0xf]
        %v1444 = vld [vmem:[%s11] sm:$0xf]
        %v1445 = vld [vmem:[%s11 + $0x4] sm:$0xf]
        %v1446 = vld [vmem:[%s11 + $0x8] sm:$0xf]
        %v1447 = vld [vmem:[%s11 + $0xc] sm:$0xf]
        %v1448 = vld [vmem:[%s11 + $0x10] sm:$0xf]
        %v1449 = vld [vmem:[%s11 + $0x14] sm:$0xf]
        %v1450 = vld [vmem:[%s11 + $0x18] sm:$0xf]
        %v1451 = vunpack.c.l.bf16 %v1437
        %v1452 = vunpack.c.l.bf16 %v1438
        %v1453 = vunpack.c.l.bf16 %v1439
        %v1454 = vunpack.c.l.bf16 %v1440
        %v1455 = vunpack.c.l.bf16 %v1441
        %v1456 = vunpack.c.l.bf16 %v1442
        %v1457 = vunpack.c.l.bf16 %v1443
        %v1458 = vunpack.c.l.bf16 %v1444
        %v1459 = vunpack.c.l.bf16 %v1445
        %v1460 = vunpack.c.l.bf16 %v1446
        %v1461 = vunpack.c.l.bf16 %v1447
        %v1462 = vunpack.c.l.bf16 %v1448
        %v1463 = vunpack.c.l.bf16 %v1449
        %v1464 = vunpack.c.l.bf16 %v1450
        %vm1465 = vcmask 64512
        %v1467 = vsel %vm1465, %v1451, 0
        %v1470 = vsel %vm1465, %v1452, 0
        %v1473 = vsel %vm1465, %v1453, 0
        %v1476 = vsel %vm1465, %v1454, 0
        %v1479 = vsel %vm1465, %v1455, 0
        %v1482 = vsel %vm1465, %v1456, 0
        %v1485 = vsel %vm1465, %v1457, 0
        %1487 = vmatprep.subr.mxu0 0.0
        %1488 = vmatpush1.msra.mxu0 0.0
        %1489 = vmatprep.subr.mxu0 0.0
        %1490 = vmatpush1.msra.mxu0 0.0
        %1491 = vmatprep.subr.mxu0 0.0
        %1492 = vmatpush1.msra.mxu0 0.0
        %1493 = vmatprep.subr.mxu0 0.0
        %1494 = vmatpush1.msra.mxu0 0.0
        %1495 = vmatprep.subr.mxu0 0.0
        %1496 = vmatpush1.msra.mxu0 0.0
        %1497 = vmatprep.subr.mxu0 0.0
        %1498 = vmatpush1.msra.mxu0 0.0
        %1499 = vmatprep.subr.mxu0 0.0
        %1500 = vmatpush1.msra.mxu0 0.0
        %1501 = vmatprep.subr.mxu0 0.0
        %1502 = vmatpush1.msra.mxu0 0.0
        %1503 = vmatprep.subr.mxu0 0.0
        %1504 = vmatpush1.msra.mxu0 0.0
        %1505 = vmatprep.subr.mxu0 0.0
        %1506 = vmatpush1.msra.mxu0 0.0
        %1507 = vmatprep.subr.mxu0 0.0
        %1508 = vmatpush1.msra.mxu0 0.0
        %1509 = vmatprep.subr.mxu0 0.0
        %1510 = vmatpush1.msra.mxu0 0.0
        %1511 = vmatprep.subr.mxu0 0.0
        %1512 = vmatpush1.msra.mxu0 0.0
        %1513 = vmatprep.subr.mxu0 0.0
        %1514 = vmatpush1.msra.mxu0 0.0
        %1515 = vmatprep.subr.mxu0 0.0
        %1516 = vmatpush1.msra.mxu0 0.0
        %1517 = vmatprep.subr.mxu0 0.0
        %1518 = vmatpush1.msra.mxu0 %v1435
        %1519 = vmatprep.subr.mxu0 0.0
        %1520 = vmatpush2.msra.mxu0 0.0
        %1521 = vmatprep.subr.mxu0 0.0
        %1522 = vmatpush2.msra.mxu0 0.0
        %1523 = vmatprep.subr.mxu0 0.0
        %1524 = vmatpush2.msra.mxu0 0.0
        %1525 = vmatprep.subr.mxu0 0.0
        %1526 = vmatpush2.msra.mxu0 0.0
        %1527 = vmatprep.subr.mxu0 0.0
        %1528 = vmatpush2.msra.mxu0 0.0
        %1529 = vmatprep.subr.mxu0 0.0
        %1530 = vmatpush2.msra.mxu0 0.0
        %1531 = vmatprep.subr.mxu0 0.0
        %1532 = vmatpush2.msra.mxu0 0.0
        %1533 = vmatprep.subr.mxu0 0.0
        %1534 = vmatpush2.msra.mxu0 0.0
        %1535 = vmatprep.subr.mxu0 0.0
        %1536 = vmatpush2.msra.mxu0 0.0
        %1537 = vmatprep.subr.mxu0 0.0
        %1538 = vmatpush2.msra.mxu0 0.0
        %1539 = vmatprep.subr.mxu0 0.0
        %1540 = vmatpush2.msra.mxu0 0.0
        %1541 = vmatprep.subr.mxu0 0.0
        %1542 = vmatpush2.msra.mxu0 0.0
        %1543 = vmatprep.subr.mxu0 0.0
        %1544 = vmatpush2.msra.mxu0 0.0
        %1545 = vmatprep.subr.mxu0 0.0
        %1546 = vmatpush2.msra.mxu0 0.0
        %1547 = vmatprep.subr.mxu0 0.0
        %1548 = vmatpush2.msra.mxu0 0.0
        %1549 = vmatprep.subr.mxu0 0.0
        %1550 = vmatpush2.msra.mxu0 0.0
        %1551 = vmatprep.mubr.f32.mxu0 0.0
        %1552 = vmatmul.mubr.f32.gmra.mxu0 %v1467
        %v1553 = vpop.f32.mrf.mxu0
        %v1554 = vadd.f32 0.0, %v1553
        %v1555 = vpop.f32.mrf.mxu0
        %1556 = vmatprep.mubr.f32.mxu0 0.0
        %1557 = vmatmul.mubr.f32.gmra.mxu0 %v1470
        %v1558 = vpop.f32.mrf.mxu0
        %v1559 = vadd.f32 0.0, %v1558
        %v1560 = vpop.f32.mrf.mxu0
        %1561 = vmatprep.mubr.f32.mxu0 0.0
        %1562 = vmatmul.mubr.f32.gmra.mxu0 %v1473
        %v1563 = vpop.f32.mrf.mxu0
        %v1564 = vadd.f32 0.0, %v1563
        %v1565 = vpop.f32.mrf.mxu0
        %1566 = vmatprep.mubr.f32.mxu0 0.0
        %1567 = vmatmul.mubr.f32.gmra.mxu0 %v1476
        %v1568 = vpop.f32.mrf.mxu0
        %v1569 = vadd.f32 0.0, %v1568
        %v1570 = vpop.f32.mrf.mxu0
        %1571 = vmatprep.mubr.f32.mxu0 0.0
        %1572 = vmatmul.mubr.f32.gmra.mxu0 %v1479
        %v1573 = vpop.f32.mrf.mxu0
        %v1574 = vadd.f32 0.0, %v1573
        %v1575 = vpop.f32.mrf.mxu0
        %1576 = vmatprep.mubr.f32.mxu0 0.0
        %1577 = vmatmul.mubr.f32.gmra.mxu0 %v1482
        %v1578 = vpop.f32.mrf.mxu0
        %v1579 = vadd.f32 0.0, %v1578
        %v1580 = vpop.f32.mrf.mxu0
        %1581 = vmatprep.mubr.f32.mxu0 0.0
        %1582 = vmatmul.mubr.f32.gmra.mxu0 %v1485
        %v1583 = vpop.f32.mrf.mxu0
        %v1584 = vadd.f32 0.0, %v1583
        %v1585 = vpop.f32.mrf.mxu0
        %1586 = vdwg.mxu0
        %v1588 = vsel %vm1465, %v1458, 0
        %v1591 = vsel %vm1465, %v1459, 0
        %v1594 = vsel %vm1465, %v1460, 0
        %v1597 = vsel %vm1465, %v1461, 0
        %v1600 = vsel %vm1465, %v1462, 0
        %v1603 = vsel %vm1465, %v1463, 0
        %v1606 = vsel %vm1465, %v1464, 0
        %1608 = vmatprep.subr.mxu0 0.0
        %1609 = vmatpush1.msra.mxu0 0.0
        %1610 = vmatprep.subr.mxu0 0.0
        %1611 = vmatpush1.msra.mxu0 0.0
        %1612 = vmatprep.subr.mxu0 0.0
        %1613 = vmatpush1.msra.mxu0 0.0
        %1614 = vmatprep.subr.mxu0 0.0
        %1615 = vmatpush1.msra.mxu0 0.0
        %1616 = vmatprep.subr.mxu0 0.0
        %1617 = vmatpush1.msra.mxu0 0.0
        %1618 = vmatprep.subr.mxu0 0.0
        %1619 = vmatpush1.msra.mxu0 0.0
        %1620 = vmatprep.subr.mxu0 0.0
        %1621 = vmatpush1.msra.mxu0 0.0
        %1622 = vmatprep.subr.mxu0 0.0
        %1623 = vmatpush1.msra.mxu0 0.0
        %1624 = vmatprep.subr.mxu0 0.0
        %1625 = vmatpush1.msra.mxu0 0.0
        %1626 = vmatprep.subr.mxu0 0.0
        %1627 = vmatpush1.msra.mxu0 0.0
        %1628 = vmatprep.subr.mxu0 0.0
        %1629 = vmatpush1.msra.mxu0 0.0
        %1630 = vmatprep.subr.mxu0 0.0
        %1631 = vmatpush1.msra.mxu0 0.0
        %1632 = vmatprep.subr.mxu0 0.0
        %1633 = vmatpush1.msra.mxu0 0.0
        %1634 = vmatprep.subr.mxu0 0.0
        %1635 = vmatpush1.msra.mxu0 0.0
        %1636 = vmatprep.subr.mxu0 0.0
        %1637 = vmatpush1.msra.mxu0 0.0
        %1638 = vmatprep.subr.mxu0 0.0
        %1639 = vmatpush1.msra.mxu0 %v1435
        %1640 = vmatprep.subr.mxu0 0.0
        %1641 = vmatpush2.msra.mxu0 0.0
        %1642 = vmatprep.subr.mxu0 0.0
        %1643 = vmatpush2.msra.mxu0 0.0
        %1644 = vmatprep.subr.mxu0 0.0
        %1645 = vmatpush2.msra.mxu0 0.0
        %1646 = vmatprep.subr.mxu0 0.0
        %1647 = vmatpush2.msra.mxu0 0.0
        %1648 = vmatprep.subr.mxu0 0.0
        %1649 = vmatpush2.msra.mxu0 0.0
        %1650 = vmatprep.subr.mxu0 0.0
        %1651 = vmatpush2.msra.mxu0 0.0
        %1652 = vmatprep.subr.mxu0 0.0
        %1653 = vmatpush2.msra.mxu0 0.0
        %1654 = vmatprep.subr.mxu0 0.0
        %1655 = vmatpush2.msra.mxu0 0.0
        %1656 = vmatprep.subr.mxu0 0.0
        %1657 = vmatpush2.msra.mxu0 0.0
        %1658 = vmatprep.subr.mxu0 0.0
        %1659 = vmatpush2.msra.mxu0 0.0
        %1660 = vmatprep.subr.mxu0 0.0
        %1661 = vmatpush2.msra.mxu0 0.0
        %1662 = vmatprep.subr.mxu0 0.0
        %1663 = vmatpush2.msra.mxu0 0.0
        %1664 = vmatprep.subr.mxu0 0.0
        %1665 = vmatpush2.msra.mxu0 0.0
        %1666 = vmatprep.subr.mxu0 0.0
        %1667 = vmatpush2.msra.mxu0 0.0
        %1668 = vmatprep.subr.mxu0 0.0
        %1669 = vmatpush2.msra.mxu0 0.0
        %1670 = vmatprep.subr.mxu0 0.0
        %1671 = vmatpush2.msra.mxu0 0.0
        %1672 = vmatprep.mubr.f32.mxu0 0.0
        %1673 = vmatmul.mubr.f32.gmra.mxu0 %v1588
        %v1674 = vpop.f32.mrf.mxu0
        %v1675 = vadd.f32 0.0, %v1674
        %v1676 = vpop.f32.mrf.mxu0
        %1677 = vmatprep.mubr.f32.mxu0 0.0
        %1678 = vmatmul.mubr.f32.gmra.mxu0 %v1591
        %v1679 = vpop.f32.mrf.mxu0
        %v1680 = vadd.f32 0.0, %v1679
        %v1681 = vpop.f32.mrf.mxu0
        %1682 = vmatprep.mubr.f32.mxu0 0.0
        %1683 = vmatmul.mubr.f32.gmra.mxu0 %v1594
        %v1684 = vpop.f32.mrf.mxu0
        %v1685 = vadd.f32 0.0, %v1684
        %v1686 = vpop.f32.mrf.mxu0
        %1687 = vmatprep.mubr.f32.mxu0 0.0
        %1688 = vmatmul.mubr.f32.gmra.mxu0 %v1597
        %v1689 = vpop.f32.mrf.mxu0
        %v1690 = vadd.f32 0.0, %v1689
        %v1691 = vpop.f32.mrf.mxu0
        %1692 = vmatprep.mubr.f32.mxu0 0.0
        %1693 = vmatmul.mubr.f32.gmra.mxu0 %v1600
        %v1694 = vpop.f32.mrf.mxu0
        %v1695 = vadd.f32 0.0, %v1694
        %v1696 = vpop.f32.mrf.mxu0
        %1697 = vmatprep.mubr.f32.mxu0 0.0
        %1698 = vmatmul.mubr.f32.gmra.mxu0 %v1603
        %v1699 = vpop.f32.mrf.mxu0
        %v1700 = vadd.f32 0.0, %v1699
        %v1701 = vpop.f32.mrf.mxu0
        %1702 = vmatprep.mubr.f32.mxu0 0.0
        %1703 = vmatmul.mubr.f32.gmra.mxu0 %v1606
        %v1704 = vpop.f32.mrf.mxu0
        %v1705 = vadd.f32 0.0, %v1704
        %v1706 = vpop.f32.mrf.mxu0
        %1707 = vdwg.mxu0
        %v1708 = vsub.f32 %v1554, %v1675
        %v1709 = vsub.f32 %v1559, %v1680
        %v1710 = vsub.f32 %v1564, %v1685
        %v1711 = vsub.f32 %v1569, %v1690
        %v1712 = vsub.f32 %v1574, %v1695
        %v1713 = vsub.f32 %v1579, %v1700
        %v1714 = vsub.f32 %v1584, %v1705
        %v1715 = vmul.f32 %v1708, %v1708
        %v1716 = vmul.f32 %v1709, %v1709
        %v1717 = vmul.f32 %v1710, %v1710
        %v1718 = vmul.f32 %v1711, %v1711
        %v1719 = vmul.f32 %v1712, %v1712
        %v1720 = vmul.f32 %v1713, %v1713
        %v1721 = vmul.f32 %v1714, %v1714
        %vm1722 = vcmask 23552
        %v1723 = vsel %vm1722, %v1715, 0.0
        %1724 = vadd.xlane.f32.xlu0 %v1723
        %v1725 = vpop.xlane.xlu0 %1724
        %v1726 = vsel %vm1722, %v1716, 0.0
        %1727 = vadd.xlane.f32.xlu0 %v1726
        %v1728 = vpop.xlane.xlu0 %1727
        %v1729 = vsel %vm1722, %v1717, 0.0
        %1730 = vadd.xlane.f32.xlu0 %v1729
        %v1731 = vpop.xlane.xlu0 %1730
        %v1732 = vsel %vm1722, %v1718, 0.0
        %1733 = vadd.xlane.f32.xlu0 %v1732
        %v1734 = vpop.xlane.xlu0 %1733
        %v1735 = vsel %vm1722, %v1719, 0.0
        %1736 = vadd.xlane.f32.xlu0 %v1735
        %v1737 = vpop.xlane.xlu0 %1736
        %v1738 = vsel %vm1722, %v1720, 0.0
        %1739 = vadd.xlane.f32.xlu0 %v1738
        %v1740 = vpop.xlane.xlu0 %1739
        %v1741 = vsel %vm1722, %v1721, 0.0
        %1742 = vadd.xlane.f32.xlu0 %v1741
        %v1743 = vpop.xlane.xlu0 %1742
        %v1744 = vld [vmem:[%s1124] sm:$0xf]
        %v1745 = vld [vmem:[%s1124 + $0x4] sm:$0xf]
        %v1746 = vld [vmem:[%s1124 + $0x8] sm:$0xf]
        %v1747 = vld [vmem:[%s1124 + $0xc] sm:$0xf]
        %v1752 = vunpack.c.l.b16 %v1744
        %v1753 = vunpack.c.l.b16 %v1745
        %v1754 = vunpack.c.l.b16 %v1746
        %v1755 = vunpack.c.l.b16 %v1747
        %v1756 = vpack.c.b16 %v1753, %v1752
        %v1757 = vpack.c.b16 %v1755, %v1754
        %vm1760 = vcmask 261120
        %v1762 = vsel %vm1760, %v1436, 0
        %1764 = vmatprep.subr.bf16.mxu0 0
        %1765 = vmatpush1.bf16.msra.mxu0 0
        %1766 = vmatprep.subr.bf16.mxu0 0
        %1767 = vmatpush1.bf16.msra.mxu0 0
        %1768 = vmatprep.subr.bf16.mxu0 0
        %1769 = vmatpush1.bf16.msra.mxu0 0
        %1770 = vmatprep.subr.bf16.mxu0 0
        %1771 = vmatpush1.bf16.msra.mxu0 0
        %1772 = vmatprep.subr.bf16.mxu0 0
        %1773 = vmatpush1.bf16.msra.mxu0 0
        %1774 = vmatprep.subr.bf16.mxu0 0
        %1775 = vmatpush1.bf16.msra.mxu0 0
        %1776 = vmatprep.subr.bf16.mxu0 0
        %1777 = vmatpush1.bf16.msra.mxu0 %v1757
        %1778 = vmatprep.subr.bf16.mxu0 0
        %1779 = vmatpush1.bf16.msra.mxu0 %v1756
        %1780 = vmatprep.subr.bf16.mxu0 0
        %1781 = vmatpush2.bf16.msra.mxu0 0
        %1782 = vmatprep.subr.bf16.mxu0 0
        %1783 = vmatpush2.bf16.msra.mxu0 0
        %1784 = vmatprep.subr.bf16.mxu0 0
        %1785 = vmatpush2.bf16.msra.mxu0 0
        %1786 = vmatprep.subr.bf16.mxu0 0
        %1787 = vmatpush2.bf16.msra.mxu0 0
        %1788 = vmatprep.subr.bf16.mxu0 0
        %1789 = vmatpush2.bf16.msra.mxu0 0
        %1790 = vmatprep.subr.bf16.mxu0 0
        %1791 = vmatpush2.bf16.msra.mxu0 0
        %1792 = vmatprep.subr.bf16.mxu0 0
        %1793 = vmatpush2.bf16.msra.mxu0 0
        %1794 = vmatprep.subr.bf16.mxu0 0
        %1795 = vmatpush2.bf16.msra.mxu0 0
        %1796 = vmatprep.mubr.bf16.mxu0 0
        %1797 = vmatmul.mubr.bf16.gmra.mxu0 %v1762
        %v1798 = vpop.f32.mrf.mxu0
        %v1799 = vadd.f32 0.0, %v1798
        %v1800 = vpop.f32.mrf.mxu0
        %v1801 = vpop.f32.mrf.mxu0
        %v1802 = vpop.f32.mrf.mxu0
        %1803 = vdwg.mxu0
        %v1804 = vld [vmem:[%s1129] sm:$0xf]
        %v1805 = vld [vmem:[%s1129 + $0x4] sm:$0xf]
        %v1806 = vld [vmem:[%s1129 + $0x8] sm:$0xf]
        %v1807 = vld [vmem:[%s1129 + $0xc] sm:$0xf]
        %v1812 = vunpack.c.l.b16 %v1804
        %v1813 = vunpack.c.l.b16 %v1805
        %v1814 = vunpack.c.l.b16 %v1806
        %v1815 = vunpack.c.l.b16 %v1807
        %v1816 = vpack.c.b16 %v1813, %v1812
        %v1817 = vpack.c.b16 %v1815, %v1814
        %1820 = vmatprep.subr.bf16.mxu0 0
        %1821 = vmatpush1.bf16.msra.mxu0 0
        %1822 = vmatprep.subr.bf16.mxu0 0
        %1823 = vmatpush1.bf16.msra.mxu0 0
        %1824 = vmatprep.subr.bf16.mxu0 0
        %1825 = vmatpush1.bf16.msra.mxu0 0
        %1826 = vmatprep.subr.bf16.mxu0 0
        %1827 = vmatpush1.bf16.msra.mxu0 0
        %1828 = vmatprep.subr.bf16.mxu0 0
        %1829 = vmatpush1.bf16.msra.mxu0 0
        %1830 = vmatprep.subr.bf16.mxu0 0
        %1831 = vmatpush1.bf16.msra.mxu0 0
        %1832 = vmatprep.subr.bf16.mxu0 0
        %1833 = vmatpush1.bf16.msra.mxu0 %v1817
        %1834 = vmatprep.subr.bf16.mxu0 0
        %1835 = vmatpush1.bf16.msra.mxu0 %v1816
        %1836 = vmatprep.subr.bf16.mxu0 0
        %1837 = vmatpush2.bf16.msra.mxu0 0
        %1838 = vmatprep.subr.bf16.mxu0 0
        %1839 = vmatpush2.bf16.msra.mxu0 0
        %1840 = vmatprep.subr.bf16.mxu0 0
        %1841 = vmatpush2.bf16.msra.mxu0 0
        %1842 = vmatprep.subr.bf16.mxu0 0
        %1843 = vmatpush2.bf16.msra.mxu0 0
        %1844 = vmatprep.subr.bf16.mxu0 0
        %1845 = vmatpush2.bf16.msra.mxu0 0
        %1846 = vmatprep.subr.bf16.mxu0 0
        %1847 = vmatpush2.bf16.msra.mxu0 0
        %1848 = vmatprep.subr.bf16.mxu0 0
        %1849 = vmatpush2.bf16.msra.mxu0 0
        %1850 = vmatprep.subr.bf16.mxu0 0
        %1851 = vmatpush2.bf16.msra.mxu0 0
        %1852 = vmatprep.mubr.bf16.mxu0 0
        %1853 = vmatmul.mubr.bf16.gmra.mxu0 %v1762
        %v1854 = vpop.f32.mrf.mxu0
        %v1855 = vadd.f32 0.0, %v1854
        %v1856 = vpop.f32.mrf.mxu0
        %v1857 = vpop.f32.mrf.mxu0
        %v1858 = vpop.f32.mrf.mxu0
        %1859 = vdwg.mxu0
        %v1860 = vpack.c.bf16 %v1799, %v1799
        %v1861 = vpack.c.bf16 %v1855, %v1855
        %v1869 = vunpack.c.l.b16 %v1444
        %v1870 = vunpack.c.l.b16 %v1445
        %v1871 = vunpack.c.l.b16 %v1446
        %v1872 = vunpack.c.l.b16 %v1447
        %v1873 = vunpack.c.l.b16 %v1448
        %v1874 = vunpack.c.l.b16 %v1449
        %v1875 = vunpack.c.l.b16 %v1450
        %v1876 = vpack.c.b16 %v1870, %v1869
        %v1877 = vpack.c.b16 %v1872, %v1871
        %v1878 = vpack.c.b16 %v1874, %v1873
        %v1879 = vpack.c.b16 %v1875, %v1875
        %v1881 = vsel %vm1465, %v1876, 0
        %v1884 = vsel %vm1465, %v1877, 0
        %v1887 = vsel %vm1465, %v1878, 0
        %v1890 = vsel %vm1465, %v1879, 0
        %vm1892 = vcmask 1043456
        %v1894 = vsel %vm1892, %v1861, 0
        %1896 = vmatprep.subr.bf16.mxu0 0
        %1897 = vmatpush1.bf16.msra.mxu0 0
        %1898 = vmatprep.subr.bf16.mxu0 0
        %1899 = vmatpush1.bf16.msra.mxu0 0
        %1900 = vmatprep.subr.bf16.mxu0 0
        %1901 = vmatpush1.bf16.msra.mxu0 0
        %1902 = vmatprep.subr.bf16.mxu0 0
        %1903 = vmatpush1.bf16.msra.mxu0 0
        %1904 = vmatprep.subr.bf16.mxu0 0
        %1905 = vmatpush1.bf16.msra.mxu0 0
        %1906 = vmatprep.subr.bf16.mxu0 0
        %1907 = vmatpush1.bf16.msra.mxu0 0
        %1908 = vmatprep.subr.bf16.mxu0 0
        %1909 = vmatpush1.bf16.msra.mxu0 0
        %1910 = vmatprep.subr.bf16.mxu0 0
        %1911 = vmatpush1.bf16.msra.mxu0 %v1894
        %1912 = vmatprep.subr.bf16.mxu0 0
        %1913 = vmatpush2.bf16.msra.mxu0 0
        %1914 = vmatprep.subr.bf16.mxu0 0
        %1915 = vmatpush2.bf16.msra.mxu0 0
        %1916 = vmatprep.subr.bf16.mxu0 0
        %1917 = vmatpush2.bf16.msra.mxu0 0
        %1918 = vmatprep.subr.bf16.mxu0 0
        %1919 = vmatpush2.bf16.msra.mxu0 0
        %1920 = vmatprep.subr.bf16.mxu0 0
        %1921 = vmatpush2.bf16.msra.mxu0 0
        %1922 = vmatprep.subr.bf16.mxu0 0
        %1923 = vmatpush2.bf16.msra.mxu0 0
        %1924 = vmatprep.subr.bf16.mxu0 0
        %1925 = vmatpush2.bf16.msra.mxu0 0
        %1926 = vmatprep.subr.bf16.mxu0 0
        %1927 = vmatpush2.bf16.msra.mxu0 0
        %1928 = vmatprep.mubr.bf16.mxu0 0
        %1929 = vmatmul.mubr.bf16.gmra.mxu0 %v1881
        %v1930 = vpop.f32.mrf.mxu0
        %v1931 = vadd.f32 0.0, %v1930
        %v1932 = vpop.f32.mrf.mxu0
        %v1933 = vpop.f32.mrf.mxu0
        %v1934 = vadd.f32 0.0, %v1933
        %v1935 = vpop.f32.mrf.mxu0
        %1936 = vmatprep.mubr.bf16.mxu0 0
        %1937 = vmatmul.mubr.bf16.gmra.mxu0 %v1884
        %v1938 = vpop.f32.mrf.mxu0
        %v1939 = vadd.f32 0.0, %v1938
        %v1940 = vpop.f32.mrf.mxu0
        %v1941 = vpop.f32.mrf.mxu0
        %v1942 = vadd.f32 0.0, %v1941
        %v1943 = vpop.f32.mrf.mxu0
        %1944 = vmatprep.mubr.bf16.mxu0 0
        %1945 = vmatmul.mubr.bf16.gmra.mxu0 %v1887
        %v1946 = vpop.f32.mrf.mxu0
        %v1947 = vadd.f32 0.0, %v1946
        %v1948 = vpop.f32.mrf.mxu0
        %v1949 = vpop.f32.mrf.mxu0
        %v1950 = vadd.f32 0.0, %v1949
        %v1951 = vpop.f32.mrf.mxu0
        %1952 = vmatprep.mubr.bf16.mxu0 0
        %1953 = vmatmul.mubr.bf16.gmra.mxu0 %v1890
        %v1954 = vpop.f32.mrf.mxu0
        %v1955 = vadd.f32 0.0, %v1954
        %v1956 = vpop.f32.mrf.mxu0
        %v1957 = vpop.f32.mrf.mxu0
        %v1958 = vpop.f32.mrf.mxu0
        %1959 = vdwg.mxu0
        %v1967 = vunpack.c.l.b16 %v1437
        %v1968 = vunpack.c.l.b16 %v1438
        %v1969 = vunpack.c.l.b16 %v1439
        %v1970 = vunpack.c.l.b16 %v1440
        %v1971 = vunpack.c.l.b16 %v1441
        %v1972 = vunpack.c.l.b16 %v1442
        %v1973 = vunpack.c.l.b16 %v1443
        %v1974 = vpack.c.b16 %v1968, %v1967
        %v1975 = vpack.c.b16 %v1970, %v1969
        %v1976 = vpack.c.b16 %v1972, %v1971
        %v1977 = vpack.c.b16 %v1973, %v1973
        %v1979 = vsel %vm1465, %v1974, 0
        %v1982 = vsel %vm1465, %v1975, 0
        %v1985 = vsel %vm1465, %v1976, 0
        %v1988 = vsel %vm1465, %v1977, 0
        %v1991 = vsel %vm1892, %v1860, 0
        %1993 = vmatprep.subr.bf16.mxu0 0
        %1994 = vmatpush1.bf16.msra.mxu0 0
        %1995 = vmatprep.subr.bf16.mxu0 0
        %1996 = vmatpush1.bf16.msra.mxu0 0
        %1997 = vmatprep.subr.bf16.mxu0 0
        %1998 = vmatpush1.bf16.msra.mxu0 0
        %1999 = vmatprep.subr.bf16.mxu0 0
        %2000 = vmatpush1.bf16.msra.mxu0 0
        %2001 = vmatprep.subr.bf16.mxu0 0
        %2002 = vmatpush1.bf16.msra.mxu0 0
        %2003 = vmatprep.subr.bf16.mxu0 0
        %2004 = vmatpush1.bf16.msra.mxu0 0
        %2005 = vmatprep.subr.bf16.mxu0 0
        %2006 = vmatpush1.bf16.msra.mxu0 0
        %2007 = vmatprep.subr.bf16.mxu0 0
        %2008 = vmatpush1.bf16.msra.mxu0 %v1991
        %2009 = vmatprep.subr.bf16.mxu0 0
        %2010 = vmatpush2.bf16.msra.mxu0 0
        %2011 = vmatprep.subr.bf16.mxu0 0
        %2012 = vmatpush2.bf16.msra.mxu0 0
        %2013 = vmatprep.subr.bf16.mxu0 0
        %2014 = vmatpush2.bf16.msra.mxu0 0
        %2015 = vmatprep.subr.bf16.mxu0 0
        %2016 = vmatpush2.bf16.msra.mxu0 0
        %2017 = vmatprep.subr.bf16.mxu0 0
        %2018 = vmatpush2.bf16.msra.mxu0 0
        %2019 = vmatprep.subr.bf16.mxu0 0
        %2020 = vmatpush2.bf16.msra.mxu0 0
        %2021 = vmatprep.subr.bf16.mxu0 0
        %2022 = vmatpush2.bf16.msra.mxu0 0
        %2023 = vmatprep.subr.bf16.mxu0 0
        %2024 = vmatpush2.bf16.msra.mxu0 0
        %2025 = vmatprep.mubr.bf16.mxu0 0
        %2026 = vmatmul.mubr.bf16.gmra.mxu0 %v1979
        %v2027 = vpop.f32.mrf.mxu0
        %v2028 = vadd.f32 %v1931, %v2027
        %v2029 = vpop.f32.mrf.mxu0
        %v2030 = vpop.f32.mrf.mxu0
        %v2031 = vadd.f32 %v1934, %v2030
        %v2032 = vpop.f32.mrf.mxu0
        %2033 = vmatprep.mubr.bf16.mxu0 0
        %2034 = vmatmul.mubr.bf16.gmra.mxu0 %v1982
        %v2035 = vpop.f32.mrf.mxu0
        %v2036 = vadd.f32 %v1939, %v2035
        %v2037 = vpop.f32.mrf.mxu0
        %v2038 = vpop.f32.mrf.mxu0
        %v2039 = vadd.f32 %v1942, %v2038
        %v2040 = vpop.f32.mrf.mxu0
        %2041 = vmatprep.mubr.bf16.mxu0 0
        %2042 = vmatmul.mubr.bf16.gmra.mxu0 %v1985
        %v2043 = vpop.f32.mrf.mxu0
        %v2044 = vadd.f32 %v1947, %v2043
        %v2045 = vpop.f32.mrf.mxu0
        %v2046 = vpop.f32.mrf.mxu0
        %v2047 = vadd.f32 %v1950, %v2046
        %v2048 = vpop.f32.mrf.mxu0
        %2049 = vmatprep.mubr.bf16.mxu0 0
        %2050 = vmatmul.mubr.bf16.gmra.mxu0 %v1988
        %v2051 = vpop.f32.mrf.mxu0
        %v2052 = vadd.f32 %v1955, %v2051
        %v2053 = vpop.f32.mrf.mxu0
        %v2054 = vpop.f32.mrf.mxu0
        %v2055 = vpop.f32.mrf.mxu0
        %2056 = vdwg.mxu0
        %v2057 = vld [vmem:[%s1132] sm:$0x1]
        %v2059 = vlaneseq
        %v2060 = vshrl.u32 %v2059, 7
        %v2061 = vsub.s32 0, %v2060
        %v2062 = vrot.slane %v2057, %v2061
        %v2064 = vmul.f32 %v1725, %v2062
        %v2065 = vmul.f32 %v1728, %v2062
        %v2066 = vmul.f32 %v1731, %v2062
        %v2067 = vmul.f32 %v1734, %v2062
        %v2068 = vmul.f32 %v1737, %v2062
        %v2069 = vmul.f32 %v1740, %v2062
        %v2070 = vmul.f32 %v1743, %v2062
        %v2071 = vadd.f32 %v2028, %v2064
        %v2072 = vadd.f32 %v2031, %v2065
        %v2073 = vadd.f32 %v2036, %v2066
        %v2074 = vadd.f32 %v2039, %v2067
        %v2075 = vadd.f32 %v2044, %v2068
        %v2076 = vadd.f32 %v2047, %v2069
        %v2077 = vadd.f32 %v2052, %v2070
        %v2078 = vld [vmem:[%s1135] sm:$0x1]
        %v2080 = vlaneseq
        %v2081 = vshrl.u32 %v2080, 7
        %v2082 = vsub.s32 0, %v2081
        %v2083 = vrot.slane %v2078, %v2082
        %v2085 = vadd.f32 %v2071, %v2083
        %v2086 = vadd.f32 %v2072, %v2083
        %v2087 = vadd.f32 %v2073, %v2083
        %v2088 = vadd.f32 %v2074, %v2083
        %v2089 = vadd.f32 %v2075, %v2083
        %v2090 = vadd.f32 %v2076, %v2083
        %v2091 = vadd.f32 %v2077, %v2083
        %v2092 = vsub.f32 0.0, %v2085
        %v2093 = vsub.f32 0.0, %v2086
        %v2094 = vsub.f32 0.0, %v2087
        %v2095 = vsub.f32 0.0, %v2088
        %v2096 = vsub.f32 0.0, %v2089
        %v2097 = vsub.f32 0.0, %v2090
        %v2098 = vsub.f32 0.0, %v2091
        %v2099 = vmul.f32 %v2092, 1.442695
        %v2100 = vpow.pop %v2099
        %v2101 = vmul.f32 %v2093, 1.442695
        %v2102 = vpow.pop %v2101
        %v2103 = vmul.f32 %v2094, 1.442695
        %v2104 = vpow.pop %v2103
        %v2105 = vmul.f32 %v2095, 1.442695
        %v2106 = vpow.pop %v2105
        %v2107 = vmul.f32 %v2096, 1.442695
        %v2108 = vpow.pop %v2107
        %v2109 = vmul.f32 %v2097, 1.442695
        %v2110 = vpow.pop %v2109
        %v2111 = vmul.f32 %v2098, 1.442695
        %v2112 = vpow.pop %v2111
        %v2113 = vadd.f32 %v2100, 1.0
        %v2114 = vadd.f32 %v2102, 1.0
        %v2115 = vadd.f32 %v2104, 1.0
        %v2116 = vadd.f32 %v2106, 1.0
        %v2117 = vadd.f32 %v2108, 1.0
        %v2118 = vadd.f32 %v2110, 1.0
        %v2119 = vadd.f32 %v2112, 1.0
        %v2120 = vrcp.pop %v2113
        %v2121 = vrcp.pop %v2114
        %v2122 = vrcp.pop %v2115
        %v2123 = vrcp.pop %v2116
        %v2124 = vrcp.pop %v2117
        %v2125 = vrcp.pop %v2118
        %v2126 = vrcp.pop %v2119
        %v2127 = vmul.f32 %v2085, %v2120
        %v2128 = vmul.f32 %v2086, %v2121
        %v2129 = vmul.f32 %v2087, %v2122
        %v2130 = vmul.f32 %v2088, %v2123
        %v2131 = vmul.f32 %v2089, %v2124
        %v2132 = vmul.f32 %v2090, %v2125
        %v2133 = vmul.f32 %v2091, %v2126
        %v2134 = vpack.c.bf16 %v2128, %v2127
        %v2135 = vpack.c.bf16 %v2130, %v2129
        %v2136 = vpack.c.bf16 %v2132, %v2131
        %v2137 = vpack.c.bf16 %v2133, %v2133
        %v2138 = vld [vmem:[%s1140] sm:$0xf]
        %v2139 = vld [vmem:[%s1140 + $0x4] sm:$0xf]
        %v2140 = vld [vmem:[%s1140 + $0x8] sm:$0xf]
        %v2141 = vld [vmem:[%s1140 + $0xc] sm:$0xf]
        %v2142 = vld [vmem:[%s1143] sm:$0x1]
        %v2144 = vlaneseq
        %v2145 = vshrl.u32 %v2144, 7
        %v2146 = vsub.s32 0, %v2145
        %v2147 = vrot.slane %v2142, %v2146
        %v2153 = vunpack.c.l.b16 %v2138
        %v2154 = vunpack.c.l.b16 %v2139
        %v2155 = vunpack.c.l.b16 %v2140
        %v2156 = vunpack.c.l.b16 %v2141
        %v2157 = vpack.c.b16 %v2154, %v2153
        %v2158 = vpack.c.b16 %v2156, %v2155
        %v2162 = vsel %vm1760, %v2134, 0
        %v2165 = vsel %vm1760, %v2135, 0
        %v2168 = vsel %vm1760, %v2136, 0
        %v2171 = vsel %vm1760, %v2137, 0
        %2173 = vmatprep.subr.bf16.mxu0 0
        %2174 = vmatpush1.bf16.msra.mxu0 0
        %2175 = vmatprep.subr.bf16.mxu0 0
        %2176 = vmatpush1.bf16.msra.mxu0 0
        %2177 = vmatprep.subr.bf16.mxu0 0
        %2178 = vmatpush1.bf16.msra.mxu0 0
        %2179 = vmatprep.subr.bf16.mxu0 0
        %2180 = vmatpush1.bf16.msra.mxu0 0
        %2181 = vmatprep.subr.bf16.mxu0 0
        %2182 = vmatpush1.bf16.msra.mxu0 0
        %2183 = vmatprep.subr.bf16.mxu0 0
        %2184 = vmatpush1.bf16.msra.mxu0 0
        %2185 = vmatprep.subr.bf16.mxu0 0
        %2186 = vmatpush1.bf16.msra.mxu0 %v2158
        %2187 = vmatprep.subr.bf16.mxu0 0
        %2188 = vmatpush1.bf16.msra.mxu0 %v2157
        %2189 = vmatprep.subr.bf16.mxu0 0
        %2190 = vmatpush2.bf16.msra.mxu0 0
        %2191 = vmatprep.subr.bf16.mxu0 0
        %2192 = vmatpush2.bf16.msra.mxu0 0
        %2193 = vmatprep.subr.bf16.mxu0 0
        %2194 = vmatpush2.bf16.msra.mxu0 0
        %2195 = vmatprep.subr.bf16.mxu0 0
        %2196 = vmatpush2.bf16.msra.mxu0 0
        %2197 = vmatprep.subr.bf16.mxu0 0
        %2198 = vmatpush2.bf16.msra.mxu0 0
        %2199 = vmatprep.subr.bf16.mxu0 0
        %2200 = vmatpush2.bf16.msra.mxu0 0
        %2201 = vmatprep.subr.bf16.mxu0 0
        %2202 = vmatpush2.bf16.msra.mxu0 0
        %2203 = vmatprep.subr.bf16.mxu0 0
        %2204 = vmatpush2.bf16.msra.mxu0 0
        %2205 = vmatprep.mubr.bf16.mxu0 0
        %2206 = vmatmul.mubr.bf16.gmra.mxu0 %v2162
        %v2207 = vpop.f32.mrf.mxu0
        %v2208 = vadd.f32 %v2147, %v2207
        %v2209 = vpop.f32.mrf.mxu0
        %v2210 = vpop.f32.mrf.mxu0
        %v2211 = vadd.f32 %v2147, %v2210
        %v2212 = vpop.f32.mrf.mxu0
        %2213 = vmatprep.mubr.bf16.mxu0 0
        %2214 = vmatmul.mubr.bf16.gmra.mxu0 %v2165
        %v2215 = vpop.f32.mrf.mxu0
        %v2216 = vadd.f32 %v2147, %v2215
        %v2217 = vpop.f32.mrf.mxu0
        %v2218 = vpop.f32.mrf.mxu0
        %v2219 = vadd.f32 %v2147, %v2218
        %v2220 = vpop.f32.mrf.mxu0
        %2221 = vmatprep.mubr.bf16.mxu0 0
        %2222 = vmatmul.mubr.bf16.gmra.mxu0 %v2168
        %v2223 = vpop.f32.mrf.mxu0
        %v2224 = vadd.f32 %v2147, %v2223
        %v2225 = vpop.f32.mrf.mxu0
        %v2226 = vpop.f32.mrf.mxu0
        %v2227 = vadd.f32 %v2147, %v2226
        %v2228 = vpop.f32.mrf.mxu0
        %2229 = vmatprep.mubr.bf16.mxu0 0
        %2230 = vmatmul.mubr.bf16.gmra.mxu0 %v2171
        %v2231 = vpop.f32.mrf.mxu0
        %v2232 = vadd.f32 %v2147, %v2231
        %v2233 = vpop.f32.mrf.mxu0
        %v2234 = vpop.f32.mrf.mxu0
        %v2235 = vpop.f32.mrf.mxu0
        %2236 = vdwg.mxu0
        %v2237 = vsub.f32 0.0, %v2208
        %v2238 = vsub.f32 0.0, %v2211
        %v2239 = vsub.f32 0.0, %v2216
        %v2240 = vsub.f32 0.0, %v2219
        %v2241 = vsub.f32 0.0, %v2224
        %v2242 = vsub.f32 0.0, %v2227
        %v2243 = vsub.f32 0.0, %v2232
        %v2244 = vmul.f32 %v2237, 1.442695
        %v2245 = vpow.pop %v2244
        %v2246 = vmul.f32 %v2238, 1.442695
        %v2247 = vpow.pop %v2246
        %v2248 = vmul.f32 %v2239, 1.442695
        %v2249 = vpow.pop %v2248
        %v2250 = vmul.f32 %v2240, 1.442695
        %v2251 = vpow.pop %v2250
        %v2252 = vmul.f32 %v2241, 1.442695
        %v2253 = vpow.pop %v2252
        %v2254 = vmul.f32 %v2242, 1.442695
        %v2255 = vpow.pop %v2254
        %v2256 = vmul.f32 %v2243, 1.442695
        %v2257 = vpow.pop %v2256
        %v2258 = vadd.f32 %v2245, 1.0
        %v2259 = vadd.f32 %v2247, 1.0
        %v2260 = vadd.f32 %v2249, 1.0
        %v2261 = vadd.f32 %v2251, 1.0
        %v2262 = vadd.f32 %v2253, 1.0
        %v2263 = vadd.f32 %v2255, 1.0
        %v2264 = vadd.f32 %v2257, 1.0
        %v2265 = vrcp.pop %v2258
        %v2266 = vrcp.pop %v2259
        %v2267 = vrcp.pop %v2260
        %v2268 = vrcp.pop %v2261
        %v2269 = vrcp.pop %v2262
        %v2270 = vrcp.pop %v2263
        %v2271 = vrcp.pop %v2264
        %v2272 = vmul.f32 %v2208, %v2265
        %v2273 = vmul.f32 %v2211, %v2266
        %v2274 = vmul.f32 %v2216, %v2267
        %v2275 = vmul.f32 %v2219, %v2268
        %v2276 = vmul.f32 %v2224, %v2269
        %v2277 = vmul.f32 %v2227, %v2270
        %v2278 = vmul.f32 %v2232, %v2271
        %v2279 = vpack.c.bf16 %v2273, %v2272
        %v2280 = vpack.c.bf16 %v2275, %v2274
        %v2281 = vpack.c.bf16 %v2277, %v2276
        %v2282 = vpack.c.bf16 %v2278, %v2278
        %v2283 = vld [vmem:[%s1148] sm:$0xf]
        %v2284 = vld [vmem:[%s1148 + $0x4] sm:$0xf]
        %v2285 = vld [vmem:[%s1148 + $0x8] sm:$0xf]
        %v2286 = vld [vmem:[%s1148 + $0xc] sm:$0xf]
        %v2287 = vld [vmem:[%s1151] sm:$0x1]
        %v2289 = vlaneseq
        %v2290 = vshrl.u32 %v2289, 7
        %v2291 = vsub.s32 0, %v2290
        %v2292 = vrot.slane %v2287, %v2291
        %v2298 = vunpack.c.l.b16 %v2283
        %v2299 = vunpack.c.l.b16 %v2284
        %v2300 = vunpack.c.l.b16 %v2285
        %v2301 = vunpack.c.l.b16 %v2286
        %v2302 = vpack.c.b16 %v2299, %v2298
        %v2303 = vpack.c.b16 %v2301, %v2300
        %v2307 = vsel %vm1760, %v2279, 0
        %v2310 = vsel %vm1760, %v2280, 0
        %v2313 = vsel %vm1760, %v2281, 0
        %v2316 = vsel %vm1760, %v2282, 0
        %2318 = vmatprep.subr.bf16.mxu0 0
        %2319 = vmatpush1.bf16.msra.mxu0 0
        %2320 = vmatprep.subr.bf16.mxu0 0
        %2321 = vmatpush1.bf16.msra.mxu0 0
        %2322 = vmatprep.subr.bf16.mxu0 0
        %2323 = vmatpush1.bf16.msra.mxu0 0
        %2324 = vmatprep.subr.bf16.mxu0 0
        %2325 = vmatpush1.bf16.msra.mxu0 0
        %2326 = vmatprep.subr.bf16.mxu0 0
        %2327 = vmatpush1.bf16.msra.mxu0 0
        %2328 = vmatprep.subr.bf16.mxu0 0
        %2329 = vmatpush1.bf16.msra.mxu0 0
        %2330 = vmatprep.subr.bf16.mxu0 0
        %2331 = vmatpush1.bf16.msra.mxu0 %v2303
        %2332 = vmatprep.subr.bf16.mxu0 0
        %2333 = vmatpush1.bf16.msra.mxu0 %v2302
        %2334 = vmatprep.subr.bf16.mxu0 0
        %2335 = vmatpush2.bf16.msra.mxu0 0
        %2336 = vmatprep.subr.bf16.mxu0 0
        %2337 = vmatpush2.bf16.msra.mxu0 0
        %2338 = vmatprep.subr.bf16.mxu0 0
        %2339 = vmatpush2.bf16.msra.mxu0 0
        %2340 = vmatprep.subr.bf16.mxu0 0
        %2341 = vmatpush2.bf16.msra.mxu0 0
        %2342 = vmatprep.subr.bf16.mxu0 0
        %2343 = vmatpush2.bf16.msra.mxu0 0
        %2344 = vmatprep.subr.bf16.mxu0 0
        %2345 = vmatpush2.bf16.msra.mxu0 0
        %2346 = vmatprep.subr.bf16.mxu0 0
        %2347 = vmatpush2.bf16.msra.mxu0 0
        %2348 = vmatprep.subr.bf16.mxu0 0
        %2349 = vmatpush2.bf16.msra.mxu0 0
        %2350 = vmatprep.mubr.bf16.mxu0 0
        %2351 = vmatmul.mubr.bf16.gmra.mxu0 %v2307
        %v2352 = vpop.f32.mrf.mxu0
        %v2353 = vadd.f32 %v2292, %v2352
        %v2354 = vpop.f32.mrf.mxu0
        %v2355 = vpop.f32.mrf.mxu0
        %v2356 = vadd.f32 %v2292, %v2355
        %v2357 = vpop.f32.mrf.mxu0
        %2358 = vmatprep.mubr.bf16.mxu0 0
        %2359 = vmatmul.mubr.bf16.gmra.mxu0 %v2310
        %v2360 = vpop.f32.mrf.mxu0
        %v2361 = vadd.f32 %v2292, %v2360
        %v2362 = vpop.f32.mrf.mxu0
        %v2363 = vpop.f32.mrf.mxu0
        %v2364 = vadd.f32 %v2292, %v2363
        %v2365 = vpop.f32.mrf.mxu0
        %2366 = vmatprep.mubr.bf16.mxu0 0
        %2367 = vmatmul.mubr.bf16.gmra.mxu0 %v2313
        %v2368 = vpop.f32.mrf.mxu0
        %v2369 = vadd.f32 %v2292, %v2368
        %v2370 = vpop.f32.mrf.mxu0
        %v2371 = vpop.f32.mrf.mxu0
        %v2372 = vadd.f32 %v2292, %v2371
        %v2373 = vpop.f32.mrf.mxu0
        %2374 = vmatprep.mubr.bf16.mxu0 0
        %2375 = vmatmul.mubr.bf16.gmra.mxu0 %v2316
        %v2376 = vpop.f32.mrf.mxu0
        %v2377 = vadd.f32 %v2292, %v2376
        %v2378 = vpop.f32.mrf.mxu0
        %v2379 = vpop.f32.mrf.mxu0
        %v2380 = vpop.f32.mrf.mxu0
        %2381 = vdwg.mxu0
        %v2382 = vsub.f32 0.0, %v2353
        %v2383 = vsub.f32 0.0, %v2356
        %v2384 = vsub.f32 0.0, %v2361
        %v2385 = vsub.f32 0.0, %v2364
        %v2386 = vsub.f32 0.0, %v2369
        %v2387 = vsub.f32 0.0, %v2372
        %v2388 = vsub.f32 0.0, %v2377
        %v2389 = vmul.f32 %v2382, 1.442695
        %v2390 = vpow.pop %v2389
        %v2391 = vmul.f32 %v2383, 1.442695
        %v2392 = vpow.pop %v2391
        %v2393 = vmul.f32 %v2384, 1.442695
        %v2394 = vpow.pop %v2393
        %v2395 = vmul.f32 %v2385, 1.442695
        %v2396 = vpow.pop %v2395
        %v2397 = vmul.f32 %v2386, 1.442695
        %v2398 = vpow.pop %v2397
        %v2399 = vmul.f32 %v2387, 1.442695
        %v2400 = vpow.pop %v2399
        %v2401 = vmul.f32 %v2388, 1.442695
        %v2402 = vpow.pop %v2401
        %v2403 = vadd.f32 %v2390, 1.0
        %v2404 = vadd.f32 %v2392, 1.0
        %v2405 = vadd.f32 %v2394, 1.0
        %v2406 = vadd.f32 %v2396, 1.0
        %v2407 = vadd.f32 %v2398, 1.0
        %v2408 = vadd.f32 %v2400, 1.0
        %v2409 = vadd.f32 %v2402, 1.0
        %v2410 = vrcp.pop %v2403
        %v2411 = vrcp.pop %v2404
        %v2412 = vrcp.pop %v2405
        %v2413 = vrcp.pop %v2406
        %v2414 = vrcp.pop %v2407
        %v2415 = vrcp.pop %v2408
        %v2416 = vrcp.pop %v2409
        %v2417 = vmul.f32 %v2353, %v2410
        %v2418 = vmul.f32 %v2356, %v2411
        %v2419 = vmul.f32 %v2361, %v2412
        %v2420 = vmul.f32 %v2364, %v2413
        %v2421 = vmul.f32 %v2369, %v2414
        %v2422 = vmul.f32 %v2372, %v2415
        %v2423 = vmul.f32 %v2377, %v2416
        %v2424 = vld [vmem:[%s1154] sm:$0x1]
        %v2426 = vlaneseq
        %v2427 = vshrl.u32 %v2426, 7
        %v2428 = vsub.s32 0, %v2427
        %v2429 = vrot.slane %v2424, %v2428
        %v2431 = vmul.f32 %v2417, %v2429
        %v2432 = vmul.f32 %v2418, %v2429
        %v2433 = vmul.f32 %v2419, %v2429
        %v2434 = vmul.f32 %v2420, %v2429
        %v2435 = vmul.f32 %v2421, %v2429
        %v2436 = vmul.f32 %v2422, %v2429
        %v2437 = vmul.f32 %v2423, %v2429
        %v2438 = vsel %vm1760, %v2431, 0.0
        %2439 = vadd.xlane.f32.xlu0 %v2438
        %v2440 = vpop.xlane.xlu0 %2439
        %v2441 = vsel %vm1760, %v2432, 0.0
        %2442 = vadd.xlane.f32.xlu0 %v2441
        %v2443 = vpop.xlane.xlu0 %2442
        %v2444 = vsel %vm1760, %v2433, 0.0
        %2445 = vadd.xlane.f32.xlu0 %v2444
        %v2446 = vpop.xlane.xlu0 %2445
        %v2447 = vsel %vm1760, %v2434, 0.0
        %2448 = vadd.xlane.f32.xlu0 %v2447
        %v2449 = vpop.xlane.xlu0 %2448
        %v2450 = vsel %vm1760, %v2435, 0.0
        %2451 = vadd.xlane.f32.xlu0 %v2450
        %v2452 = vpop.xlane.xlu0 %2451
        %v2453 = vsel %vm1760, %v2436, 0.0
        %2454 = vadd.xlane.f32.xlu0 %v2453
        %v2455 = vpop.xlane.xlu0 %2454
        %v2456 = vsel %vm1760, %v2437, 0.0
        %2457 = vadd.xlane.f32.xlu0 %v2456
        %v2458 = vpop.xlane.xlu0 %2457
        %v2459 = vmul.f32 %v1708, %v2440
        %v2460 = vmul.f32 %v1709, %v2443
        %v2461 = vmul.f32 %v1710, %v2446
        %v2462 = vmul.f32 %v1711, %v2449
        %v2463 = vmul.f32 %v1712, %v2452
        %v2464 = vmul.f32 %v1713, %v2455
        %v2465 = vmul.f32 %v1714, %v2458
        %v2466 = vld [vmem:[%s15] sm:$0xff]
        %vm2467 = vcmask 457728
        %v2469 = vsel %vm2467, %v2466, 0
        %2471 = vmatprep.subr.mxu0 0.0
        %2472 = vmatpush1.msra.mxu0 0.0
        %2473 = vmatprep.subr.mxu0 0.0
        %2474 = vmatpush1.msra.mxu0 0.0
        %2475 = vmatprep.subr.mxu0 0.0
        %2476 = vmatpush1.msra.mxu0 0.0
        %2477 = vmatprep.subr.mxu0 0.0
        %2478 = vmatpush1.msra.mxu0 0.0
        %2479 = vmatprep.subr.mxu0 0.0
        %2480 = vmatpush1.msra.mxu0 0.0
        %2481 = vmatprep.subr.mxu0 0.0
        %2482 = vmatpush1.msra.mxu0 0.0
        %2483 = vmatprep.subr.mxu0 0.0
        %2484 = vmatpush1.msra.mxu0 0.0
        %2485 = vmatprep.subr.mxu0 0.0
        %2486 = vmatpush1.msra.mxu0 0.0
        %2487 = vmatprep.subr.mxu0 0.0
        %2488 = vmatpush1.msra.mxu0 0.0
        %2489 = vmatprep.subr.mxu0 0.0
        %2490 = vmatpush1.msra.mxu0 %v2465
        %2491 = vmatprep.subr.mxu0 0.0
        %2492 = vmatpush1.msra.mxu0 %v2464
        %2493 = vmatprep.subr.mxu0 0.0
        %2494 = vmatpush1.msra.mxu0 %v2463
        %2495 = vmatprep.subr.mxu0 0.0
        %2496 = vmatpush1.msra.mxu0 %v2462
        %2497 = vmatprep.subr.mxu0 0.0
        %2498 = vmatpush1.msra.mxu0 %v2461
        %2499 = vmatprep.subr.mxu0 0.0
        %2500 = vmatpush1.msra.mxu0 %v2460
        %2501 = vmatprep.subr.mxu0 0.0
        %2502 = vmatpush1.msra.mxu0 %v2459
        %2503 = vmatprep.subr.mxu0 0.0
        %2504 = vmatpush2.msra.mxu0 0.0
        %2505 = vmatprep.subr.mxu0 0.0
        %2506 = vmatpush2.msra.mxu0 0.0
        %2507 = vmatprep.subr.mxu0 0.0
        %2508 = vmatpush2.msra.mxu0 0.0
        %2509 = vmatprep.subr.mxu0 0.0
        %2510 = vmatpush2.msra.mxu0 0.0
        %2511 = vmatprep.subr.mxu0 0.0
        %2512 = vmatpush2.msra.mxu0 0.0
        %2513 = vmatprep.subr.mxu0 0.0
        %2514 = vmatpush2.msra.mxu0 0.0
        %2515 = vmatprep.subr.mxu0 0.0
        %2516 = vmatpush2.msra.mxu0 0.0
        %2517 = vmatprep.subr.mxu0 0.0
        %2518 = vmatpush2.msra.mxu0 0.0
        %2519 = vmatprep.subr.mxu0 0.0
        %2520 = vmatpush2.msra.mxu0 0.0
        %2521 = vmatprep.subr.mxu0 0.0
        %2522 = vmatpush2.msra.mxu0 0.0
        %2523 = vmatprep.subr.mxu0 0.0
        %2524 = vmatpush2.msra.mxu0 0.0
        %2525 = vmatprep.subr.mxu0 0.0
        %2526 = vmatpush2.msra.mxu0 0.0
        %2527 = vmatprep.subr.mxu0 0.0
        %2528 = vmatpush2.msra.mxu0 0.0
        %2529 = vmatprep.subr.mxu0 0.0
        %2530 = vmatpush2.msra.mxu0 0.0
        %2531 = vmatprep.subr.mxu0 0.0
        %2532 = vmatpush2.msra.mxu0 0.0
        %2533 = vmatprep.subr.mxu0 0.0
        %2534 = vmatpush2.msra.mxu0 0.0
        %2535 = vmatprep.mubr.f32.mxu0 0.0
        %2536 = vmatmul.mubr.f32.gmra.mxu0 %v2469
        %v2537 = vpop.f32.mrf.mxu0
        %v2538 = vadd.f32 0.0, %v2537
        %v2539 = vpop.f32.mrf.mxu0
        %2540 = vdwg.mxu0
        %v2541 = vadd.f32 %v1435, %v2538
        %2542 = vst.msk [vmem:[#allocation3] sm:$0xff] %vm1722, %v2541
        %v2543 = vld [vmem:[%s13] sm:$0xf]
        %v2545 = vsel %vm2467, %v2543, 0
        %v2547 = vsel %vm1892, %v2282, 0
        %2549 = vmatprep.subr.bf16.mxu0 0
        %2550 = vmatpush1.bf16.msra.mxu0 0
        %2551 = vmatprep.subr.bf16.mxu0 0
        %2552 = vmatpush1.bf16.msra.mxu0 0
        %2553 = vmatprep.subr.bf16.mxu0 0
        %2554 = vmatpush1.bf16.msra.mxu0 0
        %2555 = vmatprep.subr.bf16.mxu0 0
        %2556 = vmatpush1.bf16.msra.mxu0 0
        %2557 = vmatprep.subr.bf16.mxu0 0
        %2558 = vmatpush1.bf16.msra.mxu0 %v2547
        %2559 = vmatprep.subr.bf16.mxu0 0
        %2560 = vmatpush1.bf16.msra.mxu0 %v2281
        %2561 = vmatprep.subr.bf16.mxu0 0
        %2562 = vmatpush1.bf16.msra.mxu0 %v2280
        %2563 = vmatprep.subr.bf16.mxu0 0
        %2564 = vmatpush1.bf16.msra.mxu0 %v2279
        %2565 = vmatprep.subr.bf16.mxu0 0
        %2566 = vmatpush2.bf16.msra.mxu0 0
        %2567 = vmatprep.subr.bf16.mxu0 0
        %2568 = vmatpush2.bf16.msra.mxu0 0
        %2569 = vmatprep.subr.bf16.mxu0 0
        %2570 = vmatpush2.bf16.msra.mxu0 0
        %2571 = vmatprep.subr.bf16.mxu0 0
        %2572 = vmatpush2.bf16.msra.mxu0 0
        %2573 = vmatprep.subr.bf16.mxu0 0
        %2574 = vmatpush2.bf16.msra.mxu0 0
        %2575 = vmatprep.subr.bf16.mxu0 0
        %2576 = vmatpush2.bf16.msra.mxu0 0
        %2577 = vmatprep.subr.bf16.mxu0 0
        %2578 = vmatpush2.bf16.msra.mxu0 0
        %2579 = vmatprep.subr.bf16.mxu0 0
        %2580 = vmatpush2.bf16.msra.mxu0 0
        %2581 = vmatprep.mubr.bf16.mxu0 0
        %2582 = vmatmul.mubr.bf16.gmra.mxu0 %v2545
        %v2583 = vpop.f32.mrf.mxu0
        %v2584 = vadd.f32 0.0, %v2583
        %v2585 = vpop.f32.mrf.mxu0
        %v2586 = vpop.f32.mrf.mxu0
        %v2587 = vpop.f32.mrf.mxu0
        %2588 = vdwg.mxu0
        %v2589 = vld [vmem:[%s1159] sm:$0xf]
        %v2590 = vld [vmem:[%s1159 + $0x4] sm:$0xf]
        %v2591 = vld [vmem:[%s1159 + $0x8] sm:$0xf]
        %v2592 = vld [vmem:[%s1159 + $0xc] sm:$0xf]
        %v2593 = vpack.c.bf16 %v2584, %v2584
        %v2594 = vld [vmem:[%s1164] sm:$0xf]
        %v2595 = vld [vmem:[%s1164 + $0x4] sm:$0xf]
        %v2596 = vld [vmem:[%s1164 + $0x8] sm:$0xf]
        %v2597 = vld [vmem:[%s1164 + $0xc] sm:$0xf]
        %v2602 = vunpack.c.l.b16 %v2594
        %v2603 = vunpack.c.l.b16 %v2595
        %v2604 = vunpack.c.l.b16 %v2596
        %v2605 = vunpack.c.l.b16 %v2597
        %v2606 = vpack.c.b16 %v2603, %v2602
        %v2607 = vpack.c.b16 %v2605, %v2604
        %v2611 = vsel %vm1760, %v2593, 0
        %2613 = vmatprep.subr.bf16.mxu0 0
        %2614 = vmatpush1.bf16.msra.mxu0 0
        %2615 = vmatprep.subr.bf16.mxu0 0
        %2616 = vmatpush1.bf16.msra.mxu0 0
        %2617 = vmatprep.subr.bf16.mxu0 0
        %2618 = vmatpush1.bf16.msra.mxu0 0
        %2619 = vmatprep.subr.bf16.mxu0 0
        %2620 = vmatpush1.bf16.msra.mxu0 0
        %2621 = vmatprep.subr.bf16.mxu0 0
        %2622 = vmatpush1.bf16.msra.mxu0 0
        %2623 = vmatprep.subr.bf16.mxu0 0
        %2624 = vmatpush1.bf16.msra.mxu0 0
        %2625 = vmatprep.subr.bf16.mxu0 0
        %2626 = vmatpush1.bf16.msra.mxu0 %v2607
        %2627 = vmatprep.subr.bf16.mxu0 0
        %2628 = vmatpush1.bf16.msra.mxu0 %v2606
        %2629 = vmatprep.subr.bf16.mxu0 0
        %2630 = vmatpush2.bf16.msra.mxu0 0
        %2631 = vmatprep.subr.bf16.mxu0 0
        %2632 = vmatpush2.bf16.msra.mxu0 0
        %2633 = vmatprep.subr.bf16.mxu0 0
        %2634 = vmatpush2.bf16.msra.mxu0 0
        %2635 = vmatprep.subr.bf16.mxu0 0
        %2636 = vmatpush2.bf16.msra.mxu0 0
        %2637 = vmatprep.subr.bf16.mxu0 0
        %2638 = vmatpush2.bf16.msra.mxu0 0
        %2639 = vmatprep.subr.bf16.mxu0 0
        %2640 = vmatpush2.bf16.msra.mxu0 0
        %2641 = vmatprep.subr.bf16.mxu0 0
        %2642 = vmatpush2.bf16.msra.mxu0 0
        %2643 = vmatprep.subr.bf16.mxu0 0
        %2644 = vmatpush2.bf16.msra.mxu0 0
        %2645 = vmatprep.mubr.bf16.mxu0 0
        %2646 = vmatmul.mubr.bf16.gmra.mxu0 %v2611
        %v2647 = vpop.f32.mrf.mxu0
        %v2648 = vadd.f32 0.0, %v2647
        %v2649 = vpop.f32.mrf.mxu0
        %v2650 = vpop.f32.mrf.mxu0
        %v2651 = vpop.f32.mrf.mxu0
        %2652 = vdwg.mxu0
        %v2657 = vunpack.c.l.b16 %v2589
        %v2658 = vunpack.c.l.b16 %v2590
        %v2659 = vunpack.c.l.b16 %v2591
        %v2660 = vunpack.c.l.b16 %v2592
        %v2661 = vpack.c.b16 %v2658, %v2657
        %v2662 = vpack.c.b16 %v2660, %v2659
        %2665 = vmatprep.subr.bf16.mxu0 0
        %2666 = vmatpush1.bf16.msra.mxu0 0
        %2667 = vmatprep.subr.bf16.mxu0 0
        %2668 = vmatpush1.bf16.msra.mxu0 0
        %2669 = vmatprep.subr.bf16.mxu0 0
        %2670 = vmatpush1.bf16.msra.mxu0 0
        %2671 = vmatprep.subr.bf16.mxu0 0
        %2672 = vmatpush1.bf16.msra.mxu0 0
        %2673 = vmatprep.subr.bf16.mxu0 0
        %2674 = vmatpush1.bf16.msra.mxu0 0
        %2675 = vmatprep.subr.bf16.mxu0 0
        %2676 = vmatpush1.bf16.msra.mxu0 0
        %2677 = vmatprep.subr.bf16.mxu0 0
        %2678 = vmatpush1.bf16.msra.mxu0 %v2662
        %2679 = vmatprep.subr.bf16.mxu0 0
        %2680 = vmatpush1.bf16.msra.mxu0 %v2661
        %2681 = vmatprep.subr.bf16.mxu0 0
        %2682 = vmatpush2.bf16.msra.mxu0 0
        %2683 = vmatprep.subr.bf16.mxu0 0
        %2684 = vmatpush2.bf16.msra.mxu0 0
        %2685 = vmatprep.subr.bf16.mxu0 0
        %2686 = vmatpush2.bf16.msra.mxu0 0
        %2687 = vmatprep.subr.bf16.mxu0 0
        %2688 = vmatpush2.bf16.msra.mxu0 0
        %2689 = vmatprep.subr.bf16.mxu0 0
        %2690 = vmatpush2.bf16.msra.mxu0 0
        %2691 = vmatprep.subr.bf16.mxu0 0
        %2692 = vmatpush2.bf16.msra.mxu0 0
        %2693 = vmatprep.subr.bf16.mxu0 0
        %2694 = vmatpush2.bf16.msra.mxu0 0
        %2695 = vmatprep.subr.bf16.mxu0 0
        %2696 = vmatpush2.bf16.msra.mxu0 0
        %2697 = vmatprep.mubr.bf16.mxu0 0
        %2698 = vmatmul.mubr.bf16.gmra.mxu0 %v1762
        %v2699 = vpop.f32.mrf.mxu0
        %v2700 = vadd.f32 %v2648, %v2699
        %v2701 = vpop.f32.mrf.mxu0
        %v2702 = vpop.f32.mrf.mxu0
        %v2703 = vpop.f32.mrf.mxu0
        %2704 = vdwg.mxu0
        %v2705 = vld [vmem:[%s1167] sm:$0x1]
        %v2707 = vlaneseq
        %v2708 = vshrl.u32 %v2707, 7
        %v2709 = vsub.s32 0, %v2708
        %v2710 = vrot.slane %v2705, %v2709
        %v2712 = vadd.f32 %v2700, %v2710
        %v2713 = vsub.f32 0.0, %v2712
        %v2714 = vmul.f32 %v2713, 1.442695
        %v2715 = vpow.pop %v2714
        %v2716 = vadd.f32 %v2715, 1.0
        %v2717 = vrcp.pop %v2716
        %v2718 = vmul.f32 %v2712, %v2717
        %v2719 = vpack.c.bf16 %v2718, %v2718
        %v2720 = vld [vmem:[%s1172] sm:$0xf]
        %v2721 = vld [vmem:[%s1172 + $0x4] sm:$0xf]
        %v2722 = vld [vmem:[%s1172 + $0x8] sm:$0xf]
        %v2723 = vld [vmem:[%s1172 + $0xc] sm:$0xf]
        %v2724 = vld [vmem:[%s1175] sm:$0x1]
        %v2726 = vlaneseq
        %v2727 = vshrl.u32 %v2726, 7
        %v2728 = vsub.s32 0, %v2727
        %v2729 = vrot.slane %v2724, %v2728
        %v2735 = vunpack.c.l.b16 %v2720
        %v2736 = vunpack.c.l.b16 %v2721
        %v2737 = vunpack.c.l.b16 %v2722
        %v2738 = vunpack.c.l.b16 %v2723
        %v2739 = vpack.c.b16 %v2736, %v2735
        %v2740 = vpack.c.b16 %v2738, %v2737
        %v2744 = vsel %vm1760, %v2719, 0
        %2746 = vmatprep.subr.bf16.mxu0 0
        %2747 = vmatpush1.bf16.msra.mxu0 0
        %2748 = vmatprep.subr.bf16.mxu0 0
        %2749 = vmatpush1.bf16.msra.mxu0 0
        %2750 = vmatprep.subr.bf16.mxu0 0
        %2751 = vmatpush1.bf16.msra.mxu0 0
        %2752 = vmatprep.subr.bf16.mxu0 0
        %2753 = vmatpush1.bf16.msra.mxu0 0
        %2754 = vmatprep.subr.bf16.mxu0 0
        %2755 = vmatpush1.bf16.msra.mxu0 0
        %2756 = vmatprep.subr.bf16.mxu0 0
        %2757 = vmatpush1.bf16.msra.mxu0 0
        %2758 = vmatprep.subr.bf16.mxu0 0
        %2759 = vmatpush1.bf16.msra.mxu0 %v2740
        %2760 = vmatprep.subr.bf16.mxu0 0
        %2761 = vmatpush1.bf16.msra.mxu0 %v2739
        %2762 = vmatprep.subr.bf16.mxu0 0
        %2763 = vmatpush2.bf16.msra.mxu0 0
        %2764 = vmatprep.subr.bf16.mxu0 0
        %2765 = vmatpush2.bf16.msra.mxu0 0
        %2766 = vmatprep.subr.bf16.mxu0 0
        %2767 = vmatpush2.bf16.msra.mxu0 0
        %2768 = vmatprep.subr.bf16.mxu0 0
        %2769 = vmatpush2.bf16.msra.mxu0 0
        %2770 = vmatprep.subr.bf16.mxu0 0
        %2771 = vmatpush2.bf16.msra.mxu0 0
        %2772 = vmatprep.subr.bf16.mxu0 0
        %2773 = vmatpush2.bf16.msra.mxu0 0
        %2774 = vmatprep.subr.bf16.mxu0 0
        %2775 = vmatpush2.bf16.msra.mxu0 0
        %2776 = vmatprep.subr.bf16.mxu0 0
        %2777 = vmatpush2.bf16.msra.mxu0 0
        %2778 = vmatprep.mubr.bf16.mxu0 0
        %2779 = vmatmul.mubr.bf16.gmra.mxu0 %v2744
        %v2780 = vpop.f32.mrf.mxu0
        %v2781 = vadd.f32 %v2729, %v2780
        %v2782 = vpop.f32.mrf.mxu0
        %v2783 = vpop.f32.mrf.mxu0
        %v2784 = vpop.f32.mrf.mxu0
        %2785 = vdwg.mxu0
        %v2786 = vadd.f32 %v1434, %v2781
        %2787 = vst.msk [vmem:[#allocation2] sm:$0xff] %vm1760, %v2786
        %p2788 = scmp.eq.s32.totalorder %s78, 1
        // Predicated region
        $region149: #{full_dpm_forward.3} parent=139 // pred_check
          %p2789 = pneg %p2788
        $region150: #{full_dpm_forward.3} parent=139 // pred_check_branch
          %2791 = sbr.rel (%p2789) target = $region152
        $region151: #{full_dpm_forward.3} parent=139 // pred_region
          %s2792 = sld [smem:[#allocation4]]
          %s2793 = sld [smem:[#allocation4 + $0x1]]
          %s2794 = sld [smem:[#allocation4 + $0x2]]
          %v2795 = vld [vmem:[#allocation2] sm:$0xff]
          %v2796 = vpack.c.bf16 %v2795, %v2795
          %v2797 = vld [vmem:[%s29] sm:$0xf]
          %v2798 = vld [vmem:[%s29 + $0x4] sm:$0xf]
          %v2799 = vld [vmem:[%s29 + $0x8] sm:$0xf]
          %v2800 = vld [vmem:[%s29 + $0xc] sm:$0xf]
          %v2801 = vld [vmem:[%s31] sm:$0x1]
          %v2803 = vlaneseq
          %v2804 = vshrl.u32 %v2803, 7
          %v2805 = vsub.s32 0, %v2804
          %v2806 = vrot.slane %v2801, %v2805
          %v2812 = vunpack.c.l.b16 %v2797
          %v2813 = vunpack.c.l.b16 %v2798
          %v2814 = vunpack.c.l.b16 %v2799
          %v2815 = vunpack.c.l.b16 %v2800
          %v2816 = vpack.c.b16 %v2813, %v2812
          %v2817 = vpack.c.b16 %v2815, %v2814
          %v2821 = vsel %vm1760, %v2796, 0
          %2823 = vmatprep.subr.bf16.mxu0 0
          %2824 = vmatpush1.bf16.msra.mxu0 0
          %2825 = vmatprep.subr.bf16.mxu0 0
          %2826 = vmatpush1.bf16.msra.mxu0 0
          %2827 = vmatprep.subr.bf16.mxu0 0
          %2828 = vmatpush1.bf16.msra.mxu0 0
          %2829 = vmatprep.subr.bf16.mxu0 0
          %2830 = vmatpush1.bf16.msra.mxu0 0
          %2831 = vmatprep.subr.bf16.mxu0 0
          %2832 = vmatpush1.bf16.msra.mxu0 0
          %2833 = vmatprep.subr.bf16.mxu0 0
          %2834 = vmatpush1.bf16.msra.mxu0 0
          %2835 = vmatprep.subr.bf16.mxu0 0
          %2836 = vmatpush1.bf16.msra.mxu0 %v2817
          %2837 = vmatprep.subr.bf16.mxu0 0
          %2838 = vmatpush1.bf16.msra.mxu0 %v2816
          %2839 = vmatprep.subr.bf16.mxu0 0
          %2840 = vmatpush2.bf16.msra.mxu0 0
          %2841 = vmatprep.subr.bf16.mxu0 0
          %2842 = vmatpush2.bf16.msra.mxu0 0
          %2843 = vmatprep.subr.bf16.mxu0 0
          %2844 = vmatpush2.bf16.msra.mxu0 0
          %2845 = vmatprep.subr.bf16.mxu0 0
          %2846 = vmatpush2.bf16.msra.mxu0 0
          %2847 = vmatprep.subr.bf16.mxu0 0
          %2848 = vmatpush2.bf16.msra.mxu0 0
          %2849 = vmatprep.subr.bf16.mxu0 0
          %2850 = vmatpush2.bf16.msra.mxu0 0
          %2851 = vmatprep.subr.bf16.mxu0 0
          %2852 = vmatpush2.bf16.msra.mxu0 0
          %2853 = vmatprep.subr.bf16.mxu0 0
          %2854 = vmatpush2.bf16.msra.mxu0 0
          %2855 = vmatprep.mubr.bf16.mxu0 0
          %2856 = vmatmul.mubr.bf16.gmra.mxu0 %v2821
          %v2857 = vpop.f32.mrf.mxu0
          %v2858 = vadd.f32 %v2806, %v2857
          %v2859 = vpop.f32.mrf.mxu0
          %v2860 = vpop.f32.mrf.mxu0
          %v2861 = vpop.f32.mrf.mxu0
          %2862 = vdwg.mxu0
          %vm2863 = vcmask 162816
          %v2864 = vsel %vm2863, %v2858, -inf
          %2865 = vmax.xlane.f32.xlu0 %v2864
          %v2866 = vpop.xlane.xlu0 %2865
          %v2867 = vsub.f32 %v2858, %v2866
          %v2868 = vmul.f32 %v2867, 1.442695
          %v2869 = vpow.pop %v2868
          %v2870 = vsel %vm2863, %v2869, 0.0
          %2871 = vadd.xlane.f32.xlu0 %v2870
          %v2872 = vpop.xlane.xlu0 %2871
          %v2873 = vrcp.pop %v2872
          %v2874 = vmul.f32 %v2869, %v2873
          %v2875 = vld [vmem:[%s3] sm:$0xff]
          %v2876 = vld [vmem:[%s19] sm:$0xff]
          %v2877 = vstv %s2792
          %v2878 = vmul.f32 %v2877, %v2875
          %s2879 = ssub.f32 1.0, %s2792
          %v2880 = vrcp.pop 20.0
          %s2881 = vtos %v2880
          %s2882 = smul.f32 %s2879, %s2881
          %v2883 = vstv %s2882
          %v2884 = vadd.f32 %v2878, %v2883
          %v2885 = vstv %s2793
          %v2886 = vmul.f32 %v2885, %v2876
          %s2887 = ssub.f32 1.0, %s2793
          %v2888 = vrcp.pop 20.0
          %s2889 = vtos %v2888
          %s2890 = smul.f32 %s2887, %s2889
          %v2891 = vstv %s2890
          %v2892 = vadd.f32 %v2886, %v2891
          %v2893 = vmul.f32 %v2884, %v2892
          %v2894 = vsel %vm2863, %v2893, 0.0
          %2895 = vadd.xlane.f32.xlu0 %v2894
          %v2896 = vpop.xlane.xlu0 %2895
          %v2897 = vadd.f32 %v2896, 1e-08
          %v2898 = vrcp.pop %v2897
          %v2899 = vmul.f32 %v2893, %v2898
          %v2900 = vmul.f32 %v2885, %v2874
          %v2901 = vadd.f32 %v2900, %v2891
          %v2902 = vmul.f32 %v2884, %v2901
          %v2903 = vsel %vm2863, %v2902, 0.0
          %2904 = vadd.xlane.f32.xlu0 %v2903
          %v2905 = vpop.xlane.xlu0 %2904
          %v2906 = vadd.f32 %v2905, 1e-08
          %v2907 = vrcp.pop %v2906
          %v2908 = vmul.f32 %v2902, %v2907
          %v2909 = vadd.f32 %v2908, 1e-08
          %v2910 = vlog2.pop %v2909
          %v2911 = vmul.f32 %v2910, 0.6931472
          %vm2912 = vcmp.gt.f32.partialorder %v2899, 0.0
          %v2913 = vmax.f32 %v2899, 1e-30
          %v2914 = vlog2.pop %v2913
          %v2915 = vmul.f32 %v2914, 0.6931472
          %v2916 = vsub.f32 %v2915, %v2911
          %v2917 = vmul.f32 %v2899, %v2916
          %v2918 = vsel %vm2912, %v2917, 0.0
          %v2919 = vsel %vm2863, %v2918, 0.0
          %2920 = vadd.xlane.f32.xlu0 %v2919
          %v2921 = vpop.xlane.xlu0 %2920
          %v2922 = vrot.slane %v2921, 4
          %v2923 = vadd.f32 %v2921, %v2922
          %v2924 = vrot.slane %v2923, 2
          %v2925 = vadd.f32 %v2923, %v2924
          %v2926 = vrot.slane %v2925, 1
          %v2927 = vadd.f32 %v2925, %v2926
          %s2928 = vtos %v2927
          %v2929 = vstv %s2928
          %v2930 = vstv %s2794
          %v2931 = vmul.f32 %v2929, %v2930
          %vm2932 = vcmask 0
          %2933 = vst.msk [vmem:[#allocation8] sm:$0x1] %vm2932, %v2931
          %v2934 = vld [vmem:[#allocation3] sm:$0xff]
          %v2935 = vld [vmem:[%s5] sm:$0xff]
          %v2936 = vsub.f32 %v2934, %v2935
          %v2937 = vld [vmem:[%s17] sm:$0xff]
          %v2938 = vsub.f32 %v2936, %v2937
          %v2939 = vmul.f32 %v2938, %v2938
          %v2940 = vsel %vm1722, %v2939, 0.0
          %2941 = vadd.xlane.f32.xlu0 %v2940
          %v2942 = vpop.xlane.xlu0 %2941
          %v2943 = vrot.slane %v2942, 4
          %v2944 = vadd.f32 %v2942, %v2943
          %v2945 = vrot.slane %v2944, 2
          %v2946 = vadd.f32 %v2944, %v2945
          %v2947 = vrot.slane %v2946, 1
          %v2948 = vadd.f32 %v2946, %v2947
          %s2949 = vtos %v2948
          %v2950 = vstv %s2949
          %v2951 = vmul.f32 %v2950, %v2930
          %2952 = vst.msk [vmem:[#allocation7] sm:$0x1] %vm2932, %v2951
        $region152: #{full_dpm_forward.3} parent=139 // pred_fallthru
          _
        // Predicated region
        $region153: #{full_dpm_forward.3} parent=139 // pred_check
          %p2953 = pneg %p791
        $region154: #{full_dpm_forward.3} parent=139 // pred_check_branch
          %2955 = sbr.rel (%p2953) target = $region156
        $region155: #{full_dpm_forward.3} parent=139 // pred_region
          %s2957 = ssub.s32 16, 16
          %2958 = vsyncadd [#allocation5], %s2957
          %s2960 = sshll.u32 [#allocation7], 4
          %s2961 = int_to_ptr.vmem [resolvable:$true] %s2960
          %2963 = dma.vmem_to_hbm [thread:$0]  %s2961, 16, %s61, [#allocation5]
        $region156: #{full_dpm_forward.3} parent=139 // pred_fallthru
          _
        // Predicated region
        $region157: #{full_dpm_forward.3} parent=139 // pred_check
          %p2964 = pneg %p812
        $region158: #{full_dpm_forward.3} parent=139 // pred_check_branch
          %2966 = sbr.rel (%p2964) target = $region160
        $region159: #{full_dpm_forward.3} parent=139 // pred_region
          %s2968 = ssub.s32 16, 16
          %2969 = vsyncadd [#allocation9], %s2968
          %s2971 = sshll.u32 [#allocation8], 4
          %s2972 = int_to_ptr.vmem [resolvable:$true] %s2971
          %2974 = dma.vmem_to_hbm [thread:$0]  %s2972, 16, %s63, [#allocation9]
        $region160: #{full_dpm_forward.3} parent=139 // pred_fallthru
          _
        // Predicated region
        $region161: #{full_dpm_forward.3} parent=139 // pred_check
          %p2975 = pneg %p791
        $region162: #{full_dpm_forward.3} parent=139 // pred_check_branch
          %2977 = sbr.rel (%p2975) target = $region164
        $region163: #{full_dpm_forward.3} parent=139 // pred_region
          %2978 = dma.done [#allocation5], 16
        $region164: #{full_dpm_forward.3} parent=139 // pred_fallthru
          _
        // Predicated region
        $region165: #{full_dpm_forward.3} parent=139 // pred_check
          %p2979 = pneg %p812
        $region166: #{full_dpm_forward.3} parent=139 // pred_check_branch
          %2981 = sbr.rel (%p2979) target = $region168
        $region167: #{full_dpm_forward.3} parent=139 // pred_region
          %2982 = dma.done [#allocation9], 16
        $region168: #{full_dpm_forward.3} parent=139 // pred_fallthru
          _
      $region140: #{full_dpm_forward.3} parent=5 // pred_fallthru
        _
      %p2983 = scmp.le.s32.totalorder 2, %s73
      // Predicated region
      $region169: #{full_dpm_forward.3} parent=5 // pred_check
        %p2984 = pneg %p2983
      $region170: #{full_dpm_forward.3} parent=5 // pred_check_branch
        %2986 = sbr.rel (%p2984) target = $region172
      $region171: #{full_dpm_forward.3} parent=5 // pred_region
        %s2987 = ssub.s32 %s73, 2
      $region172: #{full_dpm_forward.3} parent=5 // pred_fallthru
        _
    $region6: #{full_dpm_forward.3} parent=1 // loop_footer
      %s77 = sadd.s32 1, %s73
    $region7: #{full_dpm_forward.3} parent=1 // loop_footer_branch
      %72 = sbr.rel target = $region3
    $region8: #{full_dpm_forward.3} parent=1 // loop_exit
      _
    %2988 = vsyncpa [#allocation5], 1
    %s2989 = scalar_lea.sflag [#allocation5], 1
    %2990 = vsyncpa %s2989, 1
    %2991 = vsyncpa [#allocation9], 1
    %2992 = vsyncpa [#allocation6], 1
    %s2993 = scalar_lea.sflag [#allocation6], 1
    %2994 = vsyncpa %s2993, 1

</llo_original>
